<compile_context>
chip_gen: v7x
topology: tpu7x:2x2x1
jax: 0.10.0
libtpu: 0.0.40
codegen_flags: <defaults>
</compile_context>

<pallas_src>
import functools

import numpy as np
import jax
import jax.numpy as jnp
from jax.experimental import pallas as pl
from jax.experimental.pallas import tpu as pltpu

EPS = 1e-5           # PyTorch BatchNorm2d default eps
LEAKY_SLOPE = 0.01   # PyTorch LeakyReLU default negative_slope

# Static geometry (input 3x16x16 as in the example).
C_IN, H_IN, W_IN = 3, 16, 16
HO, WO = 7, 7            # spatial size after conv1 (k5,s2,p1); kept by conv2/3
HS, WS = 9, 9            # space-to-depth grid of the pad=1 conv1 input
K_SD = 4 * C_IN          # 12 channels after 2x2 space-to-depth
C1, C2, C3 = 8, 16, 5    # per-layer output channels

# Parameter-slab row offsets (all multiples of 8 -> sublane-aligned slices).
_W1_OFF, _W2_OFF, _W3_OFF = 0, 112, 184
_BGB1_OFF, _BGB2_OFF, _BGB3_OFF = 328, 336, 344
_SLAB_ROWS, _SLAB_COLS = 352, 16


def _round_up(x, m):
    return ((x + m - 1) // m) * m


# --------------------- host-side constants (shape-only) ----------------------


def _take_indices():
    """(9*9*12,) indices into a flat NCHW image implementing pad=1 + NHWC +
    2x2 space-to-depth in a single XLA gather (OOB index -> zero fill)."""
    oob = C_IN * H_IN * W_IN
    idx = np.full((HS * WS * K_SD,), oob, np.int32)
    for i in range(HS):
        for j in range(WS):
            for di in range(2):
                for dj in range(2):
                    for c in range(C_IN):
                        h, w = 2 * i + di - 1, 2 * j + dj - 1
                        if 0 <= h < H_IN and 0 <= w < W_IN:
                            idx[(i * WS + j) * K_SD + (di * 2 + dj) * C_IN + c] = (
                                c * H_IN * W_IN + h * W_IN + w)
    return idx


def _gather_col_indices(n):
    """(9*BLK, 2) int32: per-(tap, output-row) source-row index for the two
    in-kernel stacked gather matmuls.  Column 0: conv1 (VALID 3x3 over the
    9x9 space-to-depth grid).  Column 1: conv2/conv3 (SAME 3x3 over 7x7).
    -1 marks a zero row (padding rows / boundary taps)."""
    m = n * HO * WO
    blk = _round_up(m, 8)
    cidx = np.full((9 * blk, 2), -1, np.int32)
    for t in range(9):
        u, v = t // 3, t % 3
        for r in range(m):
            nn, rr = r // (HO * WO), r % (HO * WO)
            oh, ow = rr // WO, rr % WO
            q = t * blk + r
            cidx[q, 0] = nn * HS * WS + (oh + u) * WS + (ow + v)
            hi, wi = oh + u - 1, ow + v - 1
            if 0 <= hi < HO and 0 <= wi < WO:
                cidx[q, 1] = nn * HO * WO + hi * WO + wi
    return cidx


def pack_params(params):
    """One-time host-side packing of all weights/biases/BN params into a single
    (352, 16) f32 slab (one kernel input DMA instead of 15)."""
    w1 = np.asarray(params["w1"], np.float32)   # (8, 3, 5, 5)
    w2 = np.asarray(params["w2"], np.float32)   # (16, 8, 3, 3)
    w3 = np.asarray(params["w3"], np.float32)   # (5, 16, 3, 3)

    # conv1 weights rearranged for the space-to-depth 3x3 formulation:
    # rows ordered (tap=(iu,jv), k=(du,dv,c)); taps with 2*iu+du > 4 are zero.
    w1s = np.zeros((9, K_SD, C1), np.float32)
    for iu in range(3):
        for jv in range(3):
            for du in range(2):
                for dv in range(2):
                    u, v = 2 * iu + du, 2 * jv + dv
                    if u < 5 and v < 5:
                        w1s[iu * 3 + jv,
                            (du * 2 + dv) * C_IN:(du * 2 + dv) * C_IN + C_IN,
                            :] = w1[:, :, u, v].T
    w1s = w1s.reshape(9 * K_SD, C1)                                   # (108, 8)
    w2c = np.transpose(w2, (2, 3, 1, 0)).reshape(9 * C1, C2)          # (72, 16)
    w3c = np.transpose(w3, (2, 3, 1, 0)).reshape(9 * C2, C3)          # (144, 5)

    slab = np.zeros((_SLAB_ROWS, _SLAB_COLS), np.float32)
    slab[_W1_OFF:_W1_OFF + 9 * K_SD, :C1] = w1s
    slab[_W2_OFF:_W2_OFF + 9 * C1, :C2] = w2c
    slab[_W3_OFF:_W3_OFF + 9 * C2, :C3] = w3c
    slab[_BGB1_OFF:_BGB1_OFF + 3, :C1] = np.stack(
        [np.asarray(params["b1"]), np.asarray(params["g1"]), np.asarray(params["be1"])])
    slab[_BGB2_OFF:_BGB2_OFF + 3, :C2] = np.stack(
        [np.asarray(params["b2"]), np.asarray(params["g2"]), np.asarray(params["be2"])])
    slab[_BGB3_OFF:_BGB3_OFF + 3, :C3] = np.stack(
        [np.asarray(params["b3"]), np.asarray(params["g3"]), np.asarray(params["be3"])])
    return jnp.asarray(slab)


# ------------------------------ fused Pallas kernel ---------------------------


def _fused_model_kernel(a0_ref, slab_ref, cidx_ref, o_ref, *, n, m, blk):
    qr = 9 * blk                 # rows of the stacked gather matmuls
    min1 = n * HS * WS           # rows of the space-to-depth input

    def bn(y, gamma, beta):
        # Training-mode BatchNorm2d, single-pass stats (sum & sum-of-squares).
        inv = 1.0 / y.shape[0]
        s1 = jnp.sum(y, axis=0, keepdims=True)
        s2 = jnp.sum(y * y, axis=0, keepdims=True)
        mean = s1 * inv
        var = s2 * inv - mean * mean
        scale = gamma * jax.lax.rsqrt(var + EPS)
        return y * scale + (beta - mean * scale)

    def gather_mask(cidx_col, n_src):
        # 0/1 stacked gather matrix generated in-kernel (no HBM constant).
        lane = jax.lax.broadcasted_iota(jnp.int32, (qr, n_src), 1)
        return jnp.where(lane == cidx_col, 1.0, 0.0)

    def conv3x3(a, g, w):
        # (1) one stacked gather matmul -> (9*blk, Cin)
        p = jnp.dot(g, a, preferred_element_type=jnp.float32)
        # (2) 8-aligned tap blocks lane-concatenated -> (m, 9*Cin)
        cat = jnp.concatenate([p[t * blk:t * blk + m, :] for t in range(9)], axis=1)
        # (3) one packed weight matmul -> (m, Cout)
        return jnp.dot(cat, w, preferred_element_type=jnp.float32)

    # ---- conv1 (5x5/s2/p1 as VALID 3x3 over space-to-depth) + LeakyReLU + BN
    a0 = a0_ref[...]                                           # (min1, 12)
    bgb1 = slab_ref[_BGB1_OFF:_BGB1_OFF + 3, 0:C1]             # bias/gamma/beta
    g1 = gather_mask(cidx_ref[:, 0:1], min1)
    y1 = conv3x3(a0, g1, slab_ref[_W1_OFF:_W1_OFF + 9 * K_SD, 0:C1]) + bgb1[0:1, :]
    y1 = jnp.where(y1 >= 0.0, y1, LEAKY_SLOPE * y1)
    a1 = bn(y1, bgb1[1:2, :], bgb1[2:3, :])                    # (m, 8)

    # ---- conv2 + ReLU + BN (shares the 7x7 gather mask with conv3) ----------
    g23 = gather_mask(cidx_ref[:, 1:2], m)
    bgb2 = slab_ref[_BGB2_OFF:_BGB2_OFF + 3, 0:C2]
    y2 = conv3x3(a1, g23, slab_ref[_W2_OFF:_W2_OFF + 9 * C1, 0:C2]) + bgb2[0:1, :]
    y2 = jnp.maximum(y2, 0.0)
    a2 = bn(y2, bgb2[1:2, :], bgb2[2:3, :])                    # (m, 16)

    # ---- conv3 + ReLU + BN --------------------------------------------------
    bgb3 = slab_ref[_BGB3_OFF:_BGB3_OFF + 3, 0:C3]
    y3 = conv3x3(a2, g23, slab_ref[_W3_OFF:_W3_OFF + 9 * C2, 0:C3]) + bgb3[0:1, :]
    y3 = jnp.maximum(y3, 0.0)
    a3 = bn(y3, bgb3[1:2, :], bgb3[2:3, :])                    # (m, 5)

    # ---- adaptive_avg_pool2d(1,1) + flatten + softmax -----------------------
    hw = HO * WO
    ni = jax.lax.broadcasted_iota(jnp.int32, (n, m), 0)
    ri = jax.lax.broadcasted_iota(jnp.int32, (n, m), 1)
    pool = jnp.where((ri >= ni * hw) & (ri < (ni + 1) * hw), 1.0 / hw, 0.0)
    pooled = jnp.dot(pool, a3, preferred_element_type=jnp.float32)   # (n, 5)
    mx = jnp.max(pooled, axis=1, keepdims=True)
    e = jnp.exp(pooled - mx)
    o_ref[...] = (e / jnp.sum(e, axis=1, keepdims=True)).astype(o_ref.dtype)


# --------------------------------- wrapper ------------------------------------


@jax.jit
def model_forward(x_nchw, slab):
    n = x_nchw.shape[0]
    m = n * HO * WO
    blk = _round_up(m, 8)

    # Trace-time (shape-only) constants.
    take_idx = jnp.asarray(_take_indices())
    cidx = jnp.asarray(_gather_col_indices(n))

    # Single XLA gather = pad(1) + NCHW->NHWC + 2x2 space-to-depth of the input.
    x_flat = x_nchw.reshape(n, C_IN * H_IN * W_IN)
    a0 = jnp.take(x_flat, take_idx, axis=1, mode="fill", fill_value=0.0)
    a0 = a0.reshape(n * HS * WS, K_SD)                          # (n*81, 12)

    vmem = pl.BlockSpec(memory_space=pltpu.MemorySpace.VMEM)
    kernel = functools.partial(_fused_model_kernel, n=n, m=m, blk=blk)
    return pl.pallas_call(
        kernel,
        out_shape=jax.ShapeDtypeStruct((n, C3), jnp.float32),
        in_specs=[vmem, vmem, vmem],
        out_specs=vmem,
    )(a0, slab, cidx)


# ------------------------------- params / reference ---------------------------


def init_params(key):
    # PyTorch default Conv2d init (uniform +/- 1/sqrt(fan_in)); BN: gamma=1, beta=0.
    def conv_init(k, cout, cin, kh, kw):
        k1, k2 = jax.random.split(k)
        bound = 1.0 / ((cin * kh * kw) ** 0.5)
        w = jax.random.uniform(k1, (cout, cin, kh, kw), jnp.float32, -bound, bound)
        b = jax.random.uniform(k2, (cout,), jnp.float32, -bound, bound)
        return w, b

    k1, k2, k3 = jax.random.split(key, 3)
    p = {}
    p["w1"], p["b1"] = conv_init(k1, C1, C_IN, 5, 5)
    p["g1"], p["be1"] = jnp.ones((C1,), jnp.float32), jnp.zeros((C1,), jnp.float32)
    p["w2"], p["b2"] = conv_init(k2, C2, C1, 3, 3)
    p["g2"], p["be2"] = jnp.ones((C2,), jnp.float32), jnp.zeros((C2,), jnp.float32)
    p["w3"], p["b3"] = conv_init(k3, C3, C2, 3, 3)
    p["g3"], p["be3"] = jnp.ones((C3,), jnp.float32), jnp.zeros((C3,), jnp.float32)
    return p


def reference_forward(x_nchw, params):
    def conv(x, w, b, stride, pad):
        y = jax.lax.conv_general_dilated(
            x, w, (stride, stride), [(pad, pad), (pad, pad)],
            dimension_numbers=("NCHW", "OIHW", "NCHW"),
            precision=jax.lax.Precision.HIGHEST)
        return y + b.reshape(1, -1, 1, 1)

    def bn(y, g, be):
        mean = jnp.mean(y, axis=(0, 2, 3), keepdims=True)
        var = jnp.mean((y - mean) ** 2, axis=(0, 2, 3), keepdims=True)
        return ((y - mean) * jax.lax.rsqrt(var + EPS) * g.reshape(1, -1, 1, 1)
                + be.reshape(1, -1, 1, 1))

    y = conv(x_nchw, params["w1"], params["b1"], 2, 1)
    y = jnp.where(y >= 0.0, y, LEAKY_SLOPE * y)
    y = bn(y, params["g1"], params["be1"])
    y = conv(y, params["w2"], params["b2"], 1, 1)
    y = jnp.maximum(y, 0.0)
    y = bn(y, params["g2"], params["be2"])
    y = conv(y, params["w3"], params["b3"], 1, 1)
    y = jnp.maximum(y, 0.0)
    y = bn(y, params["g3"], params["be3"])
    pooled = jnp.mean(y, axis=(2, 3))
    return jax.nn.softmax(pooled, axis=1)


if __name__ == "__main__":
    key = jax.random.PRNGKey(0)
    kx, kp = jax.random.split(key)
    x = jax.random.normal(kx, (2, 3, 16, 16), jnp.float32)
    params = init_params(kp)

    slab = pack_params(params)          # one-time host-side packing

    out = jax.block_until_ready(model_forward(x, slab))

    assert out.shape == (2, 5), out.shape
    assert bool(jnp.all(jnp.abs(jnp.sum(out, axis=1) - 1.0) < 1e-4))

    ref = jax.block_until_ready(reference_forward(x, params))
    assert np.allclose(np.asarray(out), np.asarray(ref), atol=1e-2, rtol=1e-2), (
        float(np.max(np.abs(np.asarray(out) - np.asarray(ref)))))

    print("KERNEL_OK")
</pallas_src>

<mosaic_0001>
module attributes {stable_mosaic.version = 11 : i64} {
  func.func @_fused_model_kernel(%arg0: memref<162x12xf32, #tpu.memory_space<vmem>>, %arg1: memref<352x16xf32, #tpu.memory_space<vmem>>, %arg2: memref<936x2xi32, #tpu.memory_space<vmem>>, %arg3: memref<2x5xf32, #tpu.memory_space<vmem>>) attributes {dimension_semantics = [], scalar_prefetch = 0 : i64, scratch_operands = 0 : i64, tpu.core_type = #tpu.core_type<tc>} {
    %c0 = arith.constant 0 : index
    %c0_0 = arith.constant 0 : index
    %0 = vector.load %arg0[%c0, %c0_0] : memref<162x12xf32, #tpu.memory_space<vmem>>, vector<162x12xf32>
    %c328 = arith.constant 328 : index
    %c0_1 = arith.constant 0 : index
    %1 = vector.load %arg1[%c328, %c0_1] : memref<352x16xf32, #tpu.memory_space<vmem>>, vector<3x8xf32>
    %c0_2 = arith.constant 0 : index
    %c0_3 = arith.constant 0 : index
    %2 = vector.load %arg2[%c0_2, %c0_3] : memref<936x2xi32, #tpu.memory_space<vmem>>, vector<936x1xi32>
    %3 = tpu.iota {dimensions = array<i32: 1>} : vector<936x162xi32>
    %4 = vector.broadcast %2 : vector<936x1xi32> to vector<936x162xi32>
    %5 = arith.cmpi eq, %3, %4 : vector<936x162xi32>
    %cst = arith.constant 1.000000e+00 : f32
    %cst_4 = arith.constant 0.000000e+00 : f32
    %6 = vector.broadcast %cst : f32 to vector<936x162xf32>
    %7 = vector.broadcast %cst_4 : f32 to vector<936x162xf32>
    %8 = arith.select %5, %6, %7 : vector<936x162xi1>, vector<936x162xf32>
    %c0_5 = arith.constant 0 : index
    %c0_6 = arith.constant 0 : index
    %9 = vector.load %arg1[%c0_5, %c0_6] : memref<352x16xf32, #tpu.memory_space<vmem>>, vector<108x8xf32>
    %cst_7 = arith.constant dense<0.000000e+00> : vector<936x12xf32>
    %10 = tpu.matmul %8, %0, %cst_7 {dimension_numbers = #tpu.dot_dimension_numbers<[1], [0], [0], [1], [0, 0, 1, 1], [], []>} : vector<936x162xf32>, vector<162x12xf32>, vector<936x12xf32> -> vector<936x12xf32>
    %11 = vector.extract_strided_slice %10 {offsets = [0, 0], sizes = [98, 12], strides = [1, 1]} : vector<936x12xf32> to vector<98x12xf32>
    %12 = vector.extract_strided_slice %10 {offsets = [104, 0], sizes = [98, 12], strides = [1, 1]} : vector<936x12xf32> to vector<98x12xf32>
    %13 = vector.extract_strided_slice %10 {offsets = [208, 0], sizes = [98, 12], strides = [1, 1]} : vector<936x12xf32> to vector<98x12xf32>
    %14 = vector.extract_strided_slice %10 {offsets = [312, 0], sizes = [98, 12], strides = [1, 1]} : vector<936x12xf32> to vector<98x12xf32>
    %15 = vector.extract_strided_slice %10 {offsets = [416, 0], sizes = [98, 12], strides = [1, 1]} : vector<936x12xf32> to vector<98x12xf32>
    %16 = vector.extract_strided_slice %10 {offsets = [520, 0], sizes = [98, 12], strides = [1, 1]} : vector<936x12xf32> to vector<98x12xf32>
    %17 = vector.extract_strided_slice %10 {offsets = [624, 0], sizes = [98, 12], strides = [1, 1]} : vector<936x12xf32> to vector<98x12xf32>
    %18 = vector.extract_strided_slice %10 {offsets = [728, 0], sizes = [98, 12], strides = [1, 1]} : vector<936x12xf32> to vector<98x12xf32>
    %19 = vector.extract_strided_slice %10 {offsets = [832, 0], sizes = [98, 12], strides = [1, 1]} : vector<936x12xf32> to vector<98x12xf32>
    %20 = tpu.concatenate %11, %12, %13, %14, %15, %16, %17, %18, %19 in 1 : vector<98x12xf32>, vector<98x12xf32>, vector<98x12xf32>, vector<98x12xf32>, vector<98x12xf32>, vector<98x12xf32>, vector<98x12xf32>, vector<98x12xf32>, vector<98x12xf32> -> vector<98x108xf32>
    %cst_8 = arith.constant dense<0.000000e+00> : vector<98x8xf32>
    %21 = tpu.matmul %20, %9, %cst_8 {dimension_numbers = #tpu.dot_dimension_numbers<[1], [0], [0], [1], [0, 0, 1, 1], [], []>} : vector<98x108xf32>, vector<108x8xf32>, vector<98x8xf32> -> vector<98x8xf32>
    %22 = vector.extract_strided_slice %1 {offsets = [0, 0], sizes = [1, 8], strides = [1, 1]} : vector<3x8xf32> to vector<1x8xf32>
    %23 = vector.broadcast %22 : vector<1x8xf32> to vector<98x8xf32>
    %24 = arith.addf %21, %23 : vector<98x8xf32>
    %cst_9 = arith.constant 0.000000e+00 : f32
    %25 = vector.broadcast %cst_9 : f32 to vector<98x8xf32>
    %26 = arith.cmpf oge, %24, %25 : vector<98x8xf32>
    %cst_10 = arith.constant 0.00999999977 : f32
    %27 = vector.broadcast %cst_10 : f32 to vector<98x8xf32>
    %28 = arith.mulf %27, %24 : vector<98x8xf32>
    %29 = arith.select %26, %24, %28 : vector<98x8xi1>, vector<98x8xf32>
    %30 = vector.extract_strided_slice %1 {offsets = [1, 0], sizes = [1, 8], strides = [1, 1]} : vector<3x8xf32> to vector<1x8xf32>
    %31 = vector.extract_strided_slice %1 {offsets = [2, 0], sizes = [1, 8], strides = [1, 1]} : vector<3x8xf32> to vector<1x8xf32>
    %cst_11 = arith.constant dense<0.000000e+00> : vector<8xf32>
    %32 = vector.multi_reduction <add>, %29, %cst_11 [0] : vector<98x8xf32> to vector<8xf32>
    %33 = vector.shape_cast %32 : vector<8xf32> to vector<1x8xf32>
    %34 = arith.mulf %29, %29 : vector<98x8xf32>
    %cst_12 = arith.constant dense<0.000000e+00> : vector<8xf32>
    %35 = vector.multi_reduction <add>, %34, %cst_12 [0] : vector<98x8xf32> to vector<8xf32>
    %36 = vector.shape_cast %35 : vector<8xf32> to vector<1x8xf32>
    %cst_13 = arith.constant 0.0102040814 : f32
    %37 = vector.broadcast %cst_13 : f32 to vector<1x8xf32>
    %38 = arith.mulf %33, %37 : vector<1x8xf32>
    %cst_14 = arith.constant 0.0102040814 : f32
    %39 = vector.broadcast %cst_14 : f32 to vector<1x8xf32>
    %40 = arith.mulf %36, %39 : vector<1x8xf32>
    %41 = arith.mulf %38, %38 : vector<1x8xf32>
    %42 = arith.subf %40, %41 : vector<1x8xf32>
    %cst_15 = arith.constant 9.99999974E-6 : f32
    %43 = vector.broadcast %cst_15 : f32 to vector<1x8xf32>
    %44 = arith.addf %42, %43 : vector<1x8xf32>
    %45 = math.rsqrt %44 : vector<1x8xf32>
    %46 = arith.mulf %30, %45 : vector<1x8xf32>
    %47 = vector.broadcast %46 : vector<1x8xf32> to vector<98x8xf32>
    %48 = arith.mulf %29, %47 : vector<98x8xf32>
    %49 = arith.mulf %38, %46 : vector<1x8xf32>
    %50 = arith.subf %31, %49 : vector<1x8xf32>
    %51 = vector.broadcast %50 : vector<1x8xf32> to vector<98x8xf32>
    %52 = arith.addf %48, %51 : vector<98x8xf32>
    %c0_16 = arith.constant 0 : index
    %c1 = arith.constant 1 : index
    %53 = vector.load %arg2[%c0_16, %c1] : memref<936x2xi32, #tpu.memory_space<vmem>>, vector<936x1xi32>
    %54 = tpu.iota {dimensions = array<i32: 1>} : vector<936x98xi32>
    %55 = vector.broadcast %53 : vector<936x1xi32> to vector<936x98xi32>
    %56 = arith.cmpi eq, %54, %55 : vector<936x98xi32>
    %cst_17 = arith.constant 1.000000e+00 : f32
    %cst_18 = arith.constant 0.000000e+00 : f32
    %57 = vector.broadcast %cst_17 : f32 to vector<936x98xf32>
    %58 = vector.broadcast %cst_18 : f32 to vector<936x98xf32>
    %59 = arith.select %56, %57, %58 : vector<936x98xi1>, vector<936x98xf32>
    %c336 = arith.constant 336 : index
    %c0_19 = arith.constant 0 : index
    %60 = vector.load %arg1[%c336, %c0_19] : memref<352x16xf32, #tpu.memory_space<vmem>>, vector<3x16xf32>
    %c112 = arith.constant 112 : index
    %c0_20 = arith.constant 0 : index
    %61 = vector.load %arg1[%c112, %c0_20] : memref<352x16xf32, #tpu.memory_space<vmem>>, vector<72x16xf32>
    %cst_21 = arith.constant dense<0.000000e+00> : vector<936x8xf32>
    %62 = tpu.matmul %59, %52, %cst_21 {dimension_numbers = #tpu.dot_dimension_numbers<[1], [0], [0], [1], [0, 0, 1, 1], [], []>} : vector<936x98xf32>, vector<98x8xf32>, vector<936x8xf32> -> vector<936x8xf32>
    %63 = vector.extract_strided_slice %62 {offsets = [0, 0], sizes = [98, 8], strides = [1, 1]} : vector<936x8xf32> to vector<98x8xf32>
    %64 = vector.extract_strided_slice %62 {offsets = [104, 0], sizes = [98, 8], strides = [1, 1]} : vector<936x8xf32> to vector<98x8xf32>
    %65 = vector.extract_strided_slice %62 {offsets = [208, 0], sizes = [98, 8], strides = [1, 1]} : vector<936x8xf32> to vector<98x8xf32>
    %66 = vector.extract_strided_slice %62 {offsets = [312, 0], sizes = [98, 8], strides = [1, 1]} : vector<936x8xf32> to vector<98x8xf32>
    %67 = vector.extract_strided_slice %62 {offsets = [416, 0], sizes = [98, 8], strides = [1, 1]} : vector<936x8xf32> to vector<98x8xf32>
    %68 = vector.extract_strided_slice %62 {offsets = [520, 0], sizes = [98, 8], strides = [1, 1]} : vector<936x8xf32> to vector<98x8xf32>
    %69 = vector.extract_strided_slice %62 {offsets = [624, 0], sizes = [98, 8], strides = [1, 1]} : vector<936x8xf32> to vector<98x8xf32>
    %70 = vector.extract_strided_slice %62 {offsets = [728, 0], sizes = [98, 8], strides = [1, 1]} : vector<936x8xf32> to vector<98x8xf32>
    %71 = vector.extract_strided_slice %62 {offsets = [832, 0], sizes = [98, 8], strides = [1, 1]} : vector<936x8xf32> to vector<98x8xf32>
    %72 = tpu.concatenate %63, %64, %65, %66, %67, %68, %69, %70, %71 in 1 : vector<98x8xf32>, vector<98x8xf32>, vector<98x8xf32>, vector<98x8xf32>, vector<98x8xf32>, vector<98x8xf32>, vector<98x8xf32>, vector<98x8xf32>, vector<98x8xf32> -> vector<98x72xf32>
    %cst_22 = arith.constant dense<0.000000e+00> : vector<98x16xf32>
    %73 = tpu.matmul %72, %61, %cst_22 {dimension_numbers = #tpu.dot_dimension_numbers<[1], [0], [0], [1], [0, 0, 1, 1], [], []>} : vector<98x72xf32>, vector<72x16xf32>, vector<98x16xf32> -> vector<98x16xf32>
    %74 = vector.extract_strided_slice %60 {offsets = [0, 0], sizes = [1, 16], strides = [1, 1]} : vector<3x16xf32> to vector<1x16xf32>
    %75 = vector.broadcast %74 : vector<1x16xf32> to vector<98x16xf32>
    %76 = arith.addf %73, %75 : vector<98x16xf32>
    %cst_23 = arith.constant 0.000000e+00 : f32
    %77 = vector.broadcast %cst_23 : f32 to vector<98x16xf32>
    %78 = arith.maximumf %76, %77 : vector<98x16xf32>
    %79 = vector.extract_strided_slice %60 {offsets = [1, 0], sizes = [1, 16], strides = [1, 1]} : vector<3x16xf32> to vector<1x16xf32>
    %80 = vector.extract_strided_slice %60 {offsets = [2, 0], sizes = [1, 16], strides = [1, 1]} : vector<3x16xf32> to vector<1x16xf32>
    %cst_24 = arith.constant dense<0.000000e+00> : vector<16xf32>
    %81 = vector.multi_reduction <add>, %78, %cst_24 [0] : vector<98x16xf32> to vector<16xf32>
    %82 = vector.shape_cast %81 : vector<16xf32> to vector<1x16xf32>
    %83 = arith.mulf %78, %78 : vector<98x16xf32>
    %cst_25 = arith.constant dense<0.000000e+00> : vector<16xf32>
    %84 = vector.multi_reduction <add>, %83, %cst_25 [0] : vector<98x16xf32> to vector<16xf32>
    %85 = vector.shape_cast %84 : vector<16xf32> to vector<1x16xf32>
    %cst_26 = arith.constant 0.0102040814 : f32
    %86 = vector.broadcast %cst_26 : f32 to vector<1x16xf32>
    %87 = arith.mulf %82, %86 : vector<1x16xf32>
    %cst_27 = arith.constant 0.0102040814 : f32
    %88 = vector.broadcast %cst_27 : f32 to vector<1x16xf32>
    %89 = arith.mulf %85, %88 : vector<1x16xf32>
    %90 = arith.mulf %87, %87 : vector<1x16xf32>
    %91 = arith.subf %89, %90 : vector<1x16xf32>
    %cst_28 = arith.constant 9.99999974E-6 : f32
    %92 = vector.broadcast %cst_28 : f32 to vector<1x16xf32>
    %93 = arith.addf %91, %92 : vector<1x16xf32>
    %94 = math.rsqrt %93 : vector<1x16xf32>
    %95 = arith.mulf %79, %94 : vector<1x16xf32>
    %96 = vector.broadcast %95 : vector<1x16xf32> to vector<98x16xf32>
    %97 = arith.mulf %78, %96 : vector<98x16xf32>
    %98 = arith.mulf %87, %95 : vector<1x16xf32>
    %99 = arith.subf %80, %98 : vector<1x16xf32>
    %100 = vector.broadcast %99 : vector<1x16xf32> to vector<98x16xf32>
    %101 = arith.addf %97, %100 : vector<98x16xf32>
    %c344 = arith.constant 344 : index
    %c0_29 = arith.constant 0 : index
    %102 = vector.load %arg1[%c344, %c0_29] : memref<352x16xf32, #tpu.memory_space<vmem>>, vector<3x5xf32>
    %c184 = arith.constant 184 : index
    %c0_30 = arith.constant 0 : index
    %103 = vector.load %arg1[%c184, %c0_30] : memref<352x16xf32, #tpu.memory_space<vmem>>, vector<144x5xf32>
    %cst_31 = arith.constant dense<0.000000e+00> : vector<936x16xf32>
    %104 = tpu.matmul %59, %101, %cst_31 {dimension_numbers = #tpu.dot_dimension_numbers<[1], [0], [0], [1], [0, 0, 1, 1], [], []>} : vector<936x98xf32>, vector<98x16xf32>, vector<936x16xf32> -> vector<936x16xf32>
    %105 = vector.extract_strided_slice %104 {offsets = [0, 0], sizes = [98, 16], strides = [1, 1]} : vector<936x16xf32> to vector<98x16xf32>
    %106 = vector.extract_strided_slice %104 {offsets = [104, 0], sizes = [98, 16], strides = [1, 1]} : vector<936x16xf32> to vector<98x16xf32>
    %107 = vector.extract_strided_slice %104 {offsets = [208, 0], sizes = [98, 16], strides = [1, 1]} : vector<936x16xf32> to vector<98x16xf32>
    %108 = vector.extract_strided_slice %104 {offsets = [312, 0], sizes = [98, 16], strides = [1, 1]} : vector<936x16xf32> to vector<98x16xf32>
    %109 = vector.extract_strided_slice %104 {offsets = [416, 0], sizes = [98, 16], strides = [1, 1]} : vector<936x16xf32> to vector<98x16xf32>
    %110 = vector.extract_strided_slice %104 {offsets = [520, 0], sizes = [98, 16], strides = [1, 1]} : vector<936x16xf32> to vector<98x16xf32>
    %111 = vector.extract_strided_slice %104 {offsets = [624, 0], sizes = [98, 16], strides = [1, 1]} : vector<936x16xf32> to vector<98x16xf32>
    %112 = vector.extract_strided_slice %104 {offsets = [728, 0], sizes = [98, 16], strides = [1, 1]} : vector<936x16xf32> to vector<98x16xf32>
    %113 = vector.extract_strided_slice %104 {offsets = [832, 0], sizes = [98, 16], strides = [1, 1]} : vector<936x16xf32> to vector<98x16xf32>
    %114 = tpu.concatenate %105, %106, %107, %108, %109, %110, %111, %112, %113 in 1 : vector<98x16xf32>, vector<98x16xf32>, vector<98x16xf32>, vector<98x16xf32>, vector<98x16xf32>, vector<98x16xf32>, vector<98x16xf32>, vector<98x16xf32>, vector<98x16xf32> -> vector<98x144xf32>
    %cst_32 = arith.constant dense<0.000000e+00> : vector<98x5xf32>
    %115 = tpu.matmul %114, %103, %cst_32 {dimension_numbers = #tpu.dot_dimension_numbers<[1], [0], [0], [1], [0, 0, 1, 1], [], []>} : vector<98x144xf32>, vector<144x5xf32>, vector<98x5xf32> -> vector<98x5xf32>
    %116 = vector.extract_strided_slice %102 {offsets = [0, 0], sizes = [1, 5], strides = [1, 1]} : vector<3x5xf32> to vector<1x5xf32>
    %117 = vector.broadcast %116 : vector<1x5xf32> to vector<98x5xf32>
    %118 = arith.addf %115, %117 : vector<98x5xf32>
    %cst_33 = arith.constant 0.000000e+00 : f32
    %119 = vector.broadcast %cst_33 : f32 to vector<98x5xf32>
    %120 = arith.maximumf %118, %119 : vector<98x5xf32>
    %121 = vector.extract_strided_slice %102 {offsets = [1, 0], sizes = [1, 5], strides = [1, 1]} : vector<3x5xf32> to vector<1x5xf32>
    %122 = vector.extract_strided_slice %102 {offsets = [2, 0], sizes = [1, 5], strides = [1, 1]} : vector<3x5xf32> to vector<1x5xf32>
    %cst_34 = arith.constant dense<0.000000e+00> : vector<5xf32>
    %123 = vector.multi_reduction <add>, %120, %cst_34 [0] : vector<98x5xf32> to vector<5xf32>
    %124 = vector.shape_cast %123 : vector<5xf32> to vector<1x5xf32>
    %125 = arith.mulf %120, %120 : vector<98x5xf32>
    %cst_35 = arith.constant dense<0.000000e+00> : vector<5xf32>
    %126 = vector.multi_reduction <add>, %125, %cst_35 [0] : vector<98x5xf32> to vector<5xf32>
    %127 = vector.shape_cast %126 : vector<5xf32> to vector<1x5xf32>
    %cst_36 = arith.constant 0.0102040814 : f32
    %128 = vector.broadcast %cst_36 : f32 to vector<1x5xf32>
    %129 = arith.mulf %124, %128 : vector<1x5xf32>
    %cst_37 = arith.constant 0.0102040814 : f32
    %130 = vector.broadcast %cst_37 : f32 to vector<1x5xf32>
    %131 = arith.mulf %127, %130 : vector<1x5xf32>
    %132 = arith.mulf %129, %129 : vector<1x5xf32>
    %133 = arith.subf %131, %132 : vector<1x5xf32>
    %cst_38 = arith.constant 9.99999974E-6 : f32
    %134 = vector.broadcast %cst_38 : f32 to vector<1x5xf32>
    %135 = arith.addf %133, %134 : vector<1x5xf32>
    %136 = math.rsqrt %135 : vector<1x5xf32>
    %137 = arith.mulf %121, %136 : vector<1x5xf32>
    %138 = vector.broadcast %137 : vector<1x5xf32> to vector<98x5xf32>
    %139 = arith.mulf %120, %138 : vector<98x5xf32>
    %140 = arith.mulf %129, %137 : vector<1x5xf32>
    %141 = arith.subf %122, %140 : vector<1x5xf32>
    %142 = vector.broadcast %141 : vector<1x5xf32> to vector<98x5xf32>
    %143 = arith.addf %139, %142 : vector<98x5xf32>
    %144 = tpu.iota {dimensions = array<i32: 0>} : vector<2x98xi32>
    %145 = tpu.iota {dimensions = array<i32: 1>} : vector<2x98xi32>
    %c49_i32 = arith.constant 49 : i32
    %146 = vector.broadcast %c49_i32 : i32 to vector<2x98xi32>
    %147 = arith.muli %144, %146 : vector<2x98xi32>
    %148 = arith.cmpi sge, %145, %147 : vector<2x98xi32>
    %c1_i32 = arith.constant 1 : i32
    %149 = vector.broadcast %c1_i32 : i32 to vector<2x98xi32>
    %150 = arith.addi %144, %149 : vector<2x98xi32>
    %c49_i32_39 = arith.constant 49 : i32
    %151 = vector.broadcast %c49_i32_39 : i32 to vector<2x98xi32>
    %152 = arith.muli %150, %151 : vector<2x98xi32>
    %153 = arith.cmpi slt, %145, %152 : vector<2x98xi32>
    %154 = arith.andi %148, %153 : vector<2x98xi1>
    %cst_40 = arith.constant 0.0204081628 : f32
    %cst_41 = arith.constant 0.000000e+00 : f32
    %155 = vector.broadcast %cst_40 : f32 to vector<2x98xf32>
    %156 = vector.broadcast %cst_41 : f32 to vector<2x98xf32>
    %157 = arith.select %154, %155, %156 : vector<2x98xi1>, vector<2x98xf32>
    %cst_42 = arith.constant dense<0.000000e+00> : vector<2x5xf32>
    %158 = tpu.matmul %157, %143, %cst_42 {dimension_numbers = #tpu.dot_dimension_numbers<[1], [0], [0], [1], [0, 0, 1, 1], [], []>} : vector<2x98xf32>, vector<98x5xf32>, vector<2x5xf32> -> vector<2x5xf32>
    %cst_43 = arith.constant dense<0xFF800000> : vector<2xf32>
    %159 = vector.multi_reduction <maximumf>, %158, %cst_43 [1] : vector<2x5xf32> to vector<2xf32>
    %160 = vector.shape_cast %159 : vector<2xf32> to vector<2x1xf32>
    %161 = vector.broadcast %160 : vector<2x1xf32> to vector<2x5xf32>
    %162 = arith.subf %158, %161 : vector<2x5xf32>
    %163 = math.exp %162 : vector<2x5xf32>
    %cst_44 = arith.constant dense<0.000000e+00> : vector<2xf32>
    %164 = vector.multi_reduction <add>, %163, %cst_44 [1] : vector<2x5xf32> to vector<2xf32>
    %165 = vector.shape_cast %164 : vector<2xf32> to vector<2x1xf32>
    %166 = vector.broadcast %165 : vector<2x1xf32> to vector<2x5xf32>
    %167 = arith.divf %163, %166 : vector<2x5xf32>
    %c0_45 = arith.constant 0 : index
    %c0_46 = arith.constant 0 : index
    %168 = vector.load %arg3[%c0_45, %c0_46] : memref<2x5xf32, #tpu.memory_space<vmem>>, vector<2x5xf32>
    tpu.vector_store %arg3[%c0_45, %c0_46], %167 {strides = array<i32>} : memref<2x5xf32, #tpu.memory_space<vmem>>, vector<2x5xf32>,
    return
  }
}

</mosaic_0001>

<llo_original>
// kernel: model_forward.1
$region0: #{model_forward.1}
  #allocation0 [shape = 'u32[]', space=smem, size = 0x4, offset = 0x4, fixed_abs, tag = 'smem constant byte address 0x4 - core index']
  #allocation1 [shape = 'u32[144,128]{1,0:T(1,128)}', space=vmem, size = 0x12000, scoped, tag = 'internal scratch']
  %s0 = inlined_call_operand.vmem [shape: f32[162,12], index: 0, kind: input, shape index: {}]
  %s1 = inlined_call_operand.vmem [shape: f32[352,16], index: 1, kind: input, shape index: {}]
  %s2 = inlined_call_operand.vmem [shape: s32[936,2], index: 2, kind: input, shape index: {}]
  %s3 = inlined_call_operand.hbm [shape: f32[2,5], index: 3, kind: output, shape index: {}]
  %s4 = sld [smem:[#allocation0]]
  $region22: #{model_forward.1} parent=0
    _
  %s6 = ssub.s32 1, %s4
  %s7 = scalar_select 0, %s6, %s4
  $region1: #{model_forward.1} parent=0
    #allocation2 [shape = 'u8[1024]{0}', space=vmem, size = 0x400, scoped, tag = 'output window, operand 0, single buffered']
    #allocation3 [shape = 's32[1]{0}', space=sflag, size = 0x4, scoped, tag = 'scoped memory for model_forward.1']
    %8 = vsyncpa [#allocation3], 0
    // Predicated region
    $region2: #{model_forward.1} parent=1 // pred_check
      _
    $region3: #{model_forward.1} parent=1 // pred_check_branch
      %10 = sbr.rel (0) target = $region5
    $region4: #{model_forward.1} parent=1 // pred_region
      _
    $region5: #{model_forward.1} parent=1 // pred_fallthru
      _
    // Predicated region
    $region6: #{model_forward.1} parent=1 // pred_check
      _
    $region7: #{model_forward.1} parent=1 // pred_check_branch
      %12 = sbr.rel (0) target = $region9
    $region8: #{model_forward.1} parent=1 // pred_region
      _
    $region9: #{model_forward.1} parent=1 // pred_fallthru
      _
    // Predicated region
    $region10: #{model_forward.1} parent=1 // pred_check
      _
    $region11: #{model_forward.1} parent=1 // pred_check_branch
      %14 = sbr.rel (0) target = $region13
    $region12: #{model_forward.1} parent=1 // pred_region
      _
    $region13: #{model_forward.1} parent=1 // pred_fallthru
      _
    %v15 = vld [vmem:[%s0] sm:$0xff]
    %v16 = vld [vmem:[%s0 + $0x8] sm:$0xff]
    %v17 = vld [vmem:[%s0 + $0x10] sm:$0xff]
    %v18 = vld [vmem:[%s0 + $0x18] sm:$0xff]
    %v19 = vld [vmem:[%s0 + $0x20] sm:$0xff]
    %v20 = vld [vmem:[%s0 + $0x28] sm:$0xff]
    %v21 = vld [vmem:[%s0 + $0x30] sm:$0xff]
    %v22 = vld [vmem:[%s0 + $0x38] sm:$0xff]
    %v23 = vld [vmem:[%s0 + $0x40] sm:$0xff]
    %v24 = vld [vmem:[%s0 + $0x48] sm:$0xff]
    %v25 = vld [vmem:[%s0 + $0x50] sm:$0xff]
    %v26 = vld [vmem:[%s0 + $0x58] sm:$0xff]
    %v27 = vld [vmem:[%s0 + $0x60] sm:$0xff]
    %v28 = vld [vmem:[%s0 + $0x68] sm:$0xff]
    %v29 = vld [vmem:[%s0 + $0x70] sm:$0xff]
    %v30 = vld [vmem:[%s0 + $0x78] sm:$0xff]
    %v31 = vld [vmem:[%s0 + $0x80] sm:$0xff]
    %v32 = vld [vmem:[%s0 + $0x88] sm:$0xff]
    %v33 = vld [vmem:[%s0 + $0x90] sm:$0xff]
    %v34 = vld [vmem:[%s0 + $0x98] sm:$0xff]
    %v35 = vld [vmem:[%s0 + $0xa0] sm:$0x3]
    %v36 = vld [vmem:[%s1 + $0x148] sm:$0x7]
    %v37 = vld [vmem:[%s2] sm:$0xff]
    %v38 = vld [vmem:[%s2 + $0x8] sm:$0xff]
    %v39 = vld [vmem:[%s2 + $0x10] sm:$0xff]
    %v40 = vld [vmem:[%s2 + $0x18] sm:$0xff]
    %v41 = vld [vmem:[%s2 + $0x20] sm:$0xff]
    %v42 = vld [vmem:[%s2 + $0x28] sm:$0xff]
    %v43 = vld [vmem:[%s2 + $0x30] sm:$0xff]
    %v44 = vld [vmem:[%s2 + $0x38] sm:$0xff]
    %v45 = vld [vmem:[%s2 + $0x40] sm:$0xff]
    %v46 = vld [vmem:[%s2 + $0x48] sm:$0xff]
    %v47 = vld [vmem:[%s2 + $0x50] sm:$0xff]
    %v48 = vld [vmem:[%s2 + $0x58] sm:$0xff]
    %v49 = vld [vmem:[%s2 + $0x60] sm:$0xff]
    %v50 = vld [vmem:[%s2 + $0x68] sm:$0xff]
    %v51 = vld [vmem:[%s2 + $0x70] sm:$0xff]
    %v52 = vld [vmem:[%s2 + $0x78] sm:$0xff]
    %v53 = vld [vmem:[%s2 + $0x80] sm:$0xff]
    %v54 = vld [vmem:[%s2 + $0x88] sm:$0xff]
    %v55 = vld [vmem:[%s2 + $0x90] sm:$0xff]
    %v56 = vld [vmem:[%s2 + $0x98] sm:$0xff]
    %v57 = vld [vmem:[%s2 + $0xa0] sm:$0xff]
    %v58 = vld [vmem:[%s2 + $0xa8] sm:$0xff]
    %v59 = vld [vmem:[%s2 + $0xb0] sm:$0xff]
    %v60 = vld [vmem:[%s2 + $0xb8] sm:$0xff]
    %v61 = vld [vmem:[%s2 + $0xc0] sm:$0xff]
    %v62 = vld [vmem:[%s2 + $0xc8] sm:$0xff]
    %v63 = vld [vmem:[%s2 + $0xd0] sm:$0xff]
    %v64 = vld [vmem:[%s2 + $0xd8] sm:$0xff]
    %v65 = vld [vmem:[%s2 + $0xe0] sm:$0xff]
    %v66 = vld [vmem:[%s2 + $0xe8] sm:$0xff]
    %v67 = vld [vmem:[%s2 + $0xf0] sm:$0xff]
    %v68 = vld [vmem:[%s2 + $0xf8] sm:$0xff]
    %v69 = vld [vmem:[%s2 + $0x100] sm:$0xff]
    %v70 = vld [vmem:[%s2 + $0x108] sm:$0xff]
    %v71 = vld [vmem:[%s2 + $0x110] sm:$0xff]
    %v72 = vld [vmem:[%s2 + $0x118] sm:$0xff]
    %v73 = vld [vmem:[%s2 + $0x120] sm:$0xff]
    %v74 = vld [vmem:[%s2 + $0x128] sm:$0xff]
    %v75 = vld [vmem:[%s2 + $0x130] sm:$0xff]
    %v76 = vld [vmem:[%s2 + $0x138] sm:$0xff]
    %v77 = vld [vmem:[%s2 + $0x140] sm:$0xff]
    %v78 = vld [vmem:[%s2 + $0x148] sm:$0xff]
    %v79 = vld [vmem:[%s2 + $0x150] sm:$0xff]
    %v80 = vld [vmem:[%s2 + $0x158] sm:$0xff]
    %v81 = vld [vmem:[%s2 + $0x160] sm:$0xff]
    %v82 = vld [vmem:[%s2 + $0x168] sm:$0xff]
    %v83 = vld [vmem:[%s2 + $0x170] sm:$0xff]
    %v84 = vld [vmem:[%s2 + $0x178] sm:$0xff]
    %v85 = vld [vmem:[%s2 + $0x180] sm:$0xff]
    %v86 = vld [vmem:[%s2 + $0x188] sm:$0xff]
    %v87 = vld [vmem:[%s2 + $0x190] sm:$0xff]
    %v88 = vld [vmem:[%s2 + $0x198] sm:$0xff]
    %v89 = vld [vmem:[%s2 + $0x1a0] sm:$0xff]
    %v90 = vld [vmem:[%s2 + $0x1a8] sm:$0xff]
    %v91 = vld [vmem:[%s2 + $0x1b0] sm:$0xff]
    %v92 = vld [vmem:[%s2 + $0x1b8] sm:$0xff]
    %v93 = vld [vmem:[%s2 + $0x1c0] sm:$0xff]
    %v94 = vld [vmem:[%s2 + $0x1c8] sm:$0xff]
    %v95 = vld [vmem:[%s2 + $0x1d0] sm:$0xff]
    %v96 = vld [vmem:[%s2 + $0x1d8] sm:$0xff]
    %v97 = vld [vmem:[%s2 + $0x1e0] sm:$0xff]
    %v98 = vld [vmem:[%s2 + $0x1e8] sm:$0xff]
    %v99 = vld [vmem:[%s2 + $0x1f0] sm:$0xff]
    %v100 = vld [vmem:[%s2 + $0x1f8] sm:$0xff]
    %v101 = vld [vmem:[%s2 + $0x200] sm:$0xff]
    %v102 = vld [vmem:[%s2 + $0x208] sm:$0xff]
    %v103 = vld [vmem:[%s2 + $0x210] sm:$0xff]
    %v104 = vld [vmem:[%s2 + $0x218] sm:$0xff]
    %v105 = vld [vmem:[%s2 + $0x220] sm:$0xff]
    %v106 = vld [vmem:[%s2 + $0x228] sm:$0xff]
    %v107 = vld [vmem:[%s2 + $0x230] sm:$0xff]
    %v108 = vld [vmem:[%s2 + $0x238] sm:$0xff]
    %v109 = vld [vmem:[%s2 + $0x240] sm:$0xff]
    %v110 = vld [vmem:[%s2 + $0x248] sm:$0xff]
    %v111 = vld [vmem:[%s2 + $0x250] sm:$0xff]
    %v112 = vld [vmem:[%s2 + $0x258] sm:$0xff]
    %v113 = vld [vmem:[%s2 + $0x260] sm:$0xff]
    %v114 = vld [vmem:[%s2 + $0x268] sm:$0xff]
    %v115 = vld [vmem:[%s2 + $0x270] sm:$0xff]
    %v116 = vld [vmem:[%s2 + $0x278] sm:$0xff]
    %v117 = vld [vmem:[%s2 + $0x280] sm:$0xff]
    %v118 = vld [vmem:[%s2 + $0x288] sm:$0xff]
    %v119 = vld [vmem:[%s2 + $0x290] sm:$0xff]
    %v120 = vld [vmem:[%s2 + $0x298] sm:$0xff]
    %v121 = vld [vmem:[%s2 + $0x2a0] sm:$0xff]
    %v122 = vld [vmem:[%s2 + $0x2a8] sm:$0xff]
    %v123 = vld [vmem:[%s2 + $0x2b0] sm:$0xff]
    %v124 = vld [vmem:[%s2 + $0x2b8] sm:$0xff]
    %v125 = vld [vmem:[%s2 + $0x2c0] sm:$0xff]
    %v126 = vld [vmem:[%s2 + $0x2c8] sm:$0xff]
    %v127 = vld [vmem:[%s2 + $0x2d0] sm:$0xff]
    %v128 = vld [vmem:[%s2 + $0x2d8] sm:$0xff]
    %v129 = vld [vmem:[%s2 + $0x2e0] sm:$0xff]
    %v130 = vld [vmem:[%s2 + $0x2e8] sm:$0xff]
    %v131 = vld [vmem:[%s2 + $0x2f0] sm:$0xff]
    %v132 = vld [vmem:[%s2 + $0x2f8] sm:$0xff]
    %v133 = vld [vmem:[%s2 + $0x300] sm:$0xff]
    %v134 = vld [vmem:[%s2 + $0x308] sm:$0xff]
    %v135 = vld [vmem:[%s2 + $0x310] sm:$0xff]
    %v136 = vld [vmem:[%s2 + $0x318] sm:$0xff]
    %v137 = vld [vmem:[%s2 + $0x320] sm:$0xff]
    %v138 = vld [vmem:[%s2 + $0x328] sm:$0xff]
    %v139 = vld [vmem:[%s2 + $0x330] sm:$0xff]
    %v140 = vld [vmem:[%s2 + $0x338] sm:$0xff]
    %v141 = vld [vmem:[%s2 + $0x340] sm:$0xff]
    %v142 = vld [vmem:[%s2 + $0x348] sm:$0xff]
    %v143 = vld [vmem:[%s2 + $0x350] sm:$0xff]
    %v144 = vld [vmem:[%s2 + $0x358] sm:$0xff]
    %v145 = vld [vmem:[%s2 + $0x360] sm:$0xff]
    %v146 = vld [vmem:[%s2 + $0x368] sm:$0xff]
    %v147 = vld [vmem:[%s2 + $0x370] sm:$0xff]
    %v148 = vld [vmem:[%s2 + $0x378] sm:$0xff]
    %v149 = vld [vmem:[%s2 + $0x380] sm:$0xff]
    %v150 = vld [vmem:[%s2 + $0x388] sm:$0xff]
    %v151 = vld [vmem:[%s2 + $0x390] sm:$0xff]
    %v152 = vld [vmem:[%s2 + $0x398] sm:$0xff]
    %v153 = vld [vmem:[%s2 + $0x3a0] sm:$0xff]
    %v154 = vlaneseq
    %v155 = vand.u32 %v154, 127
    %v156 = vadd.s32 %v155, 128
    %157 = vset.pattern.permute.xlu0 0
    %158 = vperm.xlu0 %157, %v37
    %v159 = vpop.permute.xlu0 %158
    %160 = vset.pattern.permute.xlu0 0
    %161 = vperm.xlu0 %160, %v38
    %v162 = vpop.permute.xlu0 %161
    %163 = vset.pattern.permute.xlu0 0
    %164 = vperm.xlu0 %163, %v39
    %v165 = vpop.permute.xlu0 %164
    %166 = vset.pattern.permute.xlu0 0
    %167 = vperm.xlu0 %166, %v40
    %v168 = vpop.permute.xlu0 %167
    %169 = vset.pattern.permute.xlu0 0
    %170 = vperm.xlu0 %169, %v41
    %v171 = vpop.permute.xlu0 %170
    %172 = vset.pattern.permute.xlu0 0
    %173 = vperm.xlu0 %172, %v42
    %v174 = vpop.permute.xlu0 %173
    %175 = vset.pattern.permute.xlu0 0
    %176 = vperm.xlu0 %175, %v43
    %v177 = vpop.permute.xlu0 %176
    %178 = vset.pattern.permute.xlu0 0
    %179 = vperm.xlu0 %178, %v44
    %v180 = vpop.permute.xlu0 %179
    %181 = vset.pattern.permute.xlu0 0
    %182 = vperm.xlu0 %181, %v45
    %v183 = vpop.permute.xlu0 %182
    %184 = vset.pattern.permute.xlu0 0
    %185 = vperm.xlu0 %184, %v46
    %v186 = vpop.permute.xlu0 %185
    %187 = vset.pattern.permute.xlu0 0
    %188 = vperm.xlu0 %187, %v47
    %v189 = vpop.permute.xlu0 %188
    %190 = vset.pattern.permute.xlu0 0
    %191 = vperm.xlu0 %190, %v48
    %v192 = vpop.permute.xlu0 %191
    %193 = vset.pattern.permute.xlu0 0
    %194 = vperm.xlu0 %193, %v49
    %v195 = vpop.permute.xlu0 %194
    %196 = vset.pattern.permute.xlu0 0
    %197 = vperm.xlu0 %196, %v50
    %v198 = vpop.permute.xlu0 %197
    %199 = vset.pattern.permute.xlu0 0
    %200 = vperm.xlu0 %199, %v51
    %v201 = vpop.permute.xlu0 %200
    %202 = vset.pattern.permute.xlu0 0
    %203 = vperm.xlu0 %202, %v52
    %v204 = vpop.permute.xlu0 %203
    %205 = vset.pattern.permute.xlu0 0
    %206 = vperm.xlu0 %205, %v53
    %v207 = vpop.permute.xlu0 %206
    %208 = vset.pattern.permute.xlu0 0
    %209 = vperm.xlu0 %208, %v54
    %v210 = vpop.permute.xlu0 %209
    %211 = vset.pattern.permute.xlu0 0
    %212 = vperm.xlu0 %211, %v55
    %v213 = vpop.permute.xlu0 %212
    %214 = vset.pattern.permute.xlu0 0
    %215 = vperm.xlu0 %214, %v56
    %v216 = vpop.permute.xlu0 %215
    %217 = vset.pattern.permute.xlu0 0
    %218 = vperm.xlu0 %217, %v57
    %v219 = vpop.permute.xlu0 %218
    %220 = vset.pattern.permute.xlu0 0
    %221 = vperm.xlu0 %220, %v58
    %v222 = vpop.permute.xlu0 %221
    %223 = vset.pattern.permute.xlu0 0
    %224 = vperm.xlu0 %223, %v59
    %v225 = vpop.permute.xlu0 %224
    %226 = vset.pattern.permute.xlu0 0
    %227 = vperm.xlu0 %226, %v60
    %v228 = vpop.permute.xlu0 %227
    %229 = vset.pattern.permute.xlu0 0
    %230 = vperm.xlu0 %229, %v61
    %v231 = vpop.permute.xlu0 %230
    %232 = vset.pattern.permute.xlu0 0
    %233 = vperm.xlu0 %232, %v62
    %v234 = vpop.permute.xlu0 %233
    %235 = vset.pattern.permute.xlu0 0
    %236 = vperm.xlu0 %235, %v63
    %v237 = vpop.permute.xlu0 %236
    %238 = vset.pattern.permute.xlu0 0
    %239 = vperm.xlu0 %238, %v64
    %v240 = vpop.permute.xlu0 %239
    %241 = vset.pattern.permute.xlu0 0
    %242 = vperm.xlu0 %241, %v65
    %v243 = vpop.permute.xlu0 %242
    %244 = vset.pattern.permute.xlu0 0
    %245 = vperm.xlu0 %244, %v66
    %v246 = vpop.permute.xlu0 %245
    %247 = vset.pattern.permute.xlu0 0
    %248 = vperm.xlu0 %247, %v67
    %v249 = vpop.permute.xlu0 %248
    %250 = vset.pattern.permute.xlu0 0
    %251 = vperm.xlu0 %250, %v68
    %v252 = vpop.permute.xlu0 %251
    %253 = vset.pattern.permute.xlu0 0
    %254 = vperm.xlu0 %253, %v69
    %v255 = vpop.permute.xlu0 %254
    %256 = vset.pattern.permute.xlu0 0
    %257 = vperm.xlu0 %256, %v70
    %v258 = vpop.permute.xlu0 %257
    %259 = vset.pattern.permute.xlu0 0
    %260 = vperm.xlu0 %259, %v71
    %v261 = vpop.permute.xlu0 %260
    %262 = vset.pattern.permute.xlu0 0
    %263 = vperm.xlu0 %262, %v72
    %v264 = vpop.permute.xlu0 %263
    %265 = vset.pattern.permute.xlu0 0
    %266 = vperm.xlu0 %265, %v73
    %v267 = vpop.permute.xlu0 %266
    %268 = vset.pattern.permute.xlu0 0
    %269 = vperm.xlu0 %268, %v74
    %v270 = vpop.permute.xlu0 %269
    %271 = vset.pattern.permute.xlu0 0
    %272 = vperm.xlu0 %271, %v75
    %v273 = vpop.permute.xlu0 %272
    %274 = vset.pattern.permute.xlu0 0
    %275 = vperm.xlu0 %274, %v76
    %v276 = vpop.permute.xlu0 %275
    %277 = vset.pattern.permute.xlu0 0
    %278 = vperm.xlu0 %277, %v77
    %v279 = vpop.permute.xlu0 %278
    %280 = vset.pattern.permute.xlu0 0
    %281 = vperm.xlu0 %280, %v78
    %v282 = vpop.permute.xlu0 %281
    %283 = vset.pattern.permute.xlu0 0
    %284 = vperm.xlu0 %283, %v79
    %v285 = vpop.permute.xlu0 %284
    %286 = vset.pattern.permute.xlu0 0
    %287 = vperm.xlu0 %286, %v80
    %v288 = vpop.permute.xlu0 %287
    %289 = vset.pattern.permute.xlu0 0
    %290 = vperm.xlu0 %289, %v81
    %v291 = vpop.permute.xlu0 %290
    %292 = vset.pattern.permute.xlu0 0
    %293 = vperm.xlu0 %292, %v82
    %v294 = vpop.permute.xlu0 %293
    %295 = vset.pattern.permute.xlu0 0
    %296 = vperm.xlu0 %295, %v83
    %v297 = vpop.permute.xlu0 %296
    %298 = vset.pattern.permute.xlu0 0
    %299 = vperm.xlu0 %298, %v84
    %v300 = vpop.permute.xlu0 %299
    %301 = vset.pattern.permute.xlu0 0
    %302 = vperm.xlu0 %301, %v85
    %v303 = vpop.permute.xlu0 %302
    %304 = vset.pattern.permute.xlu0 0
    %305 = vperm.xlu0 %304, %v86
    %v306 = vpop.permute.xlu0 %305
    %307 = vset.pattern.permute.xlu0 0
    %308 = vperm.xlu0 %307, %v87
    %v309 = vpop.permute.xlu0 %308
    %310 = vset.pattern.permute.xlu0 0
    %311 = vperm.xlu0 %310, %v88
    %v312 = vpop.permute.xlu0 %311
    %313 = vset.pattern.permute.xlu0 0
    %314 = vperm.xlu0 %313, %v89
    %v315 = vpop.permute.xlu0 %314
    %316 = vset.pattern.permute.xlu0 0
    %317 = vperm.xlu0 %316, %v90
    %v318 = vpop.permute.xlu0 %317
    %319 = vset.pattern.permute.xlu0 0
    %320 = vperm.xlu0 %319, %v91
    %v321 = vpop.permute.xlu0 %320
    %322 = vset.pattern.permute.xlu0 0
    %323 = vperm.xlu0 %322, %v92
    %v324 = vpop.permute.xlu0 %323
    %325 = vset.pattern.permute.xlu0 0
    %326 = vperm.xlu0 %325, %v93
    %v327 = vpop.permute.xlu0 %326
    %328 = vset.pattern.permute.xlu0 0
    %329 = vperm.xlu0 %328, %v94
    %v330 = vpop.permute.xlu0 %329
    %331 = vset.pattern.permute.xlu0 0
    %332 = vperm.xlu0 %331, %v95
    %v333 = vpop.permute.xlu0 %332
    %334 = vset.pattern.permute.xlu0 0
    %335 = vperm.xlu0 %334, %v96
    %v336 = vpop.permute.xlu0 %335
    %337 = vset.pattern.permute.xlu0 0
    %338 = vperm.xlu0 %337, %v97
    %v339 = vpop.permute.xlu0 %338
    %340 = vset.pattern.permute.xlu0 0
    %341 = vperm.xlu0 %340, %v98
    %v342 = vpop.permute.xlu0 %341
    %343 = vset.pattern.permute.xlu0 0
    %344 = vperm.xlu0 %343, %v99
    %v345 = vpop.permute.xlu0 %344
    %346 = vset.pattern.permute.xlu0 0
    %347 = vperm.xlu0 %346, %v100
    %v348 = vpop.permute.xlu0 %347
    %349 = vset.pattern.permute.xlu0 0
    %350 = vperm.xlu0 %349, %v101
    %v351 = vpop.permute.xlu0 %350
    %352 = vset.pattern.permute.xlu0 0
    %353 = vperm.xlu0 %352, %v102
    %v354 = vpop.permute.xlu0 %353
    %355 = vset.pattern.permute.xlu0 0
    %356 = vperm.xlu0 %355, %v103
    %v357 = vpop.permute.xlu0 %356
    %358 = vset.pattern.permute.xlu0 0
    %359 = vperm.xlu0 %358, %v104
    %v360 = vpop.permute.xlu0 %359
    %361 = vset.pattern.permute.xlu0 0
    %362 = vperm.xlu0 %361, %v105
    %v363 = vpop.permute.xlu0 %362
    %364 = vset.pattern.permute.xlu0 0
    %365 = vperm.xlu0 %364, %v106
    %v366 = vpop.permute.xlu0 %365
    %367 = vset.pattern.permute.xlu0 0
    %368 = vperm.xlu0 %367, %v107
    %v369 = vpop.permute.xlu0 %368
    %370 = vset.pattern.permute.xlu0 0
    %371 = vperm.xlu0 %370, %v108
    %v372 = vpop.permute.xlu0 %371
    %373 = vset.pattern.permute.xlu0 0
    %374 = vperm.xlu0 %373, %v109
    %v375 = vpop.permute.xlu0 %374
    %376 = vset.pattern.permute.xlu0 0
    %377 = vperm.xlu0 %376, %v110
    %v378 = vpop.permute.xlu0 %377
    %379 = vset.pattern.permute.xlu0 0
    %380 = vperm.xlu0 %379, %v111
    %v381 = vpop.permute.xlu0 %380
    %382 = vset.pattern.permute.xlu0 0
    %383 = vperm.xlu0 %382, %v112
    %v384 = vpop.permute.xlu0 %383
    %385 = vset.pattern.permute.xlu0 0
    %386 = vperm.xlu0 %385, %v113
    %v387 = vpop.permute.xlu0 %386
    %388 = vset.pattern.permute.xlu0 0
    %389 = vperm.xlu0 %388, %v114
    %v390 = vpop.permute.xlu0 %389
    %391 = vset.pattern.permute.xlu0 0
    %392 = vperm.xlu0 %391, %v115
    %v393 = vpop.permute.xlu0 %392
    %394 = vset.pattern.permute.xlu0 0
    %395 = vperm.xlu0 %394, %v116
    %v396 = vpop.permute.xlu0 %395
    %397 = vset.pattern.permute.xlu0 0
    %398 = vperm.xlu0 %397, %v117
    %v399 = vpop.permute.xlu0 %398
    %400 = vset.pattern.permute.xlu0 0
    %401 = vperm.xlu0 %400, %v118
    %v402 = vpop.permute.xlu0 %401
    %403 = vset.pattern.permute.xlu0 0
    %404 = vperm.xlu0 %403, %v119
    %v405 = vpop.permute.xlu0 %404
    %406 = vset.pattern.permute.xlu0 0
    %407 = vperm.xlu0 %406, %v120
    %v408 = vpop.permute.xlu0 %407
    %409 = vset.pattern.permute.xlu0 0
    %410 = vperm.xlu0 %409, %v121
    %v411 = vpop.permute.xlu0 %410
    %412 = vset.pattern.permute.xlu0 0
    %413 = vperm.xlu0 %412, %v122
    %v414 = vpop.permute.xlu0 %413
    %415 = vset.pattern.permute.xlu0 0
    %416 = vperm.xlu0 %415, %v123
    %v417 = vpop.permute.xlu0 %416
    %418 = vset.pattern.permute.xlu0 0
    %419 = vperm.xlu0 %418, %v124
    %v420 = vpop.permute.xlu0 %419
    %421 = vset.pattern.permute.xlu0 0
    %422 = vperm.xlu0 %421, %v125
    %v423 = vpop.permute.xlu0 %422
    %424 = vset.pattern.permute.xlu0 0
    %425 = vperm.xlu0 %424, %v126
    %v426 = vpop.permute.xlu0 %425
    %427 = vset.pattern.permute.xlu0 0
    %428 = vperm.xlu0 %427, %v127
    %v429 = vpop.permute.xlu0 %428
    %430 = vset.pattern.permute.xlu0 0
    %431 = vperm.xlu0 %430, %v128
    %v432 = vpop.permute.xlu0 %431
    %433 = vset.pattern.permute.xlu0 0
    %434 = vperm.xlu0 %433, %v129
    %v435 = vpop.permute.xlu0 %434
    %436 = vset.pattern.permute.xlu0 0
    %437 = vperm.xlu0 %436, %v130
    %v438 = vpop.permute.xlu0 %437
    %439 = vset.pattern.permute.xlu0 0
    %440 = vperm.xlu0 %439, %v131
    %v441 = vpop.permute.xlu0 %440
    %442 = vset.pattern.permute.xlu0 0
    %443 = vperm.xlu0 %442, %v132
    %v444 = vpop.permute.xlu0 %443
    %445 = vset.pattern.permute.xlu0 0
    %446 = vperm.xlu0 %445, %v133
    %v447 = vpop.permute.xlu0 %446
    %448 = vset.pattern.permute.xlu0 0
    %449 = vperm.xlu0 %448, %v134
    %v450 = vpop.permute.xlu0 %449
    %451 = vset.pattern.permute.xlu0 0
    %452 = vperm.xlu0 %451, %v135
    %v453 = vpop.permute.xlu0 %452
    %454 = vset.pattern.permute.xlu0 0
    %455 = vperm.xlu0 %454, %v136
    %v456 = vpop.permute.xlu0 %455
    %457 = vset.pattern.permute.xlu0 0
    %458 = vperm.xlu0 %457, %v137
    %v459 = vpop.permute.xlu0 %458
    %460 = vset.pattern.permute.xlu0 0
    %461 = vperm.xlu0 %460, %v138
    %v462 = vpop.permute.xlu0 %461
    %463 = vset.pattern.permute.xlu0 0
    %464 = vperm.xlu0 %463, %v139
    %v465 = vpop.permute.xlu0 %464
    %466 = vset.pattern.permute.xlu0 0
    %467 = vperm.xlu0 %466, %v140
    %v468 = vpop.permute.xlu0 %467
    %469 = vset.pattern.permute.xlu0 0
    %470 = vperm.xlu0 %469, %v141
    %v471 = vpop.permute.xlu0 %470
    %472 = vset.pattern.permute.xlu0 0
    %473 = vperm.xlu0 %472, %v142
    %v474 = vpop.permute.xlu0 %473
    %475 = vset.pattern.permute.xlu0 0
    %476 = vperm.xlu0 %475, %v143
    %v477 = vpop.permute.xlu0 %476
    %478 = vset.pattern.permute.xlu0 0
    %479 = vperm.xlu0 %478, %v144
    %v480 = vpop.permute.xlu0 %479
    %481 = vset.pattern.permute.xlu0 0
    %482 = vperm.xlu0 %481, %v145
    %v483 = vpop.permute.xlu0 %482
    %484 = vset.pattern.permute.xlu0 0
    %485 = vperm.xlu0 %484, %v146
    %v486 = vpop.permute.xlu0 %485
    %487 = vset.pattern.permute.xlu0 0
    %488 = vperm.xlu0 %487, %v147
    %v489 = vpop.permute.xlu0 %488
    %490 = vset.pattern.permute.xlu0 0
    %491 = vperm.xlu0 %490, %v148
    %v492 = vpop.permute.xlu0 %491
    %493 = vset.pattern.permute.xlu0 0
    %494 = vperm.xlu0 %493, %v149
    %v495 = vpop.permute.xlu0 %494
    %496 = vset.pattern.permute.xlu0 0
    %497 = vperm.xlu0 %496, %v150
    %v498 = vpop.permute.xlu0 %497
    %499 = vset.pattern.permute.xlu0 0
    %500 = vperm.xlu0 %499, %v151
    %v501 = vpop.permute.xlu0 %500
    %502 = vset.pattern.permute.xlu0 0
    %503 = vperm.xlu0 %502, %v152
    %v504 = vpop.permute.xlu0 %503
    %505 = vset.pattern.permute.xlu0 0
    %506 = vperm.xlu0 %505, %v153
    %v507 = vpop.permute.xlu0 %506
    %vm508 = vcmp.eq.s32.totalorder %v155, %v159
    %vm509 = vcmp.eq.s32.totalorder %v156, %v159
    %vm510 = vcmp.eq.s32.totalorder %v155, %v162
    %vm511 = vcmp.eq.s32.totalorder %v156, %v162
    %vm512 = vcmp.eq.s32.totalorder %v155, %v165
    %vm513 = vcmp.eq.s32.totalorder %v156, %v165
    %vm514 = vcmp.eq.s32.totalorder %v155, %v168
    %vm515 = vcmp.eq.s32.totalorder %v156, %v168
    %vm516 = vcmp.eq.s32.totalorder %v155, %v171
    %vm517 = vcmp.eq.s32.totalorder %v156, %v171
    %vm518 = vcmp.eq.s32.totalorder %v155, %v174
    %vm519 = vcmp.eq.s32.totalorder %v156, %v174
    %vm520 = vcmp.eq.s32.totalorder %v155, %v177
    %vm521 = vcmp.eq.s32.totalorder %v156, %v177
    %vm522 = vcmp.eq.s32.totalorder %v155, %v180
    %vm523 = vcmp.eq.s32.totalorder %v156, %v180
    %vm524 = vcmp.eq.s32.totalorder %v155, %v183
    %vm525 = vcmp.eq.s32.totalorder %v156, %v183
    %vm526 = vcmp.eq.s32.totalorder %v155, %v186
    %vm527 = vcmp.eq.s32.totalorder %v156, %v186
    %vm528 = vcmp.eq.s32.totalorder %v155, %v189
    %vm529 = vcmp.eq.s32.totalorder %v156, %v189
    %vm530 = vcmp.eq.s32.totalorder %v155, %v192
    %vm531 = vcmp.eq.s32.totalorder %v156, %v192
    %vm532 = vcmp.eq.s32.totalorder %v155, %v195
    %vm533 = vcmp.eq.s32.totalorder %v156, %v195
    %vm534 = vcmp.eq.s32.totalorder %v155, %v198
    %vm535 = vcmp.eq.s32.totalorder %v156, %v198
    %vm536 = vcmp.eq.s32.totalorder %v155, %v201
    %vm537 = vcmp.eq.s32.totalorder %v156, %v201
    %vm538 = vcmp.eq.s32.totalorder %v155, %v204
    %vm539 = vcmp.eq.s32.totalorder %v156, %v204
    %vm540 = vcmp.eq.s32.totalorder %v155, %v207
    %vm541 = vcmp.eq.s32.totalorder %v156, %v207
    %vm542 = vcmp.eq.s32.totalorder %v155, %v210
    %vm543 = vcmp.eq.s32.totalorder %v156, %v210
    %vm544 = vcmp.eq.s32.totalorder %v155, %v213
    %vm545 = vcmp.eq.s32.totalorder %v156, %v213
    %vm546 = vcmp.eq.s32.totalorder %v155, %v216
    %vm547 = vcmp.eq.s32.totalorder %v156, %v216
    %vm548 = vcmp.eq.s32.totalorder %v155, %v219
    %vm549 = vcmp.eq.s32.totalorder %v156, %v219
    %vm550 = vcmp.eq.s32.totalorder %v155, %v222
    %vm551 = vcmp.eq.s32.totalorder %v156, %v222
    %vm552 = vcmp.eq.s32.totalorder %v155, %v225
    %vm553 = vcmp.eq.s32.totalorder %v156, %v225
    %vm554 = vcmp.eq.s32.totalorder %v155, %v228
    %vm555 = vcmp.eq.s32.totalorder %v156, %v228
    %vm556 = vcmp.eq.s32.totalorder %v155, %v231
    %vm557 = vcmp.eq.s32.totalorder %v156, %v231
    %vm558 = vcmp.eq.s32.totalorder %v155, %v234
    %vm559 = vcmp.eq.s32.totalorder %v156, %v234
    %vm560 = vcmp.eq.s32.totalorder %v155, %v237
    %vm561 = vcmp.eq.s32.totalorder %v156, %v237
    %vm562 = vcmp.eq.s32.totalorder %v155, %v240
    %vm563 = vcmp.eq.s32.totalorder %v156, %v240
    %vm564 = vcmp.eq.s32.totalorder %v155, %v243
    %vm565 = vcmp.eq.s32.totalorder %v156, %v243
    %vm566 = vcmp.eq.s32.totalorder %v155, %v246
    %vm567 = vcmp.eq.s32.totalorder %v156, %v246
    %vm568 = vcmp.eq.s32.totalorder %v155, %v249
    %vm569 = vcmp.eq.s32.totalorder %v156, %v249
    %vm570 = vcmp.eq.s32.totalorder %v155, %v252
    %vm571 = vcmp.eq.s32.totalorder %v156, %v252
    %vm572 = vcmp.eq.s32.totalorder %v155, %v255
    %vm573 = vcmp.eq.s32.totalorder %v156, %v255
    %vm574 = vcmp.eq.s32.totalorder %v155, %v258
    %vm575 = vcmp.eq.s32.totalorder %v156, %v258
    %vm576 = vcmp.eq.s32.totalorder %v155, %v261
    %vm577 = vcmp.eq.s32.totalorder %v156, %v261
    %vm578 = vcmp.eq.s32.totalorder %v155, %v264
    %vm579 = vcmp.eq.s32.totalorder %v156, %v264
    %vm580 = vcmp.eq.s32.totalorder %v155, %v267
    %vm581 = vcmp.eq.s32.totalorder %v156, %v267
    %vm582 = vcmp.eq.s32.totalorder %v155, %v270
    %vm583 = vcmp.eq.s32.totalorder %v156, %v270
    %vm584 = vcmp.eq.s32.totalorder %v155, %v273
    %vm585 = vcmp.eq.s32.totalorder %v156, %v273
    %vm586 = vcmp.eq.s32.totalorder %v155, %v276
    %vm587 = vcmp.eq.s32.totalorder %v156, %v276
    %vm588 = vcmp.eq.s32.totalorder %v155, %v279
    %vm589 = vcmp.eq.s32.totalorder %v156, %v279
    %vm590 = vcmp.eq.s32.totalorder %v155, %v282
    %vm591 = vcmp.eq.s32.totalorder %v156, %v282
    %vm592 = vcmp.eq.s32.totalorder %v155, %v285
    %vm593 = vcmp.eq.s32.totalorder %v156, %v285
    %vm594 = vcmp.eq.s32.totalorder %v155, %v288
    %vm595 = vcmp.eq.s32.totalorder %v156, %v288
    %vm596 = vcmp.eq.s32.totalorder %v155, %v291
    %vm597 = vcmp.eq.s32.totalorder %v156, %v291
    %vm598 = vcmp.eq.s32.totalorder %v155, %v294
    %vm599 = vcmp.eq.s32.totalorder %v156, %v294
    %vm600 = vcmp.eq.s32.totalorder %v155, %v297
    %vm601 = vcmp.eq.s32.totalorder %v156, %v297
    %vm602 = vcmp.eq.s32.totalorder %v155, %v300
    %vm603 = vcmp.eq.s32.totalorder %v156, %v300
    %vm604 = vcmp.eq.s32.totalorder %v155, %v303
    %vm605 = vcmp.eq.s32.totalorder %v156, %v303
    %vm606 = vcmp.eq.s32.totalorder %v155, %v306
    %vm607 = vcmp.eq.s32.totalorder %v156, %v306
    %vm608 = vcmp.eq.s32.totalorder %v155, %v309
    %vm609 = vcmp.eq.s32.totalorder %v156, %v309
    %vm610 = vcmp.eq.s32.totalorder %v155, %v312
    %vm611 = vcmp.eq.s32.totalorder %v156, %v312
    %vm612 = vcmp.eq.s32.totalorder %v155, %v315
    %vm613 = vcmp.eq.s32.totalorder %v156, %v315
    %vm614 = vcmp.eq.s32.totalorder %v155, %v318
    %vm615 = vcmp.eq.s32.totalorder %v156, %v318
    %vm616 = vcmp.eq.s32.totalorder %v155, %v321
    %vm617 = vcmp.eq.s32.totalorder %v156, %v321
    %vm618 = vcmp.eq.s32.totalorder %v155, %v324
    %vm619 = vcmp.eq.s32.totalorder %v156, %v324
    %vm620 = vcmp.eq.s32.totalorder %v155, %v327
    %vm621 = vcmp.eq.s32.totalorder %v156, %v327
    %vm622 = vcmp.eq.s32.totalorder %v155, %v330
    %vm623 = vcmp.eq.s32.totalorder %v156, %v330
    %vm624 = vcmp.eq.s32.totalorder %v155, %v333
    %vm625 = vcmp.eq.s32.totalorder %v156, %v333
    %vm626 = vcmp.eq.s32.totalorder %v155, %v336
    %vm627 = vcmp.eq.s32.totalorder %v156, %v336
    %vm628 = vcmp.eq.s32.totalorder %v155, %v339
    %vm629 = vcmp.eq.s32.totalorder %v156, %v339
    %vm630 = vcmp.eq.s32.totalorder %v155, %v342
    %vm631 = vcmp.eq.s32.totalorder %v156, %v342
    %vm632 = vcmp.eq.s32.totalorder %v155, %v345
    %vm633 = vcmp.eq.s32.totalorder %v156, %v345
    %vm634 = vcmp.eq.s32.totalorder %v155, %v348
    %vm635 = vcmp.eq.s32.totalorder %v156, %v348
    %vm636 = vcmp.eq.s32.totalorder %v155, %v351
    %vm637 = vcmp.eq.s32.totalorder %v156, %v351
    %vm638 = vcmp.eq.s32.totalorder %v155, %v354
    %vm639 = vcmp.eq.s32.totalorder %v156, %v354
    %vm640 = vcmp.eq.s32.totalorder %v155, %v357
    %vm641 = vcmp.eq.s32.totalorder %v156, %v357
    %vm642 = vcmp.eq.s32.totalorder %v155, %v360
    %vm643 = vcmp.eq.s32.totalorder %v156, %v360
    %vm644 = vcmp.eq.s32.totalorder %v155, %v363
    %vm645 = vcmp.eq.s32.totalorder %v156, %v363
    %vm646 = vcmp.eq.s32.totalorder %v155, %v366
    %vm647 = vcmp.eq.s32.totalorder %v156, %v366
    %vm648 = vcmp.eq.s32.totalorder %v155, %v369
    %vm649 = vcmp.eq.s32.totalorder %v156, %v369
    %vm650 = vcmp.eq.s32.totalorder %v155, %v372
    %vm651 = vcmp.eq.s32.totalorder %v156, %v372
    %vm652 = vcmp.eq.s32.totalorder %v155, %v375
    %vm653 = vcmp.eq.s32.totalorder %v156, %v375
    %vm654 = vcmp.eq.s32.totalorder %v155, %v378
    %vm655 = vcmp.eq.s32.totalorder %v156, %v378
    %vm656 = vcmp.eq.s32.totalorder %v155, %v381
    %vm657 = vcmp.eq.s32.totalorder %v156, %v381
    %vm658 = vcmp.eq.s32.totalorder %v155, %v384
    %vm659 = vcmp.eq.s32.totalorder %v156, %v384
    %vm660 = vcmp.eq.s32.totalorder %v155, %v387
    %vm661 = vcmp.eq.s32.totalorder %v156, %v387
    %vm662 = vcmp.eq.s32.totalorder %v155, %v390
    %vm663 = vcmp.eq.s32.totalorder %v156, %v390
    %vm664 = vcmp.eq.s32.totalorder %v155, %v393
    %vm665 = vcmp.eq.s32.totalorder %v156, %v393
    %vm666 = vcmp.eq.s32.totalorder %v155, %v396
    %vm667 = vcmp.eq.s32.totalorder %v156, %v396
    %vm668 = vcmp.eq.s32.totalorder %v155, %v399
    %vm669 = vcmp.eq.s32.totalorder %v156, %v399
    %vm670 = vcmp.eq.s32.totalorder %v155, %v402
    %vm671 = vcmp.eq.s32.totalorder %v156, %v402
    %vm672 = vcmp.eq.s32.totalorder %v155, %v405
    %vm673 = vcmp.eq.s32.totalorder %v156, %v405
    %vm674 = vcmp.eq.s32.totalorder %v155, %v408
    %vm675 = vcmp.eq.s32.totalorder %v156, %v408
    %vm676 = vcmp.eq.s32.totalorder %v155, %v411
    %vm677 = vcmp.eq.s32.totalorder %v156, %v411
    %vm678 = vcmp.eq.s32.totalorder %v155, %v414
    %vm679 = vcmp.eq.s32.totalorder %v156, %v414
    %vm680 = vcmp.eq.s32.totalorder %v155, %v417
    %vm681 = vcmp.eq.s32.totalorder %v156, %v417
    %vm682 = vcmp.eq.s32.totalorder %v155, %v420
    %vm683 = vcmp.eq.s32.totalorder %v156, %v420
    %vm684 = vcmp.eq.s32.totalorder %v155, %v423
    %vm685 = vcmp.eq.s32.totalorder %v156, %v423
    %vm686 = vcmp.eq.s32.totalorder %v155, %v426
    %vm687 = vcmp.eq.s32.totalorder %v156, %v426
    %vm688 = vcmp.eq.s32.totalorder %v155, %v429
    %vm689 = vcmp.eq.s32.totalorder %v156, %v429
    %vm690 = vcmp.eq.s32.totalorder %v155, %v432
    %vm691 = vcmp.eq.s32.totalorder %v156, %v432
    %vm692 = vcmp.eq.s32.totalorder %v155, %v435
    %vm693 = vcmp.eq.s32.totalorder %v156, %v435
    %vm694 = vcmp.eq.s32.totalorder %v155, %v438
    %vm695 = vcmp.eq.s32.totalorder %v156, %v438
    %vm696 = vcmp.eq.s32.totalorder %v155, %v441
    %vm697 = vcmp.eq.s32.totalorder %v156, %v441
    %vm698 = vcmp.eq.s32.totalorder %v155, %v444
    %vm699 = vcmp.eq.s32.totalorder %v156, %v444
    %vm700 = vcmp.eq.s32.totalorder %v155, %v447
    %vm701 = vcmp.eq.s32.totalorder %v156, %v447
    %vm702 = vcmp.eq.s32.totalorder %v155, %v450
    %vm703 = vcmp.eq.s32.totalorder %v156, %v450
    %vm704 = vcmp.eq.s32.totalorder %v155, %v453
    %vm705 = vcmp.eq.s32.totalorder %v156, %v453
    %vm706 = vcmp.eq.s32.totalorder %v155, %v456
    %vm707 = vcmp.eq.s32.totalorder %v156, %v456
    %vm708 = vcmp.eq.s32.totalorder %v155, %v459
    %vm709 = vcmp.eq.s32.totalorder %v156, %v459
    %vm710 = vcmp.eq.s32.totalorder %v155, %v462
    %vm711 = vcmp.eq.s32.totalorder %v156, %v462
    %vm712 = vcmp.eq.s32.totalorder %v155, %v465
    %vm713 = vcmp.eq.s32.totalorder %v156, %v465
    %vm714 = vcmp.eq.s32.totalorder %v155, %v468
    %vm715 = vcmp.eq.s32.totalorder %v156, %v468
    %vm716 = vcmp.eq.s32.totalorder %v155, %v471
    %vm717 = vcmp.eq.s32.totalorder %v156, %v471
    %vm718 = vcmp.eq.s32.totalorder %v155, %v474
    %vm719 = vcmp.eq.s32.totalorder %v156, %v474
    %vm720 = vcmp.eq.s32.totalorder %v155, %v477
    %vm721 = vcmp.eq.s32.totalorder %v156, %v477
    %vm722 = vcmp.eq.s32.totalorder %v155, %v480
    %vm723 = vcmp.eq.s32.totalorder %v156, %v480
    %vm724 = vcmp.eq.s32.totalorder %v155, %v483
    %vm725 = vcmp.eq.s32.totalorder %v156, %v483
    %vm726 = vcmp.eq.s32.totalorder %v155, %v486
    %vm727 = vcmp.eq.s32.totalorder %v156, %v486
    %vm728 = vcmp.eq.s32.totalorder %v155, %v489
    %vm729 = vcmp.eq.s32.totalorder %v156, %v489
    %vm730 = vcmp.eq.s32.totalorder %v155, %v492
    %vm731 = vcmp.eq.s32.totalorder %v156, %v492
    %vm732 = vcmp.eq.s32.totalorder %v155, %v495
    %vm733 = vcmp.eq.s32.totalorder %v156, %v495
    %vm734 = vcmp.eq.s32.totalorder %v155, %v498
    %vm735 = vcmp.eq.s32.totalorder %v156, %v498
    %vm736 = vcmp.eq.s32.totalorder %v155, %v501
    %vm737 = vcmp.eq.s32.totalorder %v156, %v501
    %vm738 = vcmp.eq.s32.totalorder %v155, %v504
    %vm739 = vcmp.eq.s32.totalorder %v156, %v504
    %vm740 = vcmp.eq.s32.totalorder %v155, %v507
    %vm741 = vcmp.eq.s32.totalorder %v156, %v507
    %v742 = vsel %vm508, 1.0, 0.0
    %v743 = vsel %vm509, 1.0, 0.0
    %v744 = vsel %vm510, 1.0, 0.0
    %v745 = vsel %vm511, 1.0, 0.0
    %v746 = vsel %vm512, 1.0, 0.0
    %v747 = vsel %vm513, 1.0, 0.0
    %v748 = vsel %vm514, 1.0, 0.0
    %v749 = vsel %vm515, 1.0, 0.0
    %v750 = vsel %vm516, 1.0, 0.0
    %v751 = vsel %vm517, 1.0, 0.0
    %v752 = vsel %vm518, 1.0, 0.0
    %v753 = vsel %vm519, 1.0, 0.0
    %v754 = vsel %vm520, 1.0, 0.0
    %v755 = vsel %vm521, 1.0, 0.0
    %v756 = vsel %vm522, 1.0, 0.0
    %v757 = vsel %vm523, 1.0, 0.0
    %v758 = vsel %vm524, 1.0, 0.0
    %v759 = vsel %vm525, 1.0, 0.0
    %v760 = vsel %vm526, 1.0, 0.0
    %v761 = vsel %vm527, 1.0, 0.0
    %v762 = vsel %vm528, 1.0, 0.0
    %v763 = vsel %vm529, 1.0, 0.0
    %v764 = vsel %vm530, 1.0, 0.0
    %v765 = vsel %vm531, 1.0, 0.0
    %v766 = vsel %vm532, 1.0, 0.0
    %v767 = vsel %vm533, 1.0, 0.0
    %v768 = vsel %vm534, 1.0, 0.0
    %v769 = vsel %vm535, 1.0, 0.0
    %v770 = vsel %vm536, 1.0, 0.0
    %v771 = vsel %vm537, 1.0, 0.0
    %v772 = vsel %vm538, 1.0, 0.0
    %v773 = vsel %vm539, 1.0, 0.0
    %v774 = vsel %vm540, 1.0, 0.0
    %v775 = vsel %vm541, 1.0, 0.0
    %v776 = vsel %vm542, 1.0, 0.0
    %v777 = vsel %vm543, 1.0, 0.0
    %v778 = vsel %vm544, 1.0, 0.0
    %v779 = vsel %vm545, 1.0, 0.0
    %v780 = vsel %vm546, 1.0, 0.0
    %v781 = vsel %vm547, 1.0, 0.0
    %v782 = vsel %vm548, 1.0, 0.0
    %v783 = vsel %vm549, 1.0, 0.0
    %v784 = vsel %vm550, 1.0, 0.0
    %v785 = vsel %vm551, 1.0, 0.0
    %v786 = vsel %vm552, 1.0, 0.0
    %v787 = vsel %vm553, 1.0, 0.0
    %v788 = vsel %vm554, 1.0, 0.0
    %v789 = vsel %vm555, 1.0, 0.0
    %v790 = vsel %vm556, 1.0, 0.0
    %v791 = vsel %vm557, 1.0, 0.0
    %v792 = vsel %vm558, 1.0, 0.0
    %v793 = vsel %vm559, 1.0, 0.0
    %v794 = vsel %vm560, 1.0, 0.0
    %v795 = vsel %vm561, 1.0, 0.0
    %v796 = vsel %vm562, 1.0, 0.0
    %v797 = vsel %vm563, 1.0, 0.0
    %v798 = vsel %vm564, 1.0, 0.0
    %v799 = vsel %vm565, 1.0, 0.0
    %v800 = vsel %vm566, 1.0, 0.0
    %v801 = vsel %vm567, 1.0, 0.0
    %v802 = vsel %vm568, 1.0, 0.0
    %v803 = vsel %vm569, 1.0, 0.0
    %v804 = vsel %vm570, 1.0, 0.0
    %v805 = vsel %vm571, 1.0, 0.0
    %v806 = vsel %vm572, 1.0, 0.0
    %v807 = vsel %vm573, 1.0, 0.0
    %v808 = vsel %vm574, 1.0, 0.0
    %v809 = vsel %vm575, 1.0, 0.0
    %v810 = vsel %vm576, 1.0, 0.0
    %v811 = vsel %vm577, 1.0, 0.0
    %v812 = vsel %vm578, 1.0, 0.0
    %v813 = vsel %vm579, 1.0, 0.0
    %v814 = vsel %vm580, 1.0, 0.0
    %v815 = vsel %vm581, 1.0, 0.0
    %v816 = vsel %vm582, 1.0, 0.0
    %v817 = vsel %vm583, 1.0, 0.0
    %v818 = vsel %vm584, 1.0, 0.0
    %v819 = vsel %vm585, 1.0, 0.0
    %v820 = vsel %vm586, 1.0, 0.0
    %v821 = vsel %vm587, 1.0, 0.0
    %v822 = vsel %vm588, 1.0, 0.0
    %v823 = vsel %vm589, 1.0, 0.0
    %v824 = vsel %vm590, 1.0, 0.0
    %v825 = vsel %vm591, 1.0, 0.0
    %v826 = vsel %vm592, 1.0, 0.0
    %v827 = vsel %vm593, 1.0, 0.0
    %v828 = vsel %vm594, 1.0, 0.0
    %v829 = vsel %vm595, 1.0, 0.0
    %v830 = vsel %vm596, 1.0, 0.0
    %v831 = vsel %vm597, 1.0, 0.0
    %v832 = vsel %vm598, 1.0, 0.0
    %v833 = vsel %vm599, 1.0, 0.0
    %v834 = vsel %vm600, 1.0, 0.0
    %v835 = vsel %vm601, 1.0, 0.0
    %v836 = vsel %vm602, 1.0, 0.0
    %v837 = vsel %vm603, 1.0, 0.0
    %v838 = vsel %vm604, 1.0, 0.0
    %v839 = vsel %vm605, 1.0, 0.0
    %v840 = vsel %vm606, 1.0, 0.0
    %v841 = vsel %vm607, 1.0, 0.0
    %v842 = vsel %vm608, 1.0, 0.0
    %v843 = vsel %vm609, 1.0, 0.0
    %v844 = vsel %vm610, 1.0, 0.0
    %v845 = vsel %vm611, 1.0, 0.0
    %v846 = vsel %vm612, 1.0, 0.0
    %v847 = vsel %vm613, 1.0, 0.0
    %v848 = vsel %vm614, 1.0, 0.0
    %v849 = vsel %vm615, 1.0, 0.0
    %v850 = vsel %vm616, 1.0, 0.0
    %v851 = vsel %vm617, 1.0, 0.0
    %v852 = vsel %vm618, 1.0, 0.0
    %v853 = vsel %vm619, 1.0, 0.0
    %v854 = vsel %vm620, 1.0, 0.0
    %v855 = vsel %vm621, 1.0, 0.0
    %v856 = vsel %vm622, 1.0, 0.0
    %v857 = vsel %vm623, 1.0, 0.0
    %v858 = vsel %vm624, 1.0, 0.0
    %v859 = vsel %vm625, 1.0, 0.0
    %v860 = vsel %vm626, 1.0, 0.0
    %v861 = vsel %vm627, 1.0, 0.0
    %v862 = vsel %vm628, 1.0, 0.0
    %v863 = vsel %vm629, 1.0, 0.0
    %v864 = vsel %vm630, 1.0, 0.0
    %v865 = vsel %vm631, 1.0, 0.0
    %v866 = vsel %vm632, 1.0, 0.0
    %v867 = vsel %vm633, 1.0, 0.0
    %v868 = vsel %vm634, 1.0, 0.0
    %v869 = vsel %vm635, 1.0, 0.0
    %v870 = vsel %vm636, 1.0, 0.0
    %v871 = vsel %vm637, 1.0, 0.0
    %v872 = vsel %vm638, 1.0, 0.0
    %v873 = vsel %vm639, 1.0, 0.0
    %v874 = vsel %vm640, 1.0, 0.0
    %v875 = vsel %vm641, 1.0, 0.0
    %v876 = vsel %vm642, 1.0, 0.0
    %v877 = vsel %vm643, 1.0, 0.0
    %v878 = vsel %vm644, 1.0, 0.0
    %v879 = vsel %vm645, 1.0, 0.0
    %v880 = vsel %vm646, 1.0, 0.0
    %v881 = vsel %vm647, 1.0, 0.0
    %v882 = vsel %vm648, 1.0, 0.0
    %v883 = vsel %vm649, 1.0, 0.0
    %v884 = vsel %vm650, 1.0, 0.0
    %v885 = vsel %vm651, 1.0, 0.0
    %v886 = vsel %vm652, 1.0, 0.0
    %v887 = vsel %vm653, 1.0, 0.0
    %v888 = vsel %vm654, 1.0, 0.0
    %v889 = vsel %vm655, 1.0, 0.0
    %v890 = vsel %vm656, 1.0, 0.0
    %v891 = vsel %vm657, 1.0, 0.0
    %v892 = vsel %vm658, 1.0, 0.0
    %v893 = vsel %vm659, 1.0, 0.0
    %v894 = vsel %vm660, 1.0, 0.0
    %v895 = vsel %vm661, 1.0, 0.0
    %v896 = vsel %vm662, 1.0, 0.0
    %v897 = vsel %vm663, 1.0, 0.0
    %v898 = vsel %vm664, 1.0, 0.0
    %v899 = vsel %vm665, 1.0, 0.0
    %v900 = vsel %vm666, 1.0, 0.0
    %v901 = vsel %vm667, 1.0, 0.0
    %v902 = vsel %vm668, 1.0, 0.0
    %v903 = vsel %vm669, 1.0, 0.0
    %v904 = vsel %vm670, 1.0, 0.0
    %v905 = vsel %vm671, 1.0, 0.0
    %v906 = vsel %vm672, 1.0, 0.0
    %v907 = vsel %vm673, 1.0, 0.0
    %v908 = vsel %vm674, 1.0, 0.0
    %v909 = vsel %vm675, 1.0, 0.0
    %v910 = vsel %vm676, 1.0, 0.0
    %v911 = vsel %vm677, 1.0, 0.0
    %v912 = vsel %vm678, 1.0, 0.0
    %v913 = vsel %vm679, 1.0, 0.0
    %v914 = vsel %vm680, 1.0, 0.0
    %v915 = vsel %vm681, 1.0, 0.0
    %v916 = vsel %vm682, 1.0, 0.0
    %v917 = vsel %vm683, 1.0, 0.0
    %v918 = vsel %vm684, 1.0, 0.0
    %v919 = vsel %vm685, 1.0, 0.0
    %v920 = vsel %vm686, 1.0, 0.0
    %v921 = vsel %vm687, 1.0, 0.0
    %v922 = vsel %vm688, 1.0, 0.0
    %v923 = vsel %vm689, 1.0, 0.0
    %v924 = vsel %vm690, 1.0, 0.0
    %v925 = vsel %vm691, 1.0, 0.0
    %v926 = vsel %vm692, 1.0, 0.0
    %v927 = vsel %vm693, 1.0, 0.0
    %v928 = vsel %vm694, 1.0, 0.0
    %v929 = vsel %vm695, 1.0, 0.0
    %v930 = vsel %vm696, 1.0, 0.0
    %v931 = vsel %vm697, 1.0, 0.0
    %v932 = vsel %vm698, 1.0, 0.0
    %v933 = vsel %vm699, 1.0, 0.0
    %v934 = vsel %vm700, 1.0, 0.0
    %v935 = vsel %vm701, 1.0, 0.0
    %v936 = vsel %vm702, 1.0, 0.0
    %v937 = vsel %vm703, 1.0, 0.0
    %v938 = vsel %vm704, 1.0, 0.0
    %v939 = vsel %vm705, 1.0, 0.0
    %v940 = vsel %vm706, 1.0, 0.0
    %v941 = vsel %vm707, 1.0, 0.0
    %v942 = vsel %vm708, 1.0, 0.0
    %v943 = vsel %vm709, 1.0, 0.0
    %v944 = vsel %vm710, 1.0, 0.0
    %v945 = vsel %vm711, 1.0, 0.0
    %v946 = vsel %vm712, 1.0, 0.0
    %v947 = vsel %vm713, 1.0, 0.0
    %v948 = vsel %vm714, 1.0, 0.0
    %v949 = vsel %vm715, 1.0, 0.0
    %v950 = vsel %vm716, 1.0, 0.0
    %v951 = vsel %vm717, 1.0, 0.0
    %v952 = vsel %vm718, 1.0, 0.0
    %v953 = vsel %vm719, 1.0, 0.0
    %v954 = vsel %vm720, 1.0, 0.0
    %v955 = vsel %vm721, 1.0, 0.0
    %v956 = vsel %vm722, 1.0, 0.0
    %v957 = vsel %vm723, 1.0, 0.0
    %v958 = vsel %vm724, 1.0, 0.0
    %v959 = vsel %vm725, 1.0, 0.0
    %v960 = vsel %vm726, 1.0, 0.0
    %v961 = vsel %vm727, 1.0, 0.0
    %v962 = vsel %vm728, 1.0, 0.0
    %v963 = vsel %vm729, 1.0, 0.0
    %v964 = vsel %vm730, 1.0, 0.0
    %v965 = vsel %vm731, 1.0, 0.0
    %v966 = vsel %vm732, 1.0, 0.0
    %v967 = vsel %vm733, 1.0, 0.0
    %v968 = vsel %vm734, 1.0, 0.0
    %v969 = vsel %vm735, 1.0, 0.0
    %v970 = vsel %vm736, 1.0, 0.0
    %v971 = vsel %vm737, 1.0, 0.0
    %v972 = vsel %vm738, 1.0, 0.0
    %v973 = vsel %vm739, 1.0, 0.0
    %v974 = vsel %vm740, 1.0, 0.0
    %v975 = vsel %vm741, 1.0, 0.0
    %v976 = vld [vmem:[%s1] sm:$0xff]
    %v977 = vld [vmem:[%s1 + $0x8] sm:$0xff]
    %v978 = vld [vmem:[%s1 + $0x10] sm:$0xff]
    %v979 = vld [vmem:[%s1 + $0x18] sm:$0xff]
    %v980 = vld [vmem:[%s1 + $0x20] sm:$0xff]
    %v981 = vld [vmem:[%s1 + $0x28] sm:$0xff]
    %v982 = vld [vmem:[%s1 + $0x30] sm:$0xff]
    %v983 = vld [vmem:[%s1 + $0x38] sm:$0xff]
    %v984 = vld [vmem:[%s1 + $0x40] sm:$0xff]
    %v985 = vld [vmem:[%s1 + $0x48] sm:$0xff]
    %v986 = vld [vmem:[%s1 + $0x50] sm:$0xff]
    %v987 = vld [vmem:[%s1 + $0x58] sm:$0xff]
    %v988 = vld [vmem:[%s1 + $0x60] sm:$0xff]
    %v989 = vld [vmem:[%s1 + $0x68] sm:$0xf]
    %vm990 = vcmask 277504
    %v992 = vsel %vm990, %v743, 0
    %v995 = vsel %vm990, %v745, 0
    %v998 = vsel %vm990, %v747, 0
    %v1001 = vsel %vm990, %v749, 0
    %v1004 = vsel %vm990, %v751, 0
    %v1007 = vsel %vm990, %v753, 0
    %v1010 = vsel %vm990, %v755, 0
    %v1013 = vsel %vm990, %v757, 0
    %v1016 = vsel %vm990, %v759, 0
    %v1019 = vsel %vm990, %v761, 0
    %v1022 = vsel %vm990, %v763, 0
    %v1025 = vsel %vm990, %v765, 0
    %v1028 = vsel %vm990, %v767, 0
    %v1031 = vsel %vm990, %v769, 0
    %v1034 = vsel %vm990, %v771, 0
    %v1037 = vsel %vm990, %v773, 0
    %v1040 = vsel %vm990, %v775, 0
    %v1043 = vsel %vm990, %v777, 0
    %v1046 = vsel %vm990, %v779, 0
    %v1049 = vsel %vm990, %v781, 0
    %v1052 = vsel %vm990, %v783, 0
    %v1055 = vsel %vm990, %v785, 0
    %v1058 = vsel %vm990, %v787, 0
    %v1061 = vsel %vm990, %v789, 0
    %v1064 = vsel %vm990, %v791, 0
    %v1067 = vsel %vm990, %v793, 0
    %v1070 = vsel %vm990, %v795, 0
    %v1073 = vsel %vm990, %v797, 0
    %v1076 = vsel %vm990, %v799, 0
    %v1079 = vsel %vm990, %v801, 0
    %v1082 = vsel %vm990, %v803, 0
    %v1085 = vsel %vm990, %v805, 0
    %v1088 = vsel %vm990, %v807, 0
    %v1091 = vsel %vm990, %v809, 0
    %v1094 = vsel %vm990, %v811, 0
    %v1097 = vsel %vm990, %v813, 0
    %v1100 = vsel %vm990, %v815, 0
    %v1103 = vsel %vm990, %v817, 0
    %v1106 = vsel %vm990, %v819, 0
    %v1109 = vsel %vm990, %v821, 0
    %v1112 = vsel %vm990, %v823, 0
    %v1115 = vsel %vm990, %v825, 0
    %v1118 = vsel %vm990, %v827, 0
    %v1121 = vsel %vm990, %v829, 0
    %v1124 = vsel %vm990, %v831, 0
    %v1127 = vsel %vm990, %v833, 0
    %v1130 = vsel %vm990, %v835, 0
    %v1133 = vsel %vm990, %v837, 0
    %v1136 = vsel %vm990, %v839, 0
    %v1139 = vsel %vm990, %v841, 0
    %v1142 = vsel %vm990, %v843, 0
    %v1145 = vsel %vm990, %v845, 0
    %v1148 = vsel %vm990, %v847, 0
    %v1151 = vsel %vm990, %v849, 0
    %v1154 = vsel %vm990, %v851, 0
    %v1157 = vsel %vm990, %v853, 0
    %v1160 = vsel %vm990, %v855, 0
    %v1163 = vsel %vm990, %v857, 0
    %v1166 = vsel %vm990, %v859, 0
    %v1169 = vsel %vm990, %v861, 0
    %v1172 = vsel %vm990, %v863, 0
    %v1175 = vsel %vm990, %v865, 0
    %v1178 = vsel %vm990, %v867, 0
    %v1181 = vsel %vm990, %v869, 0
    %v1184 = vsel %vm990, %v871, 0
    %v1187 = vsel %vm990, %v873, 0
    %v1190 = vsel %vm990, %v875, 0
    %v1193 = vsel %vm990, %v877, 0
    %v1196 = vsel %vm990, %v879, 0
    %v1199 = vsel %vm990, %v881, 0
    %v1202 = vsel %vm990, %v883, 0
    %v1205 = vsel %vm990, %v885, 0
    %v1208 = vsel %vm990, %v887, 0
    %v1211 = vsel %vm990, %v889, 0
    %v1214 = vsel %vm990, %v891, 0
    %v1217 = vsel %vm990, %v893, 0
    %v1220 = vsel %vm990, %v895, 0
    %v1223 = vsel %vm990, %v897, 0
    %v1226 = vsel %vm990, %v899, 0
    %v1229 = vsel %vm990, %v901, 0
    %v1232 = vsel %vm990, %v903, 0
    %v1235 = vsel %vm990, %v905, 0
    %v1238 = vsel %vm990, %v907, 0
    %v1241 = vsel %vm990, %v909, 0
    %v1244 = vsel %vm990, %v911, 0
    %v1247 = vsel %vm990, %v913, 0
    %v1250 = vsel %vm990, %v915, 0
    %v1253 = vsel %vm990, %v917, 0
    %v1256 = vsel %vm990, %v919, 0
    %v1259 = vsel %vm990, %v921, 0
    %v1262 = vsel %vm990, %v923, 0
    %v1265 = vsel %vm990, %v925, 0
    %v1268 = vsel %vm990, %v927, 0
    %v1271 = vsel %vm990, %v929, 0
    %v1274 = vsel %vm990, %v931, 0
    %v1277 = vsel %vm990, %v933, 0
    %v1280 = vsel %vm990, %v935, 0
    %v1283 = vsel %vm990, %v937, 0
    %v1286 = vsel %vm990, %v939, 0
    %v1289 = vsel %vm990, %v941, 0
    %v1292 = vsel %vm990, %v943, 0
    %v1295 = vsel %vm990, %v945, 0
    %v1298 = vsel %vm990, %v947, 0
    %v1301 = vsel %vm990, %v949, 0
    %v1304 = vsel %vm990, %v951, 0
    %v1307 = vsel %vm990, %v953, 0
    %v1310 = vsel %vm990, %v955, 0
    %v1313 = vsel %vm990, %v957, 0
    %v1316 = vsel %vm990, %v959, 0
    %v1319 = vsel %vm990, %v961, 0
    %v1322 = vsel %vm990, %v963, 0
    %v1325 = vsel %vm990, %v965, 0
    %v1328 = vsel %vm990, %v967, 0
    %v1331 = vsel %vm990, %v969, 0
    %v1334 = vsel %vm990, %v971, 0
    %v1337 = vsel %vm990, %v973, 0
    %v1340 = vsel %vm990, %v975, 0
    %vm1342 = vcmask 1041408
    %v1344 = vsel %vm1342, %v35, 0
    %1346 = vmatprep.subr.mxu0 0.0
    %1347 = vmatpush1.msra.mxu0 %v15
    %1348 = vmatprep.subr.mxu0 0.0
    %1349 = vmatpush1.msra.mxu0 %v16
    %1350 = vmatprep.subr.mxu0 0.0
    %1351 = vmatpush1.msra.mxu0 %v17
    %1352 = vmatprep.subr.mxu0 0.0
    %1353 = vmatpush1.msra.mxu0 %v18
    %1354 = vmatprep.subr.mxu0 0.0
    %1355 = vmatpush1.msra.mxu0 %v19
    %1356 = vmatprep.subr.mxu0 0.0
    %1357 = vmatpush1.msra.mxu0 %v20
    %1358 = vmatprep.subr.mxu0 0.0
    %1359 = vmatpush1.msra.mxu0 %v21
    %1360 = vmatprep.subr.mxu0 0.0
    %1361 = vmatpush1.msra.mxu0 %v22
    %1362 = vmatprep.subr.mxu0 0.0
    %1363 = vmatpush1.msra.mxu0 %v23
    %1364 = vmatprep.subr.mxu0 0.0
    %1365 = vmatpush1.msra.mxu0 %v24
    %1366 = vmatprep.subr.mxu0 0.0
    %1367 = vmatpush1.msra.mxu0 %v25
    %1368 = vmatprep.subr.mxu0 0.0
    %1369 = vmatpush1.msra.mxu0 %v26
    %1370 = vmatprep.subr.mxu0 0.0
    %1371 = vmatpush1.msra.mxu0 %v27
    %1372 = vmatprep.subr.mxu0 0.0
    %1373 = vmatpush1.msra.mxu0 %v28
    %1374 = vmatprep.subr.mxu0 0.0
    %1375 = vmatpush1.msra.mxu0 %v29
    %1376 = vmatprep.subr.mxu0 0.0
    %1377 = vmatpush1.msra.mxu0 %v30
    %1378 = vmatprep.subr.mxu0 0.0
    %1379 = vmatpush1.msra.mxu0 %v31
    %1380 = vmatprep.subr.mxu0 0.0
    %1381 = vmatpush1.msra.mxu0 %v32
    %1382 = vmatprep.subr.mxu0 0.0
    %1383 = vmatpush1.msra.mxu0 %v33
    %1384 = vmatprep.subr.mxu0 0.0
    %1385 = vmatpush1.msra.mxu0 %v34
    %1386 = vmatprep.subr.mxu0 0.0
    %1387 = vmatpush1.msra.mxu0 %v1344
    %1388 = vmatprep.subr.mxu0 0.0
    %1389 = vmatpush1.msra.mxu0 0.0
    %1390 = vmatprep.subr.mxu0 0.0
    %1391 = vmatpush1.msra.mxu0 0.0
    %1392 = vmatprep.subr.mxu0 0.0
    %1393 = vmatpush1.msra.mxu0 0.0
    %1394 = vmatprep.subr.mxu0 0.0
    %1395 = vmatpush1.msra.mxu0 0.0
    %1396 = vmatprep.subr.mxu0 0.0
    %1397 = vmatpush1.msra.mxu0 0.0
    %1398 = vmatprep.subr.mxu0 0.0
    %1399 = vmatpush1.msra.mxu0 0.0
    %1400 = vmatprep.subr.mxu0 0.0
    %1401 = vmatpush1.msra.mxu0 0.0
    %1402 = vmatprep.subr.mxu0 0.0
    %1403 = vmatpush1.msra.mxu0 0.0
    %1404 = vmatprep.subr.mxu0 0.0
    %1405 = vmatpush1.msra.mxu0 0.0
    %1406 = vmatprep.subr.mxu0 0.0
    %1407 = vmatpush1.msra.mxu0 0.0
    %1408 = vmatprep.subr.mxu0 0.0
    %1409 = vmatpush1.msra.mxu0 0.0
    %1410 = vmatprep.mubr.f32.mxu0 %v992
    %1411 = vmatmul.mubr.f32.gmra.mrb[0].mxu0 %v742
    %v1412 = vpop.f32.mrb[0].mxu0
    %v1413 = vadd.f32 0.0, %v1412
    %v1414 = vpop.f32.mrb[0].mxu0
    %1415 = vmatprep.mubr.f32.mxu0 %v995
    %1416 = vmatmul.mubr.f32.gmra.mrb[0].mxu0 %v744
    %v1417 = vpop.f32.mrb[0].mxu0
    %v1418 = vadd.f32 0.0, %v1417
    %v1419 = vpop.f32.mrb[0].mxu0
    %1420 = vmatprep.mubr.f32.mxu0 %v998
    %1421 = vmatmul.mubr.f32.gmra.mrb[0].mxu0 %v746
    %v1422 = vpop.f32.mrb[0].mxu0
    %v1423 = vadd.f32 0.0, %v1422
    %v1424 = vpop.f32.mrb[0].mxu0
    %1425 = vmatprep.mubr.f32.mxu0 %v1001
    %1426 = vmatmul.mubr.f32.gmra.mrb[0].mxu0 %v748
    %v1427 = vpop.f32.mrb[0].mxu0
    %v1428 = vadd.f32 0.0, %v1427
    %v1429 = vpop.f32.mrb[0].mxu0
    %1430 = vmatprep.mubr.f32.mxu0 %v1004
    %1431 = vmatmul.mubr.f32.gmra.mrb[0].mxu0 %v750
    %v1432 = vpop.f32.mrb[0].mxu0
    %v1433 = vadd.f32 0.0, %v1432
    %v1434 = vpop.f32.mrb[0].mxu0
    %1435 = vmatprep.mubr.f32.mxu0 %v1007
    %1436 = vmatmul.mubr.f32.gmra.mrb[0].mxu0 %v752
    %v1437 = vpop.f32.mrb[0].mxu0
    %v1438 = vadd.f32 0.0, %v1437
    %v1439 = vpop.f32.mrb[0].mxu0
    %1440 = vmatprep.mubr.f32.mxu0 %v1010
    %1441 = vmatmul.mubr.f32.gmra.mrb[0].mxu0 %v754
    %v1442 = vpop.f32.mrb[0].mxu0
    %v1443 = vadd.f32 0.0, %v1442
    %v1444 = vpop.f32.mrb[0].mxu0
    %1445 = vmatprep.mubr.f32.mxu0 %v1013
    %1446 = vmatmul.mubr.f32.gmra.mrb[0].mxu0 %v756
    %v1447 = vpop.f32.mrb[0].mxu0
    %v1448 = vadd.f32 0.0, %v1447
    %v1449 = vpop.f32.mrb[0].mxu0
    %1450 = vmatprep.mubr.f32.mxu0 %v1016
    %1451 = vmatmul.mubr.f32.gmra.mrb[0].mxu0 %v758
    %v1452 = vpop.f32.mrb[0].mxu0
    %v1453 = vadd.f32 0.0, %v1452
    %v1454 = vpop.f32.mrb[0].mxu0
    %1455 = vmatprep.mubr.f32.mxu0 %v1019
    %1456 = vmatmul.mubr.f32.gmra.mrb[0].mxu0 %v760
    %v1457 = vpop.f32.mrb[0].mxu0
    %v1458 = vadd.f32 0.0, %v1457
    %v1459 = vpop.f32.mrb[0].mxu0
    %1460 = vmatprep.mubr.f32.mxu0 %v1022
    %1461 = vmatmul.mubr.f32.gmra.mrb[0].mxu0 %v762
    %v1462 = vpop.f32.mrb[0].mxu0
    %v1463 = vadd.f32 0.0, %v1462
    %v1464 = vpop.f32.mrb[0].mxu0
    %1465 = vmatprep.mubr.f32.mxu0 %v1025
    %1466 = vmatmul.mubr.f32.gmra.mrb[0].mxu0 %v764
    %v1467 = vpop.f32.mrb[0].mxu0
    %v1468 = vadd.f32 0.0, %v1467
    %v1469 = vpop.f32.mrb[0].mxu0
    %1470 = vmatprep.mubr.f32.mxu0 %v1028
    %1471 = vmatmul.mubr.f32.gmra.mrb[0].mxu0 %v766
    %v1472 = vpop.f32.mrb[0].mxu0
    %v1473 = vadd.f32 0.0, %v1472
    %v1474 = vpop.f32.mrb[0].mxu0
    %1475 = vmatprep.mubr.f32.mxu0 %v1031
    %1476 = vmatmul.mubr.f32.gmra.mrb[0].mxu0 %v768
    %v1477 = vpop.f32.mrb[0].mxu0
    %v1478 = vadd.f32 0.0, %v1477
    %v1479 = vpop.f32.mrb[0].mxu0
    %1480 = vmatprep.mubr.f32.mxu0 %v1034
    %1481 = vmatmul.mubr.f32.gmra.mrb[0].mxu0 %v770
    %v1482 = vpop.f32.mrb[0].mxu0
    %v1483 = vadd.f32 0.0, %v1482
    %v1484 = vpop.f32.mrb[0].mxu0
    %1485 = vmatprep.mubr.f32.mxu0 %v1037
    %1486 = vmatmul.mubr.f32.gmra.mrb[0].mxu0 %v772
    %v1487 = vpop.f32.mrb[0].mxu0
    %v1488 = vadd.f32 0.0, %v1487
    %v1489 = vpop.f32.mrb[0].mxu0
    %1490 = vmatprep.mubr.f32.mxu0 %v1040
    %1491 = vmatmul.mubr.f32.gmra.mrb[0].mxu0 %v774
    %v1492 = vpop.f32.mrb[0].mxu0
    %v1493 = vadd.f32 0.0, %v1492
    %v1494 = vpop.f32.mrb[0].mxu0
    %1495 = vmatprep.mubr.f32.mxu0 %v1043
    %1496 = vmatmul.mubr.f32.gmra.mrb[0].mxu0 %v776
    %v1497 = vpop.f32.mrb[0].mxu0
    %v1498 = vadd.f32 0.0, %v1497
    %v1499 = vpop.f32.mrb[0].mxu0
    %1500 = vmatprep.mubr.f32.mxu0 %v1046
    %1501 = vmatmul.mubr.f32.gmra.mrb[0].mxu0 %v778
    %v1502 = vpop.f32.mrb[0].mxu0
    %v1503 = vadd.f32 0.0, %v1502
    %v1504 = vpop.f32.mrb[0].mxu0
    %1505 = vmatprep.mubr.f32.mxu0 %v1049
    %1506 = vmatmul.mubr.f32.gmra.mrb[0].mxu0 %v780
    %v1507 = vpop.f32.mrb[0].mxu0
    %v1508 = vadd.f32 0.0, %v1507
    %v1509 = vpop.f32.mrb[0].mxu0
    %1510 = vmatprep.mubr.f32.mxu0 %v1052
    %1511 = vmatmul.mubr.f32.gmra.mrb[0].mxu0 %v782
    %v1512 = vpop.f32.mrb[0].mxu0
    %v1513 = vadd.f32 0.0, %v1512
    %v1514 = vpop.f32.mrb[0].mxu0
    %1515 = vmatprep.mubr.f32.mxu0 %v1055
    %1516 = vmatmul.mubr.f32.gmra.mrb[0].mxu0 %v784
    %v1517 = vpop.f32.mrb[0].mxu0
    %v1518 = vadd.f32 0.0, %v1517
    %v1519 = vpop.f32.mrb[0].mxu0
    %1520 = vmatprep.mubr.f32.mxu0 %v1058
    %1521 = vmatmul.mubr.f32.gmra.mrb[0].mxu0 %v786
    %v1522 = vpop.f32.mrb[0].mxu0
    %v1523 = vadd.f32 0.0, %v1522
    %v1524 = vpop.f32.mrb[0].mxu0
    %1525 = vmatprep.mubr.f32.mxu0 %v1061
    %1526 = vmatmul.mubr.f32.gmra.mrb[0].mxu0 %v788
    %v1527 = vpop.f32.mrb[0].mxu0
    %v1528 = vadd.f32 0.0, %v1527
    %v1529 = vpop.f32.mrb[0].mxu0
    %1530 = vmatprep.mubr.f32.mxu0 %v1064
    %1531 = vmatmul.mubr.f32.gmra.mrb[0].mxu0 %v790
    %v1532 = vpop.f32.mrb[0].mxu0
    %v1533 = vadd.f32 0.0, %v1532
    %v1534 = vpop.f32.mrb[0].mxu0
    %1535 = vmatprep.mubr.f32.mxu0 %v1067
    %1536 = vmatmul.mubr.f32.gmra.mrb[0].mxu0 %v792
    %v1537 = vpop.f32.mrb[0].mxu0
    %v1538 = vadd.f32 0.0, %v1537
    %v1539 = vpop.f32.mrb[0].mxu0
    %1540 = vmatprep.mubr.f32.mxu0 %v1070
    %1541 = vmatmul.mubr.f32.gmra.mrb[0].mxu0 %v794
    %v1542 = vpop.f32.mrb[0].mxu0
    %v1543 = vadd.f32 0.0, %v1542
    %v1544 = vpop.f32.mrb[0].mxu0
    %1545 = vmatprep.mubr.f32.mxu0 %v1073
    %1546 = vmatmul.mubr.f32.gmra.mrb[0].mxu0 %v796
    %v1547 = vpop.f32.mrb[0].mxu0
    %v1548 = vadd.f32 0.0, %v1547
    %v1549 = vpop.f32.mrb[0].mxu0
    %1550 = vmatprep.mubr.f32.mxu0 %v1076
    %1551 = vmatmul.mubr.f32.gmra.mrb[0].mxu0 %v798
    %v1552 = vpop.f32.mrb[0].mxu0
    %v1553 = vadd.f32 0.0, %v1552
    %v1554 = vpop.f32.mrb[0].mxu0
    %1555 = vmatprep.mubr.f32.mxu0 %v1079
    %1556 = vmatmul.mubr.f32.gmra.mrb[0].mxu0 %v800
    %v1557 = vpop.f32.mrb[0].mxu0
    %v1558 = vadd.f32 0.0, %v1557
    %v1559 = vpop.f32.mrb[0].mxu0
    %1560 = vmatprep.mubr.f32.mxu0 %v1082
    %1561 = vmatmul.mubr.f32.gmra.mrb[0].mxu0 %v802
    %v1562 = vpop.f32.mrb[0].mxu0
    %v1563 = vadd.f32 0.0, %v1562
    %v1564 = vpop.f32.mrb[0].mxu0
    %1565 = vmatprep.mubr.f32.mxu0 %v1085
    %1566 = vmatmul.mubr.f32.gmra.mrb[0].mxu0 %v804
    %v1567 = vpop.f32.mrb[0].mxu0
    %v1568 = vadd.f32 0.0, %v1567
    %v1569 = vpop.f32.mrb[0].mxu0
    %1570 = vmatprep.mubr.f32.mxu0 %v1088
    %1571 = vmatmul.mubr.f32.gmra.mrb[0].mxu0 %v806
    %v1572 = vpop.f32.mrb[0].mxu0
    %v1573 = vadd.f32 0.0, %v1572
    %v1574 = vpop.f32.mrb[0].mxu0
    %1575 = vmatprep.mubr.f32.mxu0 %v1091
    %1576 = vmatmul.mubr.f32.gmra.mrb[0].mxu0 %v808
    %v1577 = vpop.f32.mrb[0].mxu0
    %v1578 = vadd.f32 0.0, %v1577
    %v1579 = vpop.f32.mrb[0].mxu0
    %1580 = vmatprep.mubr.f32.mxu0 %v1094
    %1581 = vmatmul.mubr.f32.gmra.mrb[0].mxu0 %v810
    %v1582 = vpop.f32.mrb[0].mxu0
    %v1583 = vadd.f32 0.0, %v1582
    %v1584 = vpop.f32.mrb[0].mxu0
    %1585 = vmatprep.mubr.f32.mxu0 %v1097
    %1586 = vmatmul.mubr.f32.gmra.mrb[0].mxu0 %v812
    %v1587 = vpop.f32.mrb[0].mxu0
    %v1588 = vadd.f32 0.0, %v1587
    %v1589 = vpop.f32.mrb[0].mxu0
    %1590 = vmatprep.mubr.f32.mxu0 %v1100
    %1591 = vmatmul.mubr.f32.gmra.mrb[0].mxu0 %v814
    %v1592 = vpop.f32.mrb[0].mxu0
    %v1593 = vadd.f32 0.0, %v1592
    %v1594 = vpop.f32.mrb[0].mxu0
    %1595 = vmatprep.mubr.f32.mxu0 %v1103
    %1596 = vmatmul.mubr.f32.gmra.mrb[0].mxu0 %v816
    %v1597 = vpop.f32.mrb[0].mxu0
    %v1598 = vadd.f32 0.0, %v1597
    %v1599 = vpop.f32.mrb[0].mxu0
    %1600 = vmatprep.mubr.f32.mxu0 %v1106
    %1601 = vmatmul.mubr.f32.gmra.mrb[0].mxu0 %v818
    %v1602 = vpop.f32.mrb[0].mxu0
    %v1603 = vadd.f32 0.0, %v1602
    %v1604 = vpop.f32.mrb[0].mxu0
    %1605 = vmatprep.mubr.f32.mxu0 %v1109
    %1606 = vmatmul.mubr.f32.gmra.mrb[0].mxu0 %v820
    %v1607 = vpop.f32.mrb[0].mxu0
    %v1608 = vadd.f32 0.0, %v1607
    %v1609 = vpop.f32.mrb[0].mxu0
    %1610 = vmatprep.mubr.f32.mxu0 %v1112
    %1611 = vmatmul.mubr.f32.gmra.mrb[0].mxu0 %v822
    %v1612 = vpop.f32.mrb[0].mxu0
    %v1613 = vadd.f32 0.0, %v1612
    %v1614 = vpop.f32.mrb[0].mxu0
    %1615 = vmatprep.mubr.f32.mxu0 %v1115
    %1616 = vmatmul.mubr.f32.gmra.mrb[0].mxu0 %v824
    %v1617 = vpop.f32.mrb[0].mxu0
    %v1618 = vadd.f32 0.0, %v1617
    %v1619 = vpop.f32.mrb[0].mxu0
    %1620 = vmatprep.mubr.f32.mxu0 %v1118
    %1621 = vmatmul.mubr.f32.gmra.mrb[0].mxu0 %v826
    %v1622 = vpop.f32.mrb[0].mxu0
    %v1623 = vadd.f32 0.0, %v1622
    %v1624 = vpop.f32.mrb[0].mxu0
    %1625 = vmatprep.mubr.f32.mxu0 %v1121
    %1626 = vmatmul.mubr.f32.gmra.mrb[0].mxu0 %v828
    %v1627 = vpop.f32.mrb[0].mxu0
    %v1628 = vadd.f32 0.0, %v1627
    %v1629 = vpop.f32.mrb[0].mxu0
    %1630 = vmatprep.mubr.f32.mxu0 %v1124
    %1631 = vmatmul.mubr.f32.gmra.mrb[0].mxu0 %v830
    %v1632 = vpop.f32.mrb[0].mxu0
    %v1633 = vadd.f32 0.0, %v1632
    %v1634 = vpop.f32.mrb[0].mxu0
    %1635 = vmatprep.mubr.f32.mxu0 %v1127
    %1636 = vmatmul.mubr.f32.gmra.mrb[0].mxu0 %v832
    %v1637 = vpop.f32.mrb[0].mxu0
    %v1638 = vadd.f32 0.0, %v1637
    %v1639 = vpop.f32.mrb[0].mxu0
    %1640 = vmatprep.mubr.f32.mxu0 %v1130
    %1641 = vmatmul.mubr.f32.gmra.mrb[0].mxu0 %v834
    %v1642 = vpop.f32.mrb[0].mxu0
    %v1643 = vadd.f32 0.0, %v1642
    %v1644 = vpop.f32.mrb[0].mxu0
    %1645 = vmatprep.mubr.f32.mxu0 %v1133
    %1646 = vmatmul.mubr.f32.gmra.mrb[0].mxu0 %v836
    %v1647 = vpop.f32.mrb[0].mxu0
    %v1648 = vadd.f32 0.0, %v1647
    %v1649 = vpop.f32.mrb[0].mxu0
    %1650 = vmatprep.mubr.f32.mxu0 %v1136
    %1651 = vmatmul.mubr.f32.gmra.mrb[0].mxu0 %v838
    %v1652 = vpop.f32.mrb[0].mxu0
    %v1653 = vadd.f32 0.0, %v1652
    %v1654 = vpop.f32.mrb[0].mxu0
    %1655 = vmatprep.mubr.f32.mxu0 %v1139
    %1656 = vmatmul.mubr.f32.gmra.mrb[0].mxu0 %v840
    %v1657 = vpop.f32.mrb[0].mxu0
    %v1658 = vadd.f32 0.0, %v1657
    %v1659 = vpop.f32.mrb[0].mxu0
    %1660 = vmatprep.mubr.f32.mxu0 %v1142
    %1661 = vmatmul.mubr.f32.gmra.mrb[0].mxu0 %v842
    %v1662 = vpop.f32.mrb[0].mxu0
    %v1663 = vadd.f32 0.0, %v1662
    %v1664 = vpop.f32.mrb[0].mxu0
    %1665 = vmatprep.mubr.f32.mxu0 %v1145
    %1666 = vmatmul.mubr.f32.gmra.mrb[0].mxu0 %v844
    %v1667 = vpop.f32.mrb[0].mxu0
    %v1668 = vadd.f32 0.0, %v1667
    %v1669 = vpop.f32.mrb[0].mxu0
    %1670 = vmatprep.mubr.f32.mxu0 %v1148
    %1671 = vmatmul.mubr.f32.gmra.mrb[0].mxu0 %v846
    %v1672 = vpop.f32.mrb[0].mxu0
    %v1673 = vadd.f32 0.0, %v1672
    %v1674 = vpop.f32.mrb[0].mxu0
    %1675 = vmatprep.mubr.f32.mxu0 %v1151
    %1676 = vmatmul.mubr.f32.gmra.mrb[0].mxu0 %v848
    %v1677 = vpop.f32.mrb[0].mxu0
    %v1678 = vadd.f32 0.0, %v1677
    %v1679 = vpop.f32.mrb[0].mxu0
    %1680 = vmatprep.mubr.f32.mxu0 %v1154
    %1681 = vmatmul.mubr.f32.gmra.mrb[0].mxu0 %v850
    %v1682 = vpop.f32.mrb[0].mxu0
    %v1683 = vadd.f32 0.0, %v1682
    %v1684 = vpop.f32.mrb[0].mxu0
    %1685 = vmatprep.mubr.f32.mxu0 %v1157
    %1686 = vmatmul.mubr.f32.gmra.mrb[0].mxu0 %v852
    %v1687 = vpop.f32.mrb[0].mxu0
    %v1688 = vadd.f32 0.0, %v1687
    %v1689 = vpop.f32.mrb[0].mxu0
    %1690 = vmatprep.mubr.f32.mxu0 %v1160
    %1691 = vmatmul.mubr.f32.gmra.mrb[0].mxu0 %v854
    %v1692 = vpop.f32.mrb[0].mxu0
    %v1693 = vadd.f32 0.0, %v1692
    %v1694 = vpop.f32.mrb[0].mxu0
    %1695 = vmatprep.mubr.f32.mxu0 %v1163
    %1696 = vmatmul.mubr.f32.gmra.mrb[0].mxu0 %v856
    %v1697 = vpop.f32.mrb[0].mxu0
    %v1698 = vadd.f32 0.0, %v1697
    %v1699 = vpop.f32.mrb[0].mxu0
    %1700 = vmatprep.mubr.f32.mxu0 %v1166
    %1701 = vmatmul.mubr.f32.gmra.mrb[0].mxu0 %v858
    %v1702 = vpop.f32.mrb[0].mxu0
    %v1703 = vadd.f32 0.0, %v1702
    %v1704 = vpop.f32.mrb[0].mxu0
    %1705 = vmatprep.mubr.f32.mxu0 %v1169
    %1706 = vmatmul.mubr.f32.gmra.mrb[0].mxu0 %v860
    %v1707 = vpop.f32.mrb[0].mxu0
    %v1708 = vadd.f32 0.0, %v1707
    %v1709 = vpop.f32.mrb[0].mxu0
    %1710 = vmatprep.mubr.f32.mxu0 %v1172
    %1711 = vmatmul.mubr.f32.gmra.mrb[0].mxu0 %v862
    %v1712 = vpop.f32.mrb[0].mxu0
    %v1713 = vadd.f32 0.0, %v1712
    %v1714 = vpop.f32.mrb[0].mxu0
    %1715 = vmatprep.mubr.f32.mxu0 %v1175
    %1716 = vmatmul.mubr.f32.gmra.mrb[0].mxu0 %v864
    %v1717 = vpop.f32.mrb[0].mxu0
    %v1718 = vadd.f32 0.0, %v1717
    %v1719 = vpop.f32.mrb[0].mxu0
    %1720 = vmatprep.mubr.f32.mxu0 %v1178
    %1721 = vmatmul.mubr.f32.gmra.mrb[0].mxu0 %v866
    %v1722 = vpop.f32.mrb[0].mxu0
    %v1723 = vadd.f32 0.0, %v1722
    %v1724 = vpop.f32.mrb[0].mxu0
    %1725 = vmatprep.mubr.f32.mxu0 %v1181
    %1726 = vmatmul.mubr.f32.gmra.mrb[0].mxu0 %v868
    %v1727 = vpop.f32.mrb[0].mxu0
    %v1728 = vadd.f32 0.0, %v1727
    %v1729 = vpop.f32.mrb[0].mxu0
    %1730 = vmatprep.mubr.f32.mxu0 %v1184
    %1731 = vmatmul.mubr.f32.gmra.mrb[0].mxu0 %v870
    %v1732 = vpop.f32.mrb[0].mxu0
    %v1733 = vadd.f32 0.0, %v1732
    %v1734 = vpop.f32.mrb[0].mxu0
    %1735 = vmatprep.mubr.f32.mxu0 %v1187
    %1736 = vmatmul.mubr.f32.gmra.mrb[0].mxu0 %v872
    %v1737 = vpop.f32.mrb[0].mxu0
    %v1738 = vadd.f32 0.0, %v1737
    %v1739 = vpop.f32.mrb[0].mxu0
    %1740 = vmatprep.mubr.f32.mxu0 %v1190
    %1741 = vmatmul.mubr.f32.gmra.mrb[0].mxu0 %v874
    %v1742 = vpop.f32.mrb[0].mxu0
    %v1743 = vadd.f32 0.0, %v1742
    %v1744 = vpop.f32.mrb[0].mxu0
    %1745 = vmatprep.mubr.f32.mxu0 %v1193
    %1746 = vmatmul.mubr.f32.gmra.mrb[0].mxu0 %v876
    %v1747 = vpop.f32.mrb[0].mxu0
    %v1748 = vadd.f32 0.0, %v1747
    %v1749 = vpop.f32.mrb[0].mxu0
    %1750 = vmatprep.mubr.f32.mxu0 %v1196
    %1751 = vmatmul.mubr.f32.gmra.mrb[0].mxu0 %v878
    %v1752 = vpop.f32.mrb[0].mxu0
    %v1753 = vadd.f32 0.0, %v1752
    %v1754 = vpop.f32.mrb[0].mxu0
    %1755 = vmatprep.mubr.f32.mxu0 %v1199
    %1756 = vmatmul.mubr.f32.gmra.mrb[0].mxu0 %v880
    %v1757 = vpop.f32.mrb[0].mxu0
    %v1758 = vadd.f32 0.0, %v1757
    %v1759 = vpop.f32.mrb[0].mxu0
    %1760 = vmatprep.mubr.f32.mxu0 %v1202
    %1761 = vmatmul.mubr.f32.gmra.mrb[0].mxu0 %v882
    %v1762 = vpop.f32.mrb[0].mxu0
    %v1763 = vadd.f32 0.0, %v1762
    %v1764 = vpop.f32.mrb[0].mxu0
    %1765 = vmatprep.mubr.f32.mxu0 %v1205
    %1766 = vmatmul.mubr.f32.gmra.mrb[0].mxu0 %v884
    %v1767 = vpop.f32.mrb[0].mxu0
    %v1768 = vadd.f32 0.0, %v1767
    %v1769 = vpop.f32.mrb[0].mxu0
    %1770 = vmatprep.mubr.f32.mxu0 %v1208
    %1771 = vmatmul.mubr.f32.gmra.mrb[0].mxu0 %v886
    %v1772 = vpop.f32.mrb[0].mxu0
    %v1773 = vadd.f32 0.0, %v1772
    %v1774 = vpop.f32.mrb[0].mxu0
    %1775 = vmatprep.mubr.f32.mxu0 %v1211
    %1776 = vmatmul.mubr.f32.gmra.mrb[0].mxu0 %v888
    %v1777 = vpop.f32.mrb[0].mxu0
    %v1778 = vadd.f32 0.0, %v1777
    %v1779 = vpop.f32.mrb[0].mxu0
    %1780 = vmatprep.mubr.f32.mxu0 %v1214
    %1781 = vmatmul.mubr.f32.gmra.mrb[0].mxu0 %v890
    %v1782 = vpop.f32.mrb[0].mxu0
    %v1783 = vadd.f32 0.0, %v1782
    %v1784 = vpop.f32.mrb[0].mxu0
    %1785 = vmatprep.mubr.f32.mxu0 %v1217
    %1786 = vmatmul.mubr.f32.gmra.mrb[0].mxu0 %v892
    %v1787 = vpop.f32.mrb[0].mxu0
    %v1788 = vadd.f32 0.0, %v1787
    %v1789 = vpop.f32.mrb[0].mxu0
    %1790 = vmatprep.mubr.f32.mxu0 %v1220
    %1791 = vmatmul.mubr.f32.gmra.mrb[0].mxu0 %v894
    %v1792 = vpop.f32.mrb[0].mxu0
    %v1793 = vadd.f32 0.0, %v1792
    %v1794 = vpop.f32.mrb[0].mxu0
    %1795 = vmatprep.mubr.f32.mxu0 %v1223
    %1796 = vmatmul.mubr.f32.gmra.mrb[0].mxu0 %v896
    %v1797 = vpop.f32.mrb[0].mxu0
    %v1798 = vadd.f32 0.0, %v1797
    %v1799 = vpop.f32.mrb[0].mxu0
    %1800 = vmatprep.mubr.f32.mxu0 %v1226
    %1801 = vmatmul.mubr.f32.gmra.mrb[0].mxu0 %v898
    %v1802 = vpop.f32.mrb[0].mxu0
    %v1803 = vadd.f32 0.0, %v1802
    %v1804 = vpop.f32.mrb[0].mxu0
    %1805 = vmatprep.mubr.f32.mxu0 %v1229
    %1806 = vmatmul.mubr.f32.gmra.mrb[0].mxu0 %v900
    %v1807 = vpop.f32.mrb[0].mxu0
    %v1808 = vadd.f32 0.0, %v1807
    %v1809 = vpop.f32.mrb[0].mxu0
    %1810 = vmatprep.mubr.f32.mxu0 %v1232
    %1811 = vmatmul.mubr.f32.gmra.mrb[0].mxu0 %v902
    %v1812 = vpop.f32.mrb[0].mxu0
    %v1813 = vadd.f32 0.0, %v1812
    %v1814 = vpop.f32.mrb[0].mxu0
    %1815 = vmatprep.mubr.f32.mxu0 %v1235
    %1816 = vmatmul.mubr.f32.gmra.mrb[0].mxu0 %v904
    %v1817 = vpop.f32.mrb[0].mxu0
    %v1818 = vadd.f32 0.0, %v1817
    %v1819 = vpop.f32.mrb[0].mxu0
    %1820 = vmatprep.mubr.f32.mxu0 %v1238
    %1821 = vmatmul.mubr.f32.gmra.mrb[0].mxu0 %v906
    %v1822 = vpop.f32.mrb[0].mxu0
    %v1823 = vadd.f32 0.0, %v1822
    %v1824 = vpop.f32.mrb[0].mxu0
    %1825 = vmatprep.mubr.f32.mxu0 %v1241
    %1826 = vmatmul.mubr.f32.gmra.mrb[0].mxu0 %v908
    %v1827 = vpop.f32.mrb[0].mxu0
    %v1828 = vadd.f32 0.0, %v1827
    %v1829 = vpop.f32.mrb[0].mxu0
    %1830 = vmatprep.mubr.f32.mxu0 %v1244
    %1831 = vmatmul.mubr.f32.gmra.mrb[0].mxu0 %v910
    %v1832 = vpop.f32.mrb[0].mxu0
    %v1833 = vadd.f32 0.0, %v1832
    %v1834 = vpop.f32.mrb[0].mxu0
    %1835 = vmatprep.mubr.f32.mxu0 %v1247
    %1836 = vmatmul.mubr.f32.gmra.mrb[0].mxu0 %v912
    %v1837 = vpop.f32.mrb[0].mxu0
    %v1838 = vadd.f32 0.0, %v1837
    %v1839 = vpop.f32.mrb[0].mxu0
    %1840 = vmatprep.mubr.f32.mxu0 %v1250
    %1841 = vmatmul.mubr.f32.gmra.mrb[0].mxu0 %v914
    %v1842 = vpop.f32.mrb[0].mxu0
    %v1843 = vadd.f32 0.0, %v1842
    %v1844 = vpop.f32.mrb[0].mxu0
    %1845 = vmatprep.mubr.f32.mxu0 %v1253
    %1846 = vmatmul.mubr.f32.gmra.mrb[0].mxu0 %v916
    %v1847 = vpop.f32.mrb[0].mxu0
    %v1848 = vadd.f32 0.0, %v1847
    %v1849 = vpop.f32.mrb[0].mxu0
    %1850 = vmatprep.mubr.f32.mxu0 %v1256
    %1851 = vmatmul.mubr.f32.gmra.mrb[0].mxu0 %v918
    %v1852 = vpop.f32.mrb[0].mxu0
    %v1853 = vadd.f32 0.0, %v1852
    %v1854 = vpop.f32.mrb[0].mxu0
    %1855 = vmatprep.mubr.f32.mxu0 %v1259
    %1856 = vmatmul.mubr.f32.gmra.mrb[0].mxu0 %v920
    %v1857 = vpop.f32.mrb[0].mxu0
    %v1858 = vadd.f32 0.0, %v1857
    %v1859 = vpop.f32.mrb[0].mxu0
    %1860 = vmatprep.mubr.f32.mxu0 %v1262
    %1861 = vmatmul.mubr.f32.gmra.mrb[0].mxu0 %v922
    %v1862 = vpop.f32.mrb[0].mxu0
    %v1863 = vadd.f32 0.0, %v1862
    %v1864 = vpop.f32.mrb[0].mxu0
    %1865 = vmatprep.mubr.f32.mxu0 %v1265
    %1866 = vmatmul.mubr.f32.gmra.mrb[0].mxu0 %v924
    %v1867 = vpop.f32.mrb[0].mxu0
    %v1868 = vadd.f32 0.0, %v1867
    %v1869 = vpop.f32.mrb[0].mxu0
    %1870 = vmatprep.mubr.f32.mxu0 %v1268
    %1871 = vmatmul.mubr.f32.gmra.mrb[0].mxu0 %v926
    %v1872 = vpop.f32.mrb[0].mxu0
    %v1873 = vadd.f32 0.0, %v1872
    %v1874 = vpop.f32.mrb[0].mxu0
    %1875 = vmatprep.mubr.f32.mxu0 %v1271
    %1876 = vmatmul.mubr.f32.gmra.mrb[0].mxu0 %v928
    %v1877 = vpop.f32.mrb[0].mxu0
    %v1878 = vadd.f32 0.0, %v1877
    %v1879 = vpop.f32.mrb[0].mxu0
    %1880 = vmatprep.mubr.f32.mxu0 %v1274
    %1881 = vmatmul.mubr.f32.gmra.mrb[0].mxu0 %v930
    %v1882 = vpop.f32.mrb[0].mxu0
    %v1883 = vadd.f32 0.0, %v1882
    %v1884 = vpop.f32.mrb[0].mxu0
    %1885 = vmatprep.mubr.f32.mxu0 %v1277
    %1886 = vmatmul.mubr.f32.gmra.mrb[0].mxu0 %v932
    %v1887 = vpop.f32.mrb[0].mxu0
    %v1888 = vadd.f32 0.0, %v1887
    %v1889 = vpop.f32.mrb[0].mxu0
    %1890 = vmatprep.mubr.f32.mxu0 %v1280
    %1891 = vmatmul.mubr.f32.gmra.mrb[0].mxu0 %v934
    %v1892 = vpop.f32.mrb[0].mxu0
    %v1893 = vadd.f32 0.0, %v1892
    %v1894 = vpop.f32.mrb[0].mxu0
    %1895 = vmatprep.mubr.f32.mxu0 %v1283
    %1896 = vmatmul.mubr.f32.gmra.mrb[0].mxu0 %v936
    %v1897 = vpop.f32.mrb[0].mxu0
    %v1898 = vadd.f32 0.0, %v1897
    %v1899 = vpop.f32.mrb[0].mxu0
    %1900 = vmatprep.mubr.f32.mxu0 %v1286
    %1901 = vmatmul.mubr.f32.gmra.mrb[0].mxu0 %v938
    %v1902 = vpop.f32.mrb[0].mxu0
    %v1903 = vadd.f32 0.0, %v1902
    %v1904 = vpop.f32.mrb[0].mxu0
    %1905 = vmatprep.mubr.f32.mxu0 %v1289
    %1906 = vmatmul.mubr.f32.gmra.mrb[0].mxu0 %v940
    %v1907 = vpop.f32.mrb[0].mxu0
    %v1908 = vadd.f32 0.0, %v1907
    %v1909 = vpop.f32.mrb[0].mxu0
    %1910 = vmatprep.mubr.f32.mxu0 %v1292
    %1911 = vmatmul.mubr.f32.gmra.mrb[0].mxu0 %v942
    %v1912 = vpop.f32.mrb[0].mxu0
    %v1913 = vadd.f32 0.0, %v1912
    %v1914 = vpop.f32.mrb[0].mxu0
    %1915 = vmatprep.mubr.f32.mxu0 %v1295
    %1916 = vmatmul.mubr.f32.gmra.mrb[0].mxu0 %v944
    %v1917 = vpop.f32.mrb[0].mxu0
    %v1918 = vadd.f32 0.0, %v1917
    %v1919 = vpop.f32.mrb[0].mxu0
    %1920 = vmatprep.mubr.f32.mxu0 %v1298
    %1921 = vmatmul.mubr.f32.gmra.mrb[0].mxu0 %v946
    %v1922 = vpop.f32.mrb[0].mxu0
    %v1923 = vadd.f32 0.0, %v1922
    %v1924 = vpop.f32.mrb[0].mxu0
    %1925 = vmatprep.mubr.f32.mxu0 %v1301
    %1926 = vmatmul.mubr.f32.gmra.mrb[0].mxu0 %v948
    %v1927 = vpop.f32.mrb[0].mxu0
    %v1928 = vadd.f32 0.0, %v1927
    %v1929 = vpop.f32.mrb[0].mxu0
    %1930 = vmatprep.mubr.f32.mxu0 %v1304
    %1931 = vmatmul.mubr.f32.gmra.mrb[0].mxu0 %v950
    %v1932 = vpop.f32.mrb[0].mxu0
    %v1933 = vadd.f32 0.0, %v1932
    %v1934 = vpop.f32.mrb[0].mxu0
    %1935 = vmatprep.mubr.f32.mxu0 %v1307
    %1936 = vmatmul.mubr.f32.gmra.mrb[0].mxu0 %v952
    %v1937 = vpop.f32.mrb[0].mxu0
    %v1938 = vadd.f32 0.0, %v1937
    %v1939 = vpop.f32.mrb[0].mxu0
    %1940 = vmatprep.mubr.f32.mxu0 %v1310
    %1941 = vmatmul.mubr.f32.gmra.mrb[0].mxu0 %v954
    %v1942 = vpop.f32.mrb[0].mxu0
    %v1943 = vadd.f32 0.0, %v1942
    %v1944 = vpop.f32.mrb[0].mxu0
    %1945 = vmatprep.mubr.f32.mxu0 %v1313
    %1946 = vmatmul.mubr.f32.gmra.mrb[0].mxu0 %v956
    %v1947 = vpop.f32.mrb[0].mxu0
    %v1948 = vadd.f32 0.0, %v1947
    %v1949 = vpop.f32.mrb[0].mxu0
    %1950 = vmatprep.mubr.f32.mxu0 %v1316
    %1951 = vmatmul.mubr.f32.gmra.mrb[0].mxu0 %v958
    %v1952 = vpop.f32.mrb[0].mxu0
    %v1953 = vadd.f32 0.0, %v1952
    %v1954 = vpop.f32.mrb[0].mxu0
    %1955 = vmatprep.mubr.f32.mxu0 %v1319
    %1956 = vmatmul.mubr.f32.gmra.mrb[0].mxu0 %v960
    %v1957 = vpop.f32.mrb[0].mxu0
    %v1958 = vadd.f32 0.0, %v1957
    %v1959 = vpop.f32.mrb[0].mxu0
    %1960 = vmatprep.mubr.f32.mxu0 %v1322
    %1961 = vmatmul.mubr.f32.gmra.mrb[0].mxu0 %v962
    %v1962 = vpop.f32.mrb[0].mxu0
    %v1963 = vadd.f32 0.0, %v1962
    %v1964 = vpop.f32.mrb[0].mxu0
    %1965 = vmatprep.mubr.f32.mxu0 %v1325
    %1966 = vmatmul.mubr.f32.gmra.mrb[0].mxu0 %v964
    %v1967 = vpop.f32.mrb[0].mxu0
    %v1968 = vadd.f32 0.0, %v1967
    %v1969 = vpop.f32.mrb[0].mxu0
    %1970 = vmatprep.mubr.f32.mxu0 %v1328
    %1971 = vmatmul.mubr.f32.gmra.mrb[0].mxu0 %v966
    %v1972 = vpop.f32.mrb[0].mxu0
    %v1973 = vadd.f32 0.0, %v1972
    %v1974 = vpop.f32.mrb[0].mxu0
    %1975 = vmatprep.mubr.f32.mxu0 %v1331
    %1976 = vmatmul.mubr.f32.gmra.mrb[0].mxu0 %v968
    %v1977 = vpop.f32.mrb[0].mxu0
    %v1978 = vadd.f32 0.0, %v1977
    %v1979 = vpop.f32.mrb[0].mxu0
    %1980 = vmatprep.mubr.f32.mxu0 %v1334
    %1981 = vmatmul.mubr.f32.gmra.mrb[0].mxu0 %v970
    %v1982 = vpop.f32.mrb[0].mxu0
    %v1983 = vadd.f32 0.0, %v1982
    %v1984 = vpop.f32.mrb[0].mxu0
    %1985 = vmatprep.mubr.f32.mxu0 %v1337
    %1986 = vmatmul.mubr.f32.gmra.mrb[0].mxu0 %v972
    %v1987 = vpop.f32.mrb[0].mxu0
    %v1988 = vadd.f32 0.0, %v1987
    %v1989 = vpop.f32.mrb[0].mxu0
    %1990 = vmatprep.mubr.f32.mxu0 %v1340
    %1991 = vmatmul.mubr.f32.gmra.mrb[0].mxu0 %v974
    %v1992 = vpop.f32.mrb[0].mxu0
    %v1993 = vadd.f32 0.0, %v1992
    %v1994 = vpop.f32.mrb[0].mxu0
    %1995 = vdwg.mxu0
    %2009 = vrot.lane.b32.xlu0 %v1478, 12
    %v2010 = vpop.permute.xlu0 %2009
    %2011 = vrot.lane.b32.xlu0 %v1483, 12
    %v2012 = vpop.permute.xlu0 %2011
    %2013 = vrot.lane.b32.xlu0 %v1488, 12
    %v2014 = vpop.permute.xlu0 %2013
    %2015 = vrot.lane.b32.xlu0 %v1493, 12
    %v2016 = vpop.permute.xlu0 %2015
    %2017 = vrot.lane.b32.xlu0 %v1498, 12
    %v2018 = vpop.permute.xlu0 %2017
    %2019 = vrot.lane.b32.xlu0 %v1503, 12
    %v2020 = vpop.permute.xlu0 %2019
    %2021 = vrot.lane.b32.xlu0 %v1508, 12
    %v2022 = vpop.permute.xlu0 %2021
    %2023 = vrot.lane.b32.xlu0 %v1513, 12
    %v2024 = vpop.permute.xlu0 %2023
    %2025 = vrot.lane.b32.xlu0 %v1518, 12
    %v2026 = vpop.permute.xlu0 %2025
    %2027 = vrot.lane.b32.xlu0 %v1523, 12
    %v2028 = vpop.permute.xlu0 %2027
    %2029 = vrot.lane.b32.xlu0 %v1528, 12
    %v2030 = vpop.permute.xlu0 %2029
    %2031 = vrot.lane.b32.xlu0 %v1533, 12
    %v2032 = vpop.permute.xlu0 %2031
    %2033 = vrot.lane.b32.xlu0 %v1538, 12
    %v2034 = vpop.permute.xlu0 %2033
    %2061 = vrot.lane.b32.xlu0 %v1543, 24
    %v2062 = vpop.permute.xlu0 %2061
    %2063 = vrot.lane.b32.xlu0 %v1548, 24
    %v2064 = vpop.permute.xlu0 %2063
    %2065 = vrot.lane.b32.xlu0 %v1553, 24
    %v2066 = vpop.permute.xlu0 %2065
    %2067 = vrot.lane.b32.xlu0 %v1558, 24
    %v2068 = vpop.permute.xlu0 %2067
    %2069 = vrot.lane.b32.xlu0 %v1563, 24
    %v2070 = vpop.permute.xlu0 %2069
    %2071 = vrot.lane.b32.xlu0 %v1568, 24
    %v2072 = vpop.permute.xlu0 %2071
    %2073 = vrot.lane.b32.xlu0 %v1573, 24
    %v2074 = vpop.permute.xlu0 %2073
    %2075 = vrot.lane.b32.xlu0 %v1578, 24
    %v2076 = vpop.permute.xlu0 %2075
    %2077 = vrot.lane.b32.xlu0 %v1583, 24
    %v2078 = vpop.permute.xlu0 %2077
    %2079 = vrot.lane.b32.xlu0 %v1588, 24
    %v2080 = vpop.permute.xlu0 %2079
    %2081 = vrot.lane.b32.xlu0 %v1593, 24
    %v2082 = vpop.permute.xlu0 %2081
    %2083 = vrot.lane.b32.xlu0 %v1598, 24
    %v2084 = vpop.permute.xlu0 %2083
    %2085 = vrot.lane.b32.xlu0 %v1603, 24
    %v2086 = vpop.permute.xlu0 %2085
    %2113 = vrot.lane.b32.xlu0 %v1608, 36
    %v2114 = vpop.permute.xlu0 %2113
    %2115 = vrot.lane.b32.xlu0 %v1613, 36
    %v2116 = vpop.permute.xlu0 %2115
    %2117 = vrot.lane.b32.xlu0 %v1618, 36
    %v2118 = vpop.permute.xlu0 %2117
    %2119 = vrot.lane.b32.xlu0 %v1623, 36
    %v2120 = vpop.permute.xlu0 %2119
    %2121 = vrot.lane.b32.xlu0 %v1628, 36
    %v2122 = vpop.permute.xlu0 %2121
    %2123 = vrot.lane.b32.xlu0 %v1633, 36
    %v2124 = vpop.permute.xlu0 %2123
    %2125 = vrot.lane.b32.xlu0 %v1638, 36
    %v2126 = vpop.permute.xlu0 %2125
    %2127 = vrot.lane.b32.xlu0 %v1643, 36
    %v2128 = vpop.permute.xlu0 %2127
    %2129 = vrot.lane.b32.xlu0 %v1648, 36
    %v2130 = vpop.permute.xlu0 %2129
    %2131 = vrot.lane.b32.xlu0 %v1653, 36
    %v2132 = vpop.permute.xlu0 %2131
    %2133 = vrot.lane.b32.xlu0 %v1658, 36
    %v2134 = vpop.permute.xlu0 %2133
    %2135 = vrot.lane.b32.xlu0 %v1663, 36
    %v2136 = vpop.permute.xlu0 %2135
    %2137 = vrot.lane.b32.xlu0 %v1668, 36
    %v2138 = vpop.permute.xlu0 %2137
    %2165 = vrot.lane.b32.xlu0 %v1673, 48
    %v2166 = vpop.permute.xlu0 %2165
    %2167 = vrot.lane.b32.xlu0 %v1678, 48
    %v2168 = vpop.permute.xlu0 %2167
    %2169 = vrot.lane.b32.xlu0 %v1683, 48
    %v2170 = vpop.permute.xlu0 %2169
    %2171 = vrot.lane.b32.xlu0 %v1688, 48
    %v2172 = vpop.permute.xlu0 %2171
    %2173 = vrot.lane.b32.xlu0 %v1693, 48
    %v2174 = vpop.permute.xlu0 %2173
    %2175 = vrot.lane.b32.xlu0 %v1698, 48
    %v2176 = vpop.permute.xlu0 %2175
    %2177 = vrot.lane.b32.xlu0 %v1703, 48
    %v2178 = vpop.permute.xlu0 %2177
    %2179 = vrot.lane.b32.xlu0 %v1708, 48
    %v2180 = vpop.permute.xlu0 %2179
    %2181 = vrot.lane.b32.xlu0 %v1713, 48
    %v2182 = vpop.permute.xlu0 %2181
    %2183 = vrot.lane.b32.xlu0 %v1718, 48
    %v2184 = vpop.permute.xlu0 %2183
    %2185 = vrot.lane.b32.xlu0 %v1723, 48
    %v2186 = vpop.permute.xlu0 %2185
    %2187 = vrot.lane.b32.xlu0 %v1728, 48
    %v2188 = vpop.permute.xlu0 %2187
    %2189 = vrot.lane.b32.xlu0 %v1733, 48
    %v2190 = vpop.permute.xlu0 %2189
    %2217 = vrot.lane.b32.xlu0 %v1738, 60
    %v2218 = vpop.permute.xlu0 %2217
    %2219 = vrot.lane.b32.xlu0 %v1743, 60
    %v2220 = vpop.permute.xlu0 %2219
    %2221 = vrot.lane.b32.xlu0 %v1748, 60
    %v2222 = vpop.permute.xlu0 %2221
    %2223 = vrot.lane.b32.xlu0 %v1753, 60
    %v2224 = vpop.permute.xlu0 %2223
    %2225 = vrot.lane.b32.xlu0 %v1758, 60
    %v2226 = vpop.permute.xlu0 %2225
    %2227 = vrot.lane.b32.xlu0 %v1763, 60
    %v2228 = vpop.permute.xlu0 %2227
    %2229 = vrot.lane.b32.xlu0 %v1768, 60
    %v2230 = vpop.permute.xlu0 %2229
    %2231 = vrot.lane.b32.xlu0 %v1773, 60
    %v2232 = vpop.permute.xlu0 %2231
    %2233 = vrot.lane.b32.xlu0 %v1778, 60
    %v2234 = vpop.permute.xlu0 %2233
    %2235 = vrot.lane.b32.xlu0 %v1783, 60
    %v2236 = vpop.permute.xlu0 %2235
    %2237 = vrot.lane.b32.xlu0 %v1788, 60
    %v2238 = vpop.permute.xlu0 %2237
    %2239 = vrot.lane.b32.xlu0 %v1793, 60
    %v2240 = vpop.permute.xlu0 %2239
    %2241 = vrot.lane.b32.xlu0 %v1798, 60
    %v2242 = vpop.permute.xlu0 %2241
    %2269 = vrot.lane.b32.xlu0 %v1803, 72
    %v2270 = vpop.permute.xlu0 %2269
    %2271 = vrot.lane.b32.xlu0 %v1808, 72
    %v2272 = vpop.permute.xlu0 %2271
    %2273 = vrot.lane.b32.xlu0 %v1813, 72
    %v2274 = vpop.permute.xlu0 %2273
    %2275 = vrot.lane.b32.xlu0 %v1818, 72
    %v2276 = vpop.permute.xlu0 %2275
    %2277 = vrot.lane.b32.xlu0 %v1823, 72
    %v2278 = vpop.permute.xlu0 %2277
    %2279 = vrot.lane.b32.xlu0 %v1828, 72
    %v2280 = vpop.permute.xlu0 %2279
    %2281 = vrot.lane.b32.xlu0 %v1833, 72
    %v2282 = vpop.permute.xlu0 %2281
    %2283 = vrot.lane.b32.xlu0 %v1838, 72
    %v2284 = vpop.permute.xlu0 %2283
    %2285 = vrot.lane.b32.xlu0 %v1843, 72
    %v2286 = vpop.permute.xlu0 %2285
    %2287 = vrot.lane.b32.xlu0 %v1848, 72
    %v2288 = vpop.permute.xlu0 %2287
    %2289 = vrot.lane.b32.xlu0 %v1853, 72
    %v2290 = vpop.permute.xlu0 %2289
    %2291 = vrot.lane.b32.xlu0 %v1858, 72
    %v2292 = vpop.permute.xlu0 %2291
    %2293 = vrot.lane.b32.xlu0 %v1863, 72
    %v2294 = vpop.permute.xlu0 %2293
    %2321 = vrot.lane.b32.xlu0 %v1868, 84
    %v2322 = vpop.permute.xlu0 %2321
    %2323 = vrot.lane.b32.xlu0 %v1873, 84
    %v2324 = vpop.permute.xlu0 %2323
    %2325 = vrot.lane.b32.xlu0 %v1878, 84
    %v2326 = vpop.permute.xlu0 %2325
    %2327 = vrot.lane.b32.xlu0 %v1883, 84
    %v2328 = vpop.permute.xlu0 %2327
    %2329 = vrot.lane.b32.xlu0 %v1888, 84
    %v2330 = vpop.permute.xlu0 %2329
    %2331 = vrot.lane.b32.xlu0 %v1893, 84
    %v2332 = vpop.permute.xlu0 %2331
    %2333 = vrot.lane.b32.xlu0 %v1898, 84
    %v2334 = vpop.permute.xlu0 %2333
    %2335 = vrot.lane.b32.xlu0 %v1903, 84
    %v2336 = vpop.permute.xlu0 %2335
    %2337 = vrot.lane.b32.xlu0 %v1908, 84
    %v2338 = vpop.permute.xlu0 %2337
    %2339 = vrot.lane.b32.xlu0 %v1913, 84
    %v2340 = vpop.permute.xlu0 %2339
    %2341 = vrot.lane.b32.xlu0 %v1918, 84
    %v2342 = vpop.permute.xlu0 %2341
    %2343 = vrot.lane.b32.xlu0 %v1923, 84
    %v2344 = vpop.permute.xlu0 %2343
    %2345 = vrot.lane.b32.xlu0 %v1928, 84
    %v2346 = vpop.permute.xlu0 %2345
    %2373 = vrot.lane.b32.xlu0 %v1933, 96
    %v2374 = vpop.permute.xlu0 %2373
    %2375 = vrot.lane.b32.xlu0 %v1938, 96
    %v2376 = vpop.permute.xlu0 %2375
    %2377 = vrot.lane.b32.xlu0 %v1943, 96
    %v2378 = vpop.permute.xlu0 %2377
    %2379 = vrot.lane.b32.xlu0 %v1948, 96
    %v2380 = vpop.permute.xlu0 %2379
    %2381 = vrot.lane.b32.xlu0 %v1953, 96
    %v2382 = vpop.permute.xlu0 %2381
    %2383 = vrot.lane.b32.xlu0 %v1958, 96
    %v2384 = vpop.permute.xlu0 %2383
    %2385 = vrot.lane.b32.xlu0 %v1963, 96
    %v2386 = vpop.permute.xlu0 %2385
    %2387 = vrot.lane.b32.xlu0 %v1968, 96
    %v2388 = vpop.permute.xlu0 %2387
    %2389 = vrot.lane.b32.xlu0 %v1973, 96
    %v2390 = vpop.permute.xlu0 %2389
    %2391 = vrot.lane.b32.xlu0 %v1978, 96
    %v2392 = vpop.permute.xlu0 %2391
    %2393 = vrot.lane.b32.xlu0 %v1983, 96
    %v2394 = vpop.permute.xlu0 %2393
    %2395 = vrot.lane.b32.xlu0 %v1988, 96
    %v2396 = vpop.permute.xlu0 %2395
    %2397 = vrot.lane.b32.xlu0 %v1993, 96
    %v2398 = vpop.permute.xlu0 %2397
    %vm2412 = vcmask 97280
    %v2413 = vsel %vm2412, %v1413, %v2010
    %v2414 = vsel %vm2412, %v1418, %v2012
    %v2415 = vsel %vm2412, %v1423, %v2014
    %v2416 = vsel %vm2412, %v1428, %v2016
    %v2417 = vsel %vm2412, %v1433, %v2018
    %v2418 = vsel %vm2412, %v1438, %v2020
    %v2419 = vsel %vm2412, %v1443, %v2022
    %v2420 = vsel %vm2412, %v1448, %v2024
    %v2421 = vsel %vm2412, %v1453, %v2026
    %v2422 = vsel %vm2412, %v1458, %v2028
    %v2423 = vsel %vm2412, %v1463, %v2030
    %v2424 = vsel %vm2412, %v1468, %v2032
    %v2425 = vsel %vm2412, %v1473, %v2034
    %vm2426 = vcmask 195584
    %v2427 = vsel %vm2426, %v2413, %v2062
    %v2428 = vsel %vm2426, %v2414, %v2064
    %v2429 = vsel %vm2426, %v2415, %v2066
    %v2430 = vsel %vm2426, %v2416, %v2068
    %v2431 = vsel %vm2426, %v2417, %v2070
    %v2432 = vsel %vm2426, %v2418, %v2072
    %v2433 = vsel %vm2426, %v2419, %v2074
    %v2434 = vsel %vm2426, %v2420, %v2076
    %v2435 = vsel %vm2426, %v2421, %v2078
    %v2436 = vsel %vm2426, %v2422, %v2080
    %v2437 = vsel %vm2426, %v2423, %v2082
    %v2438 = vsel %vm2426, %v2424, %v2084
    %v2439 = vsel %vm2426, %v2425, %v2086
    %vm2440 = vcmask 293888
    %v2441 = vsel %vm2440, %v2427, %v2114
    %v2442 = vsel %vm2440, %v2428, %v2116
    %v2443 = vsel %vm2440, %v2429, %v2118
    %v2444 = vsel %vm2440, %v2430, %v2120
    %v2445 = vsel %vm2440, %v2431, %v2122
    %v2446 = vsel %vm2440, %v2432, %v2124
    %v2447 = vsel %vm2440, %v2433, %v2126
    %v2448 = vsel %vm2440, %v2434, %v2128
    %v2449 = vsel %vm2440, %v2435, %v2130
    %v2450 = vsel %vm2440, %v2436, %v2132
    %v2451 = vsel %vm2440, %v2437, %v2134
    %v2452 = vsel %vm2440, %v2438, %v2136
    %v2453 = vsel %vm2440, %v2439, %v2138
    %vm2454 = vcmask 392192
    %v2455 = vsel %vm2454, %v2441, %v2166
    %v2456 = vsel %vm2454, %v2442, %v2168
    %v2457 = vsel %vm2454, %v2443, %v2170
    %v2458 = vsel %vm2454, %v2444, %v2172
    %v2459 = vsel %vm2454, %v2445, %v2174
    %v2460 = vsel %vm2454, %v2446, %v2176
    %v2461 = vsel %vm2454, %v2447, %v2178
    %v2462 = vsel %vm2454, %v2448, %v2180
    %v2463 = vsel %vm2454, %v2449, %v2182
    %v2464 = vsel %vm2454, %v2450, %v2184
    %v2465 = vsel %vm2454, %v2451, %v2186
    %v2466 = vsel %vm2454, %v2452, %v2188
    %v2467 = vsel %vm2454, %v2453, %v2190
    %vm2468 = vcmask 490496
    %v2469 = vsel %vm2468, %v2455, %v2218
    %v2470 = vsel %vm2468, %v2456, %v2220
    %v2471 = vsel %vm2468, %v2457, %v2222
    %v2472 = vsel %vm2468, %v2458, %v2224
    %v2473 = vsel %vm2468, %v2459, %v2226
    %v2474 = vsel %vm2468, %v2460, %v2228
    %v2475 = vsel %vm2468, %v2461, %v2230
    %v2476 = vsel %vm2468, %v2462, %v2232
    %v2477 = vsel %vm2468, %v2463, %v2234
    %v2478 = vsel %vm2468, %v2464, %v2236
    %v2479 = vsel %vm2468, %v2465, %v2238
    %v2480 = vsel %vm2468, %v2466, %v2240
    %v2481 = vsel %vm2468, %v2467, %v2242
    %vm2482 = vcmask 588800
    %v2483 = vsel %vm2482, %v2469, %v2270
    %v2484 = vsel %vm2482, %v2470, %v2272
    %v2485 = vsel %vm2482, %v2471, %v2274
    %v2486 = vsel %vm2482, %v2472, %v2276
    %v2487 = vsel %vm2482, %v2473, %v2278
    %v2488 = vsel %vm2482, %v2474, %v2280
    %v2489 = vsel %vm2482, %v2475, %v2282
    %v2490 = vsel %vm2482, %v2476, %v2284
    %v2491 = vsel %vm2482, %v2477, %v2286
    %v2492 = vsel %vm2482, %v2478, %v2288
    %v2493 = vsel %vm2482, %v2479, %v2290
    %v2494 = vsel %vm2482, %v2480, %v2292
    %v2495 = vsel %vm2482, %v2481, %v2294
    %vm2496 = vcmask 687104
    %v2497 = vsel %vm2496, %v2483, %v2322
    %v2498 = vsel %vm2496, %v2484, %v2324
    %v2499 = vsel %vm2496, %v2485, %v2326
    %v2500 = vsel %vm2496, %v2486, %v2328
    %v2501 = vsel %vm2496, %v2487, %v2330
    %v2502 = vsel %vm2496, %v2488, %v2332
    %v2503 = vsel %vm2496, %v2489, %v2334
    %v2504 = vsel %vm2496, %v2490, %v2336
    %v2505 = vsel %vm2496, %v2491, %v2338
    %v2506 = vsel %vm2496, %v2492, %v2340
    %v2507 = vsel %vm2496, %v2493, %v2342
    %v2508 = vsel %vm2496, %v2494, %v2344
    %v2509 = vsel %vm2496, %v2495, %v2346
    %vm2510 = vcmask 785408
    %v2511 = vsel %vm2510, %v2497, %v2374
    %v2512 = vsel %vm2510, %v2498, %v2376
    %v2513 = vsel %vm2510, %v2499, %v2378
    %v2514 = vsel %vm2510, %v2500, %v2380
    %v2515 = vsel %vm2510, %v2501, %v2382
    %v2516 = vsel %vm2510, %v2502, %v2384
    %v2517 = vsel %vm2510, %v2503, %v2386
    %v2518 = vsel %vm2510, %v2504, %v2388
    %v2519 = vsel %vm2510, %v2505, %v2390
    %v2520 = vsel %vm2510, %v2506, %v2392
    %v2521 = vsel %vm2510, %v2507, %v2394
    %v2522 = vsel %vm2510, %v2508, %v2396
    %v2523 = vsel %vm2510, %v2509, %v2398
    %v2524 = vlaneseq
    %v2525 = vshrl.u32 %v2524, 7
    %v2526 = vsub.s32 0, %v2525
    %v2527 = vrot.slane %v36, %v2526
    %vm2528 = vcmask 883712
    %v2530 = vsel %vm2528, %v2511, 0
    %v2533 = vsel %vm2528, %v2512, 0
    %v2536 = vsel %vm2528, %v2513, 0
    %v2539 = vsel %vm2528, %v2514, 0
    %v2542 = vsel %vm2528, %v2515, 0
    %v2545 = vsel %vm2528, %v2516, 0
    %v2548 = vsel %vm2528, %v2517, 0
    %v2551 = vsel %vm2528, %v2518, 0
    %v2554 = vsel %vm2528, %v2519, 0
    %v2557 = vsel %vm2528, %v2520, 0
    %v2560 = vsel %vm2528, %v2521, 0
    %v2563 = vsel %vm2528, %v2522, 0
    %v2566 = vsel %vm2528, %v2523, 0
    %vm2568 = vcmask 1043456
    %v2570 = vsel %vm2568, %v989, 0
    %2572 = vmatprep.subr.mxu0 0.0
    %2573 = vmatpush1.msra.mxu0 %v976
    %2574 = vmatprep.subr.mxu0 0.0
    %2575 = vmatpush1.msra.mxu0 %v977
    %2576 = vmatprep.subr.mxu0 0.0
    %2577 = vmatpush1.msra.mxu0 %v978
    %2578 = vmatprep.subr.mxu0 0.0
    %2579 = vmatpush1.msra.mxu0 %v979
    %2580 = vmatprep.subr.mxu0 0.0
    %2581 = vmatpush1.msra.mxu0 %v980
    %2582 = vmatprep.subr.mxu0 0.0
    %2583 = vmatpush1.msra.mxu0 %v981
    %2584 = vmatprep.subr.mxu0 0.0
    %2585 = vmatpush1.msra.mxu0 %v982
    %2586 = vmatprep.subr.mxu0 0.0
    %2587 = vmatpush1.msra.mxu0 %v983
    %2588 = vmatprep.subr.mxu0 0.0
    %2589 = vmatpush1.msra.mxu0 %v984
    %2590 = vmatprep.subr.mxu0 0.0
    %2591 = vmatpush1.msra.mxu0 %v985
    %2592 = vmatprep.subr.mxu0 0.0
    %2593 = vmatpush1.msra.mxu0 %v986
    %2594 = vmatprep.subr.mxu0 0.0
    %2595 = vmatpush1.msra.mxu0 %v987
    %2596 = vmatprep.subr.mxu0 0.0
    %2597 = vmatpush1.msra.mxu0 %v988
    %2598 = vmatprep.subr.mxu0 0.0
    %2599 = vmatpush1.msra.mxu0 %v2570
    %2600 = vmatprep.subr.mxu0 0.0
    %2601 = vmatpush1.msra.mxu0 0.0
    %2602 = vmatprep.subr.mxu0 0.0
    %2603 = vmatpush1.msra.mxu0 0.0
    %2604 = vmatprep.subr.mxu0 0.0
    %2605 = vmatpush1.msra.mxu0 0.0
    %2606 = vmatprep.subr.mxu0 0.0
    %2607 = vmatpush1.msra.mxu0 0.0
    %2608 = vmatprep.subr.mxu0 0.0
    %2609 = vmatpush1.msra.mxu0 0.0
    %2610 = vmatprep.subr.mxu0 0.0
    %2611 = vmatpush1.msra.mxu0 0.0
    %2612 = vmatprep.subr.mxu0 0.0
    %2613 = vmatpush1.msra.mxu0 0.0
    %2614 = vmatprep.subr.mxu0 0.0
    %2615 = vmatpush1.msra.mxu0 0.0
    %2616 = vmatprep.subr.mxu0 0.0
    %2617 = vmatpush1.msra.mxu0 0.0
    %2618 = vmatprep.subr.mxu0 0.0
    %2619 = vmatpush1.msra.mxu0 0.0
    %2620 = vmatprep.subr.mxu0 0.0
    %2621 = vmatpush1.msra.mxu0 0.0
    %2622 = vmatprep.subr.mxu0 0.0
    %2623 = vmatpush1.msra.mxu0 0.0
    %2624 = vmatprep.subr.mxu0 0.0
    %2625 = vmatpush1.msra.mxu0 0.0
    %2626 = vmatprep.subr.mxu0 0.0
    %2627 = vmatpush1.msra.mxu0 0.0
    %2628 = vmatprep.subr.mxu0 0.0
    %2629 = vmatpush1.msra.mxu0 0.0
    %2630 = vmatprep.subr.mxu0 0.0
    %2631 = vmatpush1.msra.mxu0 0.0
    %2632 = vmatprep.subr.mxu0 0.0
    %2633 = vmatpush1.msra.mxu0 0.0
    %2634 = vmatprep.subr.mxu0 0.0
    %2635 = vmatpush1.msra.mxu0 0.0
    %2636 = vmatprep.mubr.f32.mxu0 0.0
    %2637 = vmatmul.mubr.f32.gmra.mrb[0].mxu0 %v2530
    %v2638 = vpop.f32.mrb[0].mxu0
    %v2639 = vadd.f32 %v2527, %v2638
    %v2640 = vpop.f32.mrb[0].mxu0
    %2641 = vmatprep.mubr.f32.mxu0 0.0
    %2642 = vmatmul.mubr.f32.gmra.mrb[0].mxu0 %v2533
    %v2643 = vpop.f32.mrb[0].mxu0
    %v2644 = vadd.f32 %v2527, %v2643
    %v2645 = vpop.f32.mrb[0].mxu0
    %2646 = vmatprep.mubr.f32.mxu0 0.0
    %2647 = vmatmul.mubr.f32.gmra.mrb[0].mxu0 %v2536
    %v2648 = vpop.f32.mrb[0].mxu0
    %v2649 = vadd.f32 %v2527, %v2648
    %v2650 = vpop.f32.mrb[0].mxu0
    %2651 = vmatprep.mubr.f32.mxu0 0.0
    %2652 = vmatmul.mubr.f32.gmra.mrb[0].mxu0 %v2539
    %v2653 = vpop.f32.mrb[0].mxu0
    %v2654 = vadd.f32 %v2527, %v2653
    %v2655 = vpop.f32.mrb[0].mxu0
    %2656 = vmatprep.mubr.f32.mxu0 0.0
    %2657 = vmatmul.mubr.f32.gmra.mrb[0].mxu0 %v2542
    %v2658 = vpop.f32.mrb[0].mxu0
    %v2659 = vadd.f32 %v2527, %v2658
    %v2660 = vpop.f32.mrb[0].mxu0
    %2661 = vmatprep.mubr.f32.mxu0 0.0
    %2662 = vmatmul.mubr.f32.gmra.mrb[0].mxu0 %v2545
    %v2663 = vpop.f32.mrb[0].mxu0
    %v2664 = vadd.f32 %v2527, %v2663
    %v2665 = vpop.f32.mrb[0].mxu0
    %2666 = vmatprep.mubr.f32.mxu0 0.0
    %2667 = vmatmul.mubr.f32.gmra.mrb[0].mxu0 %v2548
    %v2668 = vpop.f32.mrb[0].mxu0
    %v2669 = vadd.f32 %v2527, %v2668
    %v2670 = vpop.f32.mrb[0].mxu0
    %2671 = vmatprep.mubr.f32.mxu0 0.0
    %2672 = vmatmul.mubr.f32.gmra.mrb[0].mxu0 %v2551
    %v2673 = vpop.f32.mrb[0].mxu0
    %v2674 = vadd.f32 %v2527, %v2673
    %v2675 = vpop.f32.mrb[0].mxu0
    %2676 = vmatprep.mubr.f32.mxu0 0.0
    %2677 = vmatmul.mubr.f32.gmra.mrb[0].mxu0 %v2554
    %v2678 = vpop.f32.mrb[0].mxu0
    %v2679 = vadd.f32 %v2527, %v2678
    %v2680 = vpop.f32.mrb[0].mxu0
    %2681 = vmatprep.mubr.f32.mxu0 0.0
    %2682 = vmatmul.mubr.f32.gmra.mrb[0].mxu0 %v2557
    %v2683 = vpop.f32.mrb[0].mxu0
    %v2684 = vadd.f32 %v2527, %v2683
    %v2685 = vpop.f32.mrb[0].mxu0
    %2686 = vmatprep.mubr.f32.mxu0 0.0
    %2687 = vmatmul.mubr.f32.gmra.mrb[0].mxu0 %v2560
    %v2688 = vpop.f32.mrb[0].mxu0
    %v2689 = vadd.f32 %v2527, %v2688
    %v2690 = vpop.f32.mrb[0].mxu0
    %2691 = vmatprep.mubr.f32.mxu0 0.0
    %2692 = vmatmul.mubr.f32.gmra.mrb[0].mxu0 %v2563
    %v2693 = vpop.f32.mrb[0].mxu0
    %v2694 = vadd.f32 %v2527, %v2693
    %v2695 = vpop.f32.mrb[0].mxu0
    %2696 = vmatprep.mubr.f32.mxu0 0.0
    %2697 = vmatmul.mubr.f32.gmra.mrb[0].mxu0 %v2566
    %v2698 = vpop.f32.mrb[0].mxu0
    %v2699 = vadd.f32 %v2527, %v2698
    %v2700 = vpop.f32.mrb[0].mxu0
    %2701 = vdwg.mxu0
    %vm2702 = vcmp.ge.f32.partialorder %v2639, 0.0
    %vm2703 = vcmp.ge.f32.partialorder %v2644, 0.0
    %vm2704 = vcmp.ge.f32.partialorder %v2649, 0.0
    %vm2705 = vcmp.ge.f32.partialorder %v2654, 0.0
    %vm2706 = vcmp.ge.f32.partialorder %v2659, 0.0
    %vm2707 = vcmp.ge.f32.partialorder %v2664, 0.0
    %vm2708 = vcmp.ge.f32.partialorder %v2669, 0.0
    %vm2709 = vcmp.ge.f32.partialorder %v2674, 0.0
    %vm2710 = vcmp.ge.f32.partialorder %v2679, 0.0
    %vm2711 = vcmp.ge.f32.partialorder %v2684, 0.0
    %vm2712 = vcmp.ge.f32.partialorder %v2689, 0.0
    %vm2713 = vcmp.ge.f32.partialorder %v2694, 0.0
    %vm2714 = vcmp.ge.f32.partialorder %v2699, 0.0
    %v2715 = vmul.f32 %v2639, 0.01
    %v2716 = vmul.f32 %v2644, 0.01
    %v2717 = vmul.f32 %v2649, 0.01
    %v2718 = vmul.f32 %v2654, 0.01
    %v2719 = vmul.f32 %v2659, 0.01
    %v2720 = vmul.f32 %v2664, 0.01
    %v2721 = vmul.f32 %v2669, 0.01
    %v2722 = vmul.f32 %v2674, 0.01
    %v2723 = vmul.f32 %v2679, 0.01
    %v2724 = vmul.f32 %v2684, 0.01
    %v2725 = vmul.f32 %v2689, 0.01
    %v2726 = vmul.f32 %v2694, 0.01
    %v2727 = vmul.f32 %v2699, 0.01
    %v2728 = vsel %vm2702, %v2639, %v2715
    %v2729 = vsel %vm2703, %v2644, %v2716
    %v2730 = vsel %vm2704, %v2649, %v2717
    %v2731 = vsel %vm2705, %v2654, %v2718
    %v2732 = vsel %vm2706, %v2659, %v2719
    %v2733 = vsel %vm2707, %v2664, %v2720
    %v2734 = vsel %vm2708, %v2669, %v2721
    %v2735 = vsel %vm2709, %v2674, %v2722
    %v2736 = vsel %vm2710, %v2679, %v2723
    %v2737 = vsel %vm2711, %v2684, %v2724
    %v2738 = vsel %vm2712, %v2689, %v2725
    %v2739 = vsel %vm2713, %v2694, %v2726
    %v2740 = vsel %vm2714, %v2699, %v2727
    %vm2741 = vcmask 64512
    %v2742 = vsel %vm2741, %v2728, 0.0
    %v2743 = vsel %vm2741, %v2729, 0.0
    %v2744 = vadd.f32 %v2742, %v2743
    %v2745 = vsel %vm2741, %v2730, 0.0
    %v2746 = vadd.f32 %v2744, %v2745
    %v2747 = vsel %vm2741, %v2731, 0.0
    %v2748 = vadd.f32 %v2746, %v2747
    %v2749 = vsel %vm2741, %v2732, 0.0
    %v2750 = vadd.f32 %v2748, %v2749
    %v2751 = vsel %vm2741, %v2733, 0.0
    %v2752 = vadd.f32 %v2750, %v2751
    %v2753 = vsel %vm2741, %v2734, 0.0
    %v2754 = vadd.f32 %v2752, %v2753
    %v2755 = vsel %vm2741, %v2735, 0.0
    %v2756 = vadd.f32 %v2754, %v2755
    %v2757 = vsel %vm2741, %v2736, 0.0
    %v2758 = vadd.f32 %v2756, %v2757
    %v2759 = vsel %vm2741, %v2737, 0.0
    %v2760 = vadd.f32 %v2758, %v2759
    %v2761 = vsel %vm2741, %v2738, 0.0
    %v2762 = vadd.f32 %v2760, %v2761
    %v2763 = vsel %vm2741, %v2739, 0.0
    %v2764 = vadd.f32 %v2762, %v2763
    %vm2765 = vcmask 58368
    %v2766 = vsel %vm2765, %v2740, 0.0
    %v2767 = vadd.f32 %v2764, %v2766
    %v2768 = vrot.slane %v2767, 4
    %v2769 = vadd.f32 %v2767, %v2768
    %v2770 = vrot.slane %v2769, 2
    %v2771 = vadd.f32 %v2769, %v2770
    %v2772 = vrot.slane %v2771, 1
    %v2773 = vadd.f32 %v2771, %v2772
    %v2774 = vmul.f32 %v2728, %v2728
    %v2775 = vmul.f32 %v2729, %v2729
    %v2776 = vmul.f32 %v2730, %v2730
    %v2777 = vmul.f32 %v2731, %v2731
    %v2778 = vmul.f32 %v2732, %v2732
    %v2779 = vmul.f32 %v2733, %v2733
    %v2780 = vmul.f32 %v2734, %v2734
    %v2781 = vmul.f32 %v2735, %v2735
    %v2782 = vmul.f32 %v2736, %v2736
    %v2783 = vmul.f32 %v2737, %v2737
    %v2784 = vmul.f32 %v2738, %v2738
    %v2785 = vmul.f32 %v2739, %v2739
    %v2786 = vmul.f32 %v2740, %v2740
    %v2787 = vsel %vm2741, %v2774, 0.0
    %v2788 = vsel %vm2741, %v2775, 0.0
    %v2789 = vadd.f32 %v2787, %v2788
    %v2790 = vsel %vm2741, %v2776, 0.0
    %v2791 = vadd.f32 %v2789, %v2790
    %v2792 = vsel %vm2741, %v2777, 0.0
    %v2793 = vadd.f32 %v2791, %v2792
    %v2794 = vsel %vm2741, %v2778, 0.0
    %v2795 = vadd.f32 %v2793, %v2794
    %v2796 = vsel %vm2741, %v2779, 0.0
    %v2797 = vadd.f32 %v2795, %v2796
    %v2798 = vsel %vm2741, %v2780, 0.0
    %v2799 = vadd.f32 %v2797, %v2798
    %v2800 = vsel %vm2741, %v2781, 0.0
    %v2801 = vadd.f32 %v2799, %v2800
    %v2802 = vsel %vm2741, %v2782, 0.0
    %v2803 = vadd.f32 %v2801, %v2802
    %v2804 = vsel %vm2741, %v2783, 0.0
    %v2805 = vadd.f32 %v2803, %v2804
    %v2806 = vsel %vm2741, %v2784, 0.0
    %v2807 = vadd.f32 %v2805, %v2806
    %v2808 = vsel %vm2741, %v2785, 0.0
    %v2809 = vadd.f32 %v2807, %v2808
    %v2810 = vsel %vm2765, %v2786, 0.0
    %v2811 = vadd.f32 %v2809, %v2810
    %v2812 = vrot.slane %v2811, 4
    %v2813 = vadd.f32 %v2811, %v2812
    %v2814 = vrot.slane %v2813, 2
    %v2815 = vadd.f32 %v2813, %v2814
    %v2816 = vrot.slane %v2815, 1
    %v2817 = vadd.f32 %v2815, %v2816
    %v2818 = vmul.f32 %v2773, 0.010204081
    %v2819 = vmul.f32 %v2817, 0.010204081
    %v2820 = vmul.f32 %v2818, %v2818
    %v2821 = vsub.f32 %v2819, %v2820
    %v2822 = vadd.f32 %v2821, 1e-05
    %v2823 = vrsqrt.pop %v2822
    %v2824 = vmul.f32 %v36, %v2823
    %v2825 = vlaneseq
    %v2826 = vshrl.u32 %v2825, 7
    %v2827 = vsub.s32 1, %v2826
    %v2828 = vrot.slane %v2824, %v2827
    %v2829 = vmul.f32 %v2728, %v2828
    %v2830 = vmul.f32 %v2729, %v2828
    %v2831 = vmul.f32 %v2730, %v2828
    %v2832 = vmul.f32 %v2731, %v2828
    %v2833 = vmul.f32 %v2732, %v2828
    %v2834 = vmul.f32 %v2733, %v2828
    %v2835 = vmul.f32 %v2734, %v2828
    %v2836 = vmul.f32 %v2735, %v2828
    %v2837 = vmul.f32 %v2736, %v2828
    %v2838 = vmul.f32 %v2737, %v2828
    %v2839 = vmul.f32 %v2738, %v2828
    %v2840 = vmul.f32 %v2739, %v2828
    %v2841 = vmul.f32 %v2740, %v2828
    %v2842 = vmul.f32 %v2818, %v2824
    %v2844 = vrot.slane %v2842, 7
    %v2846 = vsub.f32 %v36, %v2844
    %v2847 = vlaneseq
    %v2848 = vshrl.u32 %v2847, 7
    %v2849 = vsub.s32 2, %v2848
    %v2850 = vrot.slane %v2846, %v2849
    %v2851 = vadd.f32 %v2829, %v2850
    %v2852 = vadd.f32 %v2830, %v2850
    %v2853 = vadd.f32 %v2831, %v2850
    %v2854 = vadd.f32 %v2832, %v2850
    %v2855 = vadd.f32 %v2833, %v2850
    %v2856 = vadd.f32 %v2834, %v2850
    %v2857 = vadd.f32 %v2835, %v2850
    %v2858 = vadd.f32 %v2836, %v2850
    %v2859 = vadd.f32 %v2837, %v2850
    %v2860 = vadd.f32 %v2838, %v2850
    %v2861 = vadd.f32 %v2839, %v2850
    %v2862 = vadd.f32 %v2840, %v2850
    %v2863 = vadd.f32 %v2841, %v2850
    %2864 = vset.pattern.permute.xlu0 1
    %2865 = vperm.xlu0 %2864, %v37
    %v2866 = vpop.permute.xlu0 %2865
    %2867 = vset.pattern.permute.xlu0 1
    %2868 = vperm.xlu0 %2867, %v38
    %v2869 = vpop.permute.xlu0 %2868
    %2870 = vset.pattern.permute.xlu0 1
    %2871 = vperm.xlu0 %2870, %v39
    %v2872 = vpop.permute.xlu0 %2871
    %2873 = vset.pattern.permute.xlu0 1
    %2874 = vperm.xlu0 %2873, %v40
    %v2875 = vpop.permute.xlu0 %2874
    %2876 = vset.pattern.permute.xlu0 1
    %2877 = vperm.xlu0 %2876, %v41
    %v2878 = vpop.permute.xlu0 %2877
    %2879 = vset.pattern.permute.xlu0 1
    %2880 = vperm.xlu0 %2879, %v42
    %v2881 = vpop.permute.xlu0 %2880
    %2882 = vset.pattern.permute.xlu0 1
    %2883 = vperm.xlu0 %2882, %v43
    %v2884 = vpop.permute.xlu0 %2883
    %2885 = vset.pattern.permute.xlu0 1
    %2886 = vperm.xlu0 %2885, %v44
    %v2887 = vpop.permute.xlu0 %2886
    %2888 = vset.pattern.permute.xlu0 1
    %2889 = vperm.xlu0 %2888, %v45
    %v2890 = vpop.permute.xlu0 %2889
    %2891 = vset.pattern.permute.xlu0 1
    %2892 = vperm.xlu0 %2891, %v46
    %v2893 = vpop.permute.xlu0 %2892
    %2894 = vset.pattern.permute.xlu0 1
    %2895 = vperm.xlu0 %2894, %v47
    %v2896 = vpop.permute.xlu0 %2895
    %2897 = vset.pattern.permute.xlu0 1
    %2898 = vperm.xlu0 %2897, %v48
    %v2899 = vpop.permute.xlu0 %2898
    %2900 = vset.pattern.permute.xlu0 1
    %2901 = vperm.xlu0 %2900, %v49
    %v2902 = vpop.permute.xlu0 %2901
    %2903 = vset.pattern.permute.xlu0 1
    %2904 = vperm.xlu0 %2903, %v50
    %v2905 = vpop.permute.xlu0 %2904
    %2906 = vset.pattern.permute.xlu0 1
    %2907 = vperm.xlu0 %2906, %v51
    %v2908 = vpop.permute.xlu0 %2907
    %2909 = vset.pattern.permute.xlu0 1
    %2910 = vperm.xlu0 %2909, %v52
    %v2911 = vpop.permute.xlu0 %2910
    %2912 = vset.pattern.permute.xlu0 1
    %2913 = vperm.xlu0 %2912, %v53
    %v2914 = vpop.permute.xlu0 %2913
    %2915 = vset.pattern.permute.xlu0 1
    %2916 = vperm.xlu0 %2915, %v54
    %v2917 = vpop.permute.xlu0 %2916
    %2918 = vset.pattern.permute.xlu0 1
    %2919 = vperm.xlu0 %2918, %v55
    %v2920 = vpop.permute.xlu0 %2919
    %2921 = vset.pattern.permute.xlu0 1
    %2922 = vperm.xlu0 %2921, %v56
    %v2923 = vpop.permute.xlu0 %2922
    %2924 = vset.pattern.permute.xlu0 1
    %2925 = vperm.xlu0 %2924, %v57
    %v2926 = vpop.permute.xlu0 %2925
    %2927 = vset.pattern.permute.xlu0 1
    %2928 = vperm.xlu0 %2927, %v58
    %v2929 = vpop.permute.xlu0 %2928
    %2930 = vset.pattern.permute.xlu0 1
    %2931 = vperm.xlu0 %2930, %v59
    %v2932 = vpop.permute.xlu0 %2931
    %2933 = vset.pattern.permute.xlu0 1
    %2934 = vperm.xlu0 %2933, %v60
    %v2935 = vpop.permute.xlu0 %2934
    %2936 = vset.pattern.permute.xlu0 1
    %2937 = vperm.xlu0 %2936, %v61
    %v2938 = vpop.permute.xlu0 %2937
    %2939 = vset.pattern.permute.xlu0 1
    %2940 = vperm.xlu0 %2939, %v62
    %v2941 = vpop.permute.xlu0 %2940
    %2942 = vset.pattern.permute.xlu0 1
    %2943 = vperm.xlu0 %2942, %v63
    %v2944 = vpop.permute.xlu0 %2943
    %2945 = vset.pattern.permute.xlu0 1
    %2946 = vperm.xlu0 %2945, %v64
    %v2947 = vpop.permute.xlu0 %2946
    %2948 = vset.pattern.permute.xlu0 1
    %2949 = vperm.xlu0 %2948, %v65
    %v2950 = vpop.permute.xlu0 %2949
    %2951 = vset.pattern.permute.xlu0 1
    %2952 = vperm.xlu0 %2951, %v66
    %v2953 = vpop.permute.xlu0 %2952
    %2954 = vset.pattern.permute.xlu0 1
    %2955 = vperm.xlu0 %2954, %v67
    %v2956 = vpop.permute.xlu0 %2955
    %2957 = vset.pattern.permute.xlu0 1
    %2958 = vperm.xlu0 %2957, %v68
    %v2959 = vpop.permute.xlu0 %2958
    %2960 = vset.pattern.permute.xlu0 1
    %2961 = vperm.xlu0 %2960, %v69
    %v2962 = vpop.permute.xlu0 %2961
    %2963 = vset.pattern.permute.xlu0 1
    %2964 = vperm.xlu0 %2963, %v70
    %v2965 = vpop.permute.xlu0 %2964
    %2966 = vset.pattern.permute.xlu0 1
    %2967 = vperm.xlu0 %2966, %v71
    %v2968 = vpop.permute.xlu0 %2967
    %2969 = vset.pattern.permute.xlu0 1
    %2970 = vperm.xlu0 %2969, %v72
    %v2971 = vpop.permute.xlu0 %2970
    %2972 = vset.pattern.permute.xlu0 1
    %2973 = vperm.xlu0 %2972, %v73
    %v2974 = vpop.permute.xlu0 %2973
    %2975 = vset.pattern.permute.xlu0 1
    %2976 = vperm.xlu0 %2975, %v74
    %v2977 = vpop.permute.xlu0 %2976
    %2978 = vset.pattern.permute.xlu0 1
    %2979 = vperm.xlu0 %2978, %v75
    %v2980 = vpop.permute.xlu0 %2979
    %2981 = vset.pattern.permute.xlu0 1
    %2982 = vperm.xlu0 %2981, %v76
    %v2983 = vpop.permute.xlu0 %2982
    %2984 = vset.pattern.permute.xlu0 1
    %2985 = vperm.xlu0 %2984, %v77
    %v2986 = vpop.permute.xlu0 %2985
    %2987 = vset.pattern.permute.xlu0 1
    %2988 = vperm.xlu0 %2987, %v78
    %v2989 = vpop.permute.xlu0 %2988
    %2990 = vset.pattern.permute.xlu0 1
    %2991 = vperm.xlu0 %2990, %v79
    %v2992 = vpop.permute.xlu0 %2991
    %2993 = vset.pattern.permute.xlu0 1
    %2994 = vperm.xlu0 %2993, %v80
    %v2995 = vpop.permute.xlu0 %2994
    %2996 = vset.pattern.permute.xlu0 1
    %2997 = vperm.xlu0 %2996, %v81
    %v2998 = vpop.permute.xlu0 %2997
    %2999 = vset.pattern.permute.xlu0 1
    %3000 = vperm.xlu0 %2999, %v82
    %v3001 = vpop.permute.xlu0 %3000
    %3002 = vset.pattern.permute.xlu0 1
    %3003 = vperm.xlu0 %3002, %v83
    %v3004 = vpop.permute.xlu0 %3003
    %3005 = vset.pattern.permute.xlu0 1
    %3006 = vperm.xlu0 %3005, %v84
    %v3007 = vpop.permute.xlu0 %3006
    %3008 = vset.pattern.permute.xlu0 1
    %3009 = vperm.xlu0 %3008, %v85
    %v3010 = vpop.permute.xlu0 %3009
    %3011 = vset.pattern.permute.xlu0 1
    %3012 = vperm.xlu0 %3011, %v86
    %v3013 = vpop.permute.xlu0 %3012
    %3014 = vset.pattern.permute.xlu0 1
    %3015 = vperm.xlu0 %3014, %v87
    %v3016 = vpop.permute.xlu0 %3015
    %3017 = vset.pattern.permute.xlu0 1
    %3018 = vperm.xlu0 %3017, %v88
    %v3019 = vpop.permute.xlu0 %3018
    %3020 = vset.pattern.permute.xlu0 1
    %3021 = vperm.xlu0 %3020, %v89
    %v3022 = vpop.permute.xlu0 %3021
    %3023 = vset.pattern.permute.xlu0 1
    %3024 = vperm.xlu0 %3023, %v90
    %v3025 = vpop.permute.xlu0 %3024
    %3026 = vset.pattern.permute.xlu0 1
    %3027 = vperm.xlu0 %3026, %v91
    %v3028 = vpop.permute.xlu0 %3027
    %3029 = vset.pattern.permute.xlu0 1
    %3030 = vperm.xlu0 %3029, %v92
    %v3031 = vpop.permute.xlu0 %3030
    %3032 = vset.pattern.permute.xlu0 1
    %3033 = vperm.xlu0 %3032, %v93
    %v3034 = vpop.permute.xlu0 %3033
    %3035 = vset.pattern.permute.xlu0 1
    %3036 = vperm.xlu0 %3035, %v94
    %v3037 = vpop.permute.xlu0 %3036
    %3038 = vset.pattern.permute.xlu0 1
    %3039 = vperm.xlu0 %3038, %v95
    %v3040 = vpop.permute.xlu0 %3039
    %3041 = vset.pattern.permute.xlu0 1
    %3042 = vperm.xlu0 %3041, %v96
    %v3043 = vpop.permute.xlu0 %3042
    %3044 = vset.pattern.permute.xlu0 1
    %3045 = vperm.xlu0 %3044, %v97
    %v3046 = vpop.permute.xlu0 %3045
    %3047 = vset.pattern.permute.xlu0 1
    %3048 = vperm.xlu0 %3047, %v98
    %v3049 = vpop.permute.xlu0 %3048
    %3050 = vset.pattern.permute.xlu0 1
    %3051 = vperm.xlu0 %3050, %v99
    %v3052 = vpop.permute.xlu0 %3051
    %3053 = vset.pattern.permute.xlu0 1
    %3054 = vperm.xlu0 %3053, %v100
    %v3055 = vpop.permute.xlu0 %3054
    %3056 = vset.pattern.permute.xlu0 1
    %3057 = vperm.xlu0 %3056, %v101
    %v3058 = vpop.permute.xlu0 %3057
    %3059 = vset.pattern.permute.xlu0 1
    %3060 = vperm.xlu0 %3059, %v102
    %v3061 = vpop.permute.xlu0 %3060
    %3062 = vset.pattern.permute.xlu0 1
    %3063 = vperm.xlu0 %3062, %v103
    %v3064 = vpop.permute.xlu0 %3063
    %3065 = vset.pattern.permute.xlu0 1
    %3066 = vperm.xlu0 %3065, %v104
    %v3067 = vpop.permute.xlu0 %3066
    %3068 = vset.pattern.permute.xlu0 1
    %3069 = vperm.xlu0 %3068, %v105
    %v3070 = vpop.permute.xlu0 %3069
    %3071 = vset.pattern.permute.xlu0 1
    %3072 = vperm.xlu0 %3071, %v106
    %v3073 = vpop.permute.xlu0 %3072
    %3074 = vset.pattern.permute.xlu0 1
    %3075 = vperm.xlu0 %3074, %v107
    %v3076 = vpop.permute.xlu0 %3075
    %3077 = vset.pattern.permute.xlu0 1
    %3078 = vperm.xlu0 %3077, %v108
    %v3079 = vpop.permute.xlu0 %3078
    %3080 = vset.pattern.permute.xlu0 1
    %3081 = vperm.xlu0 %3080, %v109
    %v3082 = vpop.permute.xlu0 %3081
    %3083 = vset.pattern.permute.xlu0 1
    %3084 = vperm.xlu0 %3083, %v110
    %v3085 = vpop.permute.xlu0 %3084
    %3086 = vset.pattern.permute.xlu0 1
    %3087 = vperm.xlu0 %3086, %v111
    %v3088 = vpop.permute.xlu0 %3087
    %3089 = vset.pattern.permute.xlu0 1
    %3090 = vperm.xlu0 %3089, %v112
    %v3091 = vpop.permute.xlu0 %3090
    %3092 = vset.pattern.permute.xlu0 1
    %3093 = vperm.xlu0 %3092, %v113
    %v3094 = vpop.permute.xlu0 %3093
    %3095 = vset.pattern.permute.xlu0 1
    %3096 = vperm.xlu0 %3095, %v114
    %v3097 = vpop.permute.xlu0 %3096
    %3098 = vset.pattern.permute.xlu0 1
    %3099 = vperm.xlu0 %3098, %v115
    %v3100 = vpop.permute.xlu0 %3099
    %3101 = vset.pattern.permute.xlu0 1
    %3102 = vperm.xlu0 %3101, %v116
    %v3103 = vpop.permute.xlu0 %3102
    %3104 = vset.pattern.permute.xlu0 1
    %3105 = vperm.xlu0 %3104, %v117
    %v3106 = vpop.permute.xlu0 %3105
    %3107 = vset.pattern.permute.xlu0 1
    %3108 = vperm.xlu0 %3107, %v118
    %v3109 = vpop.permute.xlu0 %3108
    %3110 = vset.pattern.permute.xlu0 1
    %3111 = vperm.xlu0 %3110, %v119
    %v3112 = vpop.permute.xlu0 %3111
    %3113 = vset.pattern.permute.xlu0 1
    %3114 = vperm.xlu0 %3113, %v120
    %v3115 = vpop.permute.xlu0 %3114
    %3116 = vset.pattern.permute.xlu0 1
    %3117 = vperm.xlu0 %3116, %v121
    %v3118 = vpop.permute.xlu0 %3117
    %3119 = vset.pattern.permute.xlu0 1
    %3120 = vperm.xlu0 %3119, %v122
    %v3121 = vpop.permute.xlu0 %3120
    %3122 = vset.pattern.permute.xlu0 1
    %3123 = vperm.xlu0 %3122, %v123
    %v3124 = vpop.permute.xlu0 %3123
    %3125 = vset.pattern.permute.xlu0 1
    %3126 = vperm.xlu0 %3125, %v124
    %v3127 = vpop.permute.xlu0 %3126
    %3128 = vset.pattern.permute.xlu0 1
    %3129 = vperm.xlu0 %3128, %v125
    %v3130 = vpop.permute.xlu0 %3129
    %3131 = vset.pattern.permute.xlu0 1
    %3132 = vperm.xlu0 %3131, %v126
    %v3133 = vpop.permute.xlu0 %3132
    %3134 = vset.pattern.permute.xlu0 1
    %3135 = vperm.xlu0 %3134, %v127
    %v3136 = vpop.permute.xlu0 %3135
    %3137 = vset.pattern.permute.xlu0 1
    %3138 = vperm.xlu0 %3137, %v128
    %v3139 = vpop.permute.xlu0 %3138
    %3140 = vset.pattern.permute.xlu0 1
    %3141 = vperm.xlu0 %3140, %v129
    %v3142 = vpop.permute.xlu0 %3141
    %3143 = vset.pattern.permute.xlu0 1
    %3144 = vperm.xlu0 %3143, %v130
    %v3145 = vpop.permute.xlu0 %3144
    %3146 = vset.pattern.permute.xlu0 1
    %3147 = vperm.xlu0 %3146, %v131
    %v3148 = vpop.permute.xlu0 %3147
    %3149 = vset.pattern.permute.xlu0 1
    %3150 = vperm.xlu0 %3149, %v132
    %v3151 = vpop.permute.xlu0 %3150
    %3152 = vset.pattern.permute.xlu0 1
    %3153 = vperm.xlu0 %3152, %v133
    %v3154 = vpop.permute.xlu0 %3153
    %3155 = vset.pattern.permute.xlu0 1
    %3156 = vperm.xlu0 %3155, %v134
    %v3157 = vpop.permute.xlu0 %3156
    %3158 = vset.pattern.permute.xlu0 1
    %3159 = vperm.xlu0 %3158, %v135
    %v3160 = vpop.permute.xlu0 %3159
    %3161 = vset.pattern.permute.xlu0 1
    %3162 = vperm.xlu0 %3161, %v136
    %v3163 = vpop.permute.xlu0 %3162
    %3164 = vset.pattern.permute.xlu0 1
    %3165 = vperm.xlu0 %3164, %v137
    %v3166 = vpop.permute.xlu0 %3165
    %3167 = vset.pattern.permute.xlu0 1
    %3168 = vperm.xlu0 %3167, %v138
    %v3169 = vpop.permute.xlu0 %3168
    %3170 = vset.pattern.permute.xlu0 1
    %3171 = vperm.xlu0 %3170, %v139
    %v3172 = vpop.permute.xlu0 %3171
    %3173 = vset.pattern.permute.xlu0 1
    %3174 = vperm.xlu0 %3173, %v140
    %v3175 = vpop.permute.xlu0 %3174
    %3176 = vset.pattern.permute.xlu0 1
    %3177 = vperm.xlu0 %3176, %v141
    %v3178 = vpop.permute.xlu0 %3177
    %3179 = vset.pattern.permute.xlu0 1
    %3180 = vperm.xlu0 %3179, %v142
    %v3181 = vpop.permute.xlu0 %3180
    %3182 = vset.pattern.permute.xlu0 1
    %3183 = vperm.xlu0 %3182, %v143
    %v3184 = vpop.permute.xlu0 %3183
    %3185 = vset.pattern.permute.xlu0 1
    %3186 = vperm.xlu0 %3185, %v144
    %v3187 = vpop.permute.xlu0 %3186
    %3188 = vset.pattern.permute.xlu0 1
    %3189 = vperm.xlu0 %3188, %v145
    %v3190 = vpop.permute.xlu0 %3189
    %3191 = vset.pattern.permute.xlu0 1
    %3192 = vperm.xlu0 %3191, %v146
    %v3193 = vpop.permute.xlu0 %3192
    %3194 = vset.pattern.permute.xlu0 1
    %3195 = vperm.xlu0 %3194, %v147
    %v3196 = vpop.permute.xlu0 %3195
    %3197 = vset.pattern.permute.xlu0 1
    %3198 = vperm.xlu0 %3197, %v148
    %v3199 = vpop.permute.xlu0 %3198
    %3200 = vset.pattern.permute.xlu0 1
    %3201 = vperm.xlu0 %3200, %v149
    %v3202 = vpop.permute.xlu0 %3201
    %3203 = vset.pattern.permute.xlu0 1
    %3204 = vperm.xlu0 %3203, %v150
    %v3205 = vpop.permute.xlu0 %3204
    %3206 = vset.pattern.permute.xlu0 1
    %3207 = vperm.xlu0 %3206, %v151
    %v3208 = vpop.permute.xlu0 %3207
    %3209 = vset.pattern.permute.xlu0 1
    %3210 = vperm.xlu0 %3209, %v152
    %v3211 = vpop.permute.xlu0 %3210
    %3212 = vset.pattern.permute.xlu0 1
    %3213 = vperm.xlu0 %3212, %v153
    %v3214 = vpop.permute.xlu0 %3213
    %vm3215 = vcmp.eq.s32.totalorder %v155, %v2866
    %vm3216 = vcmp.eq.s32.totalorder %v155, %v2869
    %vm3217 = vcmp.eq.s32.totalorder %v155, %v2872
    %vm3218 = vcmp.eq.s32.totalorder %v155, %v2875
    %vm3219 = vcmp.eq.s32.totalorder %v155, %v2878
    %vm3220 = vcmp.eq.s32.totalorder %v155, %v2881
    %vm3221 = vcmp.eq.s32.totalorder %v155, %v2884
    %vm3222 = vcmp.eq.s32.totalorder %v155, %v2887
    %vm3223 = vcmp.eq.s32.totalorder %v155, %v2890
    %vm3224 = vcmp.eq.s32.totalorder %v155, %v2893
    %vm3225 = vcmp.eq.s32.totalorder %v155, %v2896
    %vm3226 = vcmp.eq.s32.totalorder %v155, %v2899
    %vm3227 = vcmp.eq.s32.totalorder %v155, %v2902
    %vm3228 = vcmp.eq.s32.totalorder %v155, %v2905
    %vm3229 = vcmp.eq.s32.totalorder %v155, %v2908
    %vm3230 = vcmp.eq.s32.totalorder %v155, %v2911
    %vm3231 = vcmp.eq.s32.totalorder %v155, %v2914
    %vm3232 = vcmp.eq.s32.totalorder %v155, %v2917
    %vm3233 = vcmp.eq.s32.totalorder %v155, %v2920
    %vm3234 = vcmp.eq.s32.totalorder %v155, %v2923
    %vm3235 = vcmp.eq.s32.totalorder %v155, %v2926
    %vm3236 = vcmp.eq.s32.totalorder %v155, %v2929
    %vm3237 = vcmp.eq.s32.totalorder %v155, %v2932
    %vm3238 = vcmp.eq.s32.totalorder %v155, %v2935
    %vm3239 = vcmp.eq.s32.totalorder %v155, %v2938
    %vm3240 = vcmp.eq.s32.totalorder %v155, %v2941
    %vm3241 = vcmp.eq.s32.totalorder %v155, %v2944
    %vm3242 = vcmp.eq.s32.totalorder %v155, %v2947
    %vm3243 = vcmp.eq.s32.totalorder %v155, %v2950
    %vm3244 = vcmp.eq.s32.totalorder %v155, %v2953
    %vm3245 = vcmp.eq.s32.totalorder %v155, %v2956
    %vm3246 = vcmp.eq.s32.totalorder %v155, %v2959
    %vm3247 = vcmp.eq.s32.totalorder %v155, %v2962
    %vm3248 = vcmp.eq.s32.totalorder %v155, %v2965
    %vm3249 = vcmp.eq.s32.totalorder %v155, %v2968
    %vm3250 = vcmp.eq.s32.totalorder %v155, %v2971
    %vm3251 = vcmp.eq.s32.totalorder %v155, %v2974
    %vm3252 = vcmp.eq.s32.totalorder %v155, %v2977
    %vm3253 = vcmp.eq.s32.totalorder %v155, %v2980
    %vm3254 = vcmp.eq.s32.totalorder %v155, %v2983
    %vm3255 = vcmp.eq.s32.totalorder %v155, %v2986
    %vm3256 = vcmp.eq.s32.totalorder %v155, %v2989
    %vm3257 = vcmp.eq.s32.totalorder %v155, %v2992
    %vm3258 = vcmp.eq.s32.totalorder %v155, %v2995
    %vm3259 = vcmp.eq.s32.totalorder %v155, %v2998
    %vm3260 = vcmp.eq.s32.totalorder %v155, %v3001
    %vm3261 = vcmp.eq.s32.totalorder %v155, %v3004
    %vm3262 = vcmp.eq.s32.totalorder %v155, %v3007
    %vm3263 = vcmp.eq.s32.totalorder %v155, %v3010
    %vm3264 = vcmp.eq.s32.totalorder %v155, %v3013
    %vm3265 = vcmp.eq.s32.totalorder %v155, %v3016
    %vm3266 = vcmp.eq.s32.totalorder %v155, %v3019
    %vm3267 = vcmp.eq.s32.totalorder %v155, %v3022
    %vm3268 = vcmp.eq.s32.totalorder %v155, %v3025
    %vm3269 = vcmp.eq.s32.totalorder %v155, %v3028
    %vm3270 = vcmp.eq.s32.totalorder %v155, %v3031
    %vm3271 = vcmp.eq.s32.totalorder %v155, %v3034
    %vm3272 = vcmp.eq.s32.totalorder %v155, %v3037
    %vm3273 = vcmp.eq.s32.totalorder %v155, %v3040
    %vm3274 = vcmp.eq.s32.totalorder %v155, %v3043
    %vm3275 = vcmp.eq.s32.totalorder %v155, %v3046
    %vm3276 = vcmp.eq.s32.totalorder %v155, %v3049
    %vm3277 = vcmp.eq.s32.totalorder %v155, %v3052
    %vm3278 = vcmp.eq.s32.totalorder %v155, %v3055
    %vm3279 = vcmp.eq.s32.totalorder %v155, %v3058
    %vm3280 = vcmp.eq.s32.totalorder %v155, %v3061
    %vm3281 = vcmp.eq.s32.totalorder %v155, %v3064
    %vm3282 = vcmp.eq.s32.totalorder %v155, %v3067
    %vm3283 = vcmp.eq.s32.totalorder %v155, %v3070
    %vm3284 = vcmp.eq.s32.totalorder %v155, %v3073
    %vm3285 = vcmp.eq.s32.totalorder %v155, %v3076
    %vm3286 = vcmp.eq.s32.totalorder %v155, %v3079
    %vm3287 = vcmp.eq.s32.totalorder %v155, %v3082
    %vm3288 = vcmp.eq.s32.totalorder %v155, %v3085
    %vm3289 = vcmp.eq.s32.totalorder %v155, %v3088
    %vm3290 = vcmp.eq.s32.totalorder %v155, %v3091
    %vm3291 = vcmp.eq.s32.totalorder %v155, %v3094
    %vm3292 = vcmp.eq.s32.totalorder %v155, %v3097
    %vm3293 = vcmp.eq.s32.totalorder %v155, %v3100
    %vm3294 = vcmp.eq.s32.totalorder %v155, %v3103
    %vm3295 = vcmp.eq.s32.totalorder %v155, %v3106
    %vm3296 = vcmp.eq.s32.totalorder %v155, %v3109
    %vm3297 = vcmp.eq.s32.totalorder %v155, %v3112
    %vm3298 = vcmp.eq.s32.totalorder %v155, %v3115
    %vm3299 = vcmp.eq.s32.totalorder %v155, %v3118
    %vm3300 = vcmp.eq.s32.totalorder %v155, %v3121
    %vm3301 = vcmp.eq.s32.totalorder %v155, %v3124
    %vm3302 = vcmp.eq.s32.totalorder %v155, %v3127
    %vm3303 = vcmp.eq.s32.totalorder %v155, %v3130
    %vm3304 = vcmp.eq.s32.totalorder %v155, %v3133
    %vm3305 = vcmp.eq.s32.totalorder %v155, %v3136
    %vm3306 = vcmp.eq.s32.totalorder %v155, %v3139
    %vm3307 = vcmp.eq.s32.totalorder %v155, %v3142
    %vm3308 = vcmp.eq.s32.totalorder %v155, %v3145
    %vm3309 = vcmp.eq.s32.totalorder %v155, %v3148
    %vm3310 = vcmp.eq.s32.totalorder %v155, %v3151
    %vm3311 = vcmp.eq.s32.totalorder %v155, %v3154
    %vm3312 = vcmp.eq.s32.totalorder %v155, %v3157
    %vm3313 = vcmp.eq.s32.totalorder %v155, %v3160
    %vm3314 = vcmp.eq.s32.totalorder %v155, %v3163
    %vm3315 = vcmp.eq.s32.totalorder %v155, %v3166
    %vm3316 = vcmp.eq.s32.totalorder %v155, %v3169
    %vm3317 = vcmp.eq.s32.totalorder %v155, %v3172
    %vm3318 = vcmp.eq.s32.totalorder %v155, %v3175
    %vm3319 = vcmp.eq.s32.totalorder %v155, %v3178
    %vm3320 = vcmp.eq.s32.totalorder %v155, %v3181
    %vm3321 = vcmp.eq.s32.totalorder %v155, %v3184
    %vm3322 = vcmp.eq.s32.totalorder %v155, %v3187
    %vm3323 = vcmp.eq.s32.totalorder %v155, %v3190
    %vm3324 = vcmp.eq.s32.totalorder %v155, %v3193
    %vm3325 = vcmp.eq.s32.totalorder %v155, %v3196
    %vm3326 = vcmp.eq.s32.totalorder %v155, %v3199
    %vm3327 = vcmp.eq.s32.totalorder %v155, %v3202
    %vm3328 = vcmp.eq.s32.totalorder %v155, %v3205
    %vm3329 = vcmp.eq.s32.totalorder %v155, %v3208
    %vm3330 = vcmp.eq.s32.totalorder %v155, %v3211
    %vm3331 = vcmp.eq.s32.totalorder %v155, %v3214
    %v3332 = vsel %vm3215, 1.0, 0.0
    %v3333 = vsel %vm3216, 1.0, 0.0
    %v3334 = vsel %vm3217, 1.0, 0.0
    %v3335 = vsel %vm3218, 1.0, 0.0
    %v3336 = vsel %vm3219, 1.0, 0.0
    %v3337 = vsel %vm3220, 1.0, 0.0
    %v3338 = vsel %vm3221, 1.0, 0.0
    %v3339 = vsel %vm3222, 1.0, 0.0
    %v3340 = vsel %vm3223, 1.0, 0.0
    %v3341 = vsel %vm3224, 1.0, 0.0
    %v3342 = vsel %vm3225, 1.0, 0.0
    %v3343 = vsel %vm3226, 1.0, 0.0
    %v3344 = vsel %vm3227, 1.0, 0.0
    %v3345 = vsel %vm3228, 1.0, 0.0
    %v3346 = vsel %vm3229, 1.0, 0.0
    %v3347 = vsel %vm3230, 1.0, 0.0
    %v3348 = vsel %vm3231, 1.0, 0.0
    %v3349 = vsel %vm3232, 1.0, 0.0
    %v3350 = vsel %vm3233, 1.0, 0.0
    %v3351 = vsel %vm3234, 1.0, 0.0
    %v3352 = vsel %vm3235, 1.0, 0.0
    %v3353 = vsel %vm3236, 1.0, 0.0
    %v3354 = vsel %vm3237, 1.0, 0.0
    %v3355 = vsel %vm3238, 1.0, 0.0
    %v3356 = vsel %vm3239, 1.0, 0.0
    %v3357 = vsel %vm3240, 1.0, 0.0
    %v3358 = vsel %vm3241, 1.0, 0.0
    %v3359 = vsel %vm3242, 1.0, 0.0
    %v3360 = vsel %vm3243, 1.0, 0.0
    %v3361 = vsel %vm3244, 1.0, 0.0
    %v3362 = vsel %vm3245, 1.0, 0.0
    %v3363 = vsel %vm3246, 1.0, 0.0
    %v3364 = vsel %vm3247, 1.0, 0.0
    %v3365 = vsel %vm3248, 1.0, 0.0
    %v3366 = vsel %vm3249, 1.0, 0.0
    %v3367 = vsel %vm3250, 1.0, 0.0
    %v3368 = vsel %vm3251, 1.0, 0.0
    %v3369 = vsel %vm3252, 1.0, 0.0
    %v3370 = vsel %vm3253, 1.0, 0.0
    %v3371 = vsel %vm3254, 1.0, 0.0
    %v3372 = vsel %vm3255, 1.0, 0.0
    %v3373 = vsel %vm3256, 1.0, 0.0
    %v3374 = vsel %vm3257, 1.0, 0.0
    %v3375 = vsel %vm3258, 1.0, 0.0
    %v3376 = vsel %vm3259, 1.0, 0.0
    %v3377 = vsel %vm3260, 1.0, 0.0
    %v3378 = vsel %vm3261, 1.0, 0.0
    %v3379 = vsel %vm3262, 1.0, 0.0
    %v3380 = vsel %vm3263, 1.0, 0.0
    %v3381 = vsel %vm3264, 1.0, 0.0
    %v3382 = vsel %vm3265, 1.0, 0.0
    %v3383 = vsel %vm3266, 1.0, 0.0
    %v3384 = vsel %vm3267, 1.0, 0.0
    %v3385 = vsel %vm3268, 1.0, 0.0
    %v3386 = vsel %vm3269, 1.0, 0.0
    %v3387 = vsel %vm3270, 1.0, 0.0
    %v3388 = vsel %vm3271, 1.0, 0.0
    %v3389 = vsel %vm3272, 1.0, 0.0
    %v3390 = vsel %vm3273, 1.0, 0.0
    %v3391 = vsel %vm3274, 1.0, 0.0
    %v3392 = vsel %vm3275, 1.0, 0.0
    %v3393 = vsel %vm3276, 1.0, 0.0
    %v3394 = vsel %vm3277, 1.0, 0.0
    %v3395 = vsel %vm3278, 1.0, 0.0
    %v3396 = vsel %vm3279, 1.0, 0.0
    %v3397 = vsel %vm3280, 1.0, 0.0
    %v3398 = vsel %vm3281, 1.0, 0.0
    %v3399 = vsel %vm3282, 1.0, 0.0
    %v3400 = vsel %vm3283, 1.0, 0.0
    %v3401 = vsel %vm3284, 1.0, 0.0
    %v3402 = vsel %vm3285, 1.0, 0.0
    %v3403 = vsel %vm3286, 1.0, 0.0
    %v3404 = vsel %vm3287, 1.0, 0.0
    %v3405 = vsel %vm3288, 1.0, 0.0
    %v3406 = vsel %vm3289, 1.0, 0.0
    %v3407 = vsel %vm3290, 1.0, 0.0
    %v3408 = vsel %vm3291, 1.0, 0.0
    %v3409 = vsel %vm3292, 1.0, 0.0
    %v3410 = vsel %vm3293, 1.0, 0.0
    %v3411 = vsel %vm3294, 1.0, 0.0
    %v3412 = vsel %vm3295, 1.0, 0.0
    %v3413 = vsel %vm3296, 1.0, 0.0
    %v3414 = vsel %vm3297, 1.0, 0.0
    %v3415 = vsel %vm3298, 1.0, 0.0
    %v3416 = vsel %vm3299, 1.0, 0.0
    %v3417 = vsel %vm3300, 1.0, 0.0
    %v3418 = vsel %vm3301, 1.0, 0.0
    %v3419 = vsel %vm3302, 1.0, 0.0
    %v3420 = vsel %vm3303, 1.0, 0.0
    %v3421 = vsel %vm3304, 1.0, 0.0
    %v3422 = vsel %vm3305, 1.0, 0.0
    %v3423 = vsel %vm3306, 1.0, 0.0
    %v3424 = vsel %vm3307, 1.0, 0.0
    %v3425 = vsel %vm3308, 1.0, 0.0
    %v3426 = vsel %vm3309, 1.0, 0.0
    %v3427 = vsel %vm3310, 1.0, 0.0
    %v3428 = vsel %vm3311, 1.0, 0.0
    %v3429 = vsel %vm3312, 1.0, 0.0
    %v3430 = vsel %vm3313, 1.0, 0.0
    %v3431 = vsel %vm3314, 1.0, 0.0
    %v3432 = vsel %vm3315, 1.0, 0.0
    %v3433 = vsel %vm3316, 1.0, 0.0
    %v3434 = vsel %vm3317, 1.0, 0.0
    %v3435 = vsel %vm3318, 1.0, 0.0
    %v3436 = vsel %vm3319, 1.0, 0.0
    %v3437 = vsel %vm3320, 1.0, 0.0
    %v3438 = vsel %vm3321, 1.0, 0.0
    %v3439 = vsel %vm3322, 1.0, 0.0
    %v3440 = vsel %vm3323, 1.0, 0.0
    %v3441 = vsel %vm3324, 1.0, 0.0
    %v3442 = vsel %vm3325, 1.0, 0.0
    %v3443 = vsel %vm3326, 1.0, 0.0
    %v3444 = vsel %vm3327, 1.0, 0.0
    %v3445 = vsel %vm3328, 1.0, 0.0
    %v3446 = vsel %vm3329, 1.0, 0.0
    %v3447 = vsel %vm3330, 1.0, 0.0
    %v3448 = vsel %vm3331, 1.0, 0.0
    %v3449 = vld [vmem:[%s1 + $0x150] sm:$0x7]
    %v3450 = vld [vmem:[%s1 + $0x70] sm:$0xff]
    %v3451 = vld [vmem:[%s1 + $0x78] sm:$0xff]
    %v3452 = vld [vmem:[%s1 + $0x80] sm:$0xff]
    %v3453 = vld [vmem:[%s1 + $0x88] sm:$0xff]
    %v3454 = vld [vmem:[%s1 + $0x90] sm:$0xff]
    %v3455 = vld [vmem:[%s1 + $0x98] sm:$0xff]
    %v3456 = vld [vmem:[%s1 + $0xa0] sm:$0xff]
    %v3457 = vld [vmem:[%s1 + $0xa8] sm:$0xff]
    %v3458 = vld [vmem:[%s1 + $0xb0] sm:$0xff]
    %vm3459 = vcmask 801792
    %v3461 = vsel %vm3459, %v3332, 0
    %v3464 = vsel %vm3459, %v3333, 0
    %v3467 = vsel %vm3459, %v3334, 0
    %v3470 = vsel %vm3459, %v3335, 0
    %v3473 = vsel %vm3459, %v3336, 0
    %v3476 = vsel %vm3459, %v3337, 0
    %v3479 = vsel %vm3459, %v3338, 0
    %v3482 = vsel %vm3459, %v3339, 0
    %v3485 = vsel %vm3459, %v3340, 0
    %v3488 = vsel %vm3459, %v3341, 0
    %v3491 = vsel %vm3459, %v3342, 0
    %v3494 = vsel %vm3459, %v3343, 0
    %v3497 = vsel %vm3459, %v3344, 0
    %v3500 = vsel %vm3459, %v3345, 0
    %v3503 = vsel %vm3459, %v3346, 0
    %v3506 = vsel %vm3459, %v3347, 0
    %v3509 = vsel %vm3459, %v3348, 0
    %v3512 = vsel %vm3459, %v3349, 0
    %v3515 = vsel %vm3459, %v3350, 0
    %v3518 = vsel %vm3459, %v3351, 0
    %v3521 = vsel %vm3459, %v3352, 0
    %v3524 = vsel %vm3459, %v3353, 0
    %v3527 = vsel %vm3459, %v3354, 0
    %v3530 = vsel %vm3459, %v3355, 0
    %v3533 = vsel %vm3459, %v3356, 0
    %v3536 = vsel %vm3459, %v3357, 0
    %v3539 = vsel %vm3459, %v3358, 0
    %v3542 = vsel %vm3459, %v3359, 0
    %v3545 = vsel %vm3459, %v3360, 0
    %v3548 = vsel %vm3459, %v3361, 0
    %v3551 = vsel %vm3459, %v3362, 0
    %v3554 = vsel %vm3459, %v3363, 0
    %v3557 = vsel %vm3459, %v3364, 0
    %v3560 = vsel %vm3459, %v3365, 0
    %v3563 = vsel %vm3459, %v3366, 0
    %v3566 = vsel %vm3459, %v3367, 0
    %v3569 = vsel %vm3459, %v3368, 0
    %v3572 = vsel %vm3459, %v3369, 0
    %v3575 = vsel %vm3459, %v3370, 0
    %v3578 = vsel %vm3459, %v3371, 0
    %v3581 = vsel %vm3459, %v3372, 0
    %v3584 = vsel %vm3459, %v3373, 0
    %v3587 = vsel %vm3459, %v3374, 0
    %v3590 = vsel %vm3459, %v3375, 0
    %v3593 = vsel %vm3459, %v3376, 0
    %v3596 = vsel %vm3459, %v3377, 0
    %v3599 = vsel %vm3459, %v3378, 0
    %v3602 = vsel %vm3459, %v3379, 0
    %v3605 = vsel %vm3459, %v3380, 0
    %v3608 = vsel %vm3459, %v3381, 0
    %v3611 = vsel %vm3459, %v3382, 0
    %v3614 = vsel %vm3459, %v3383, 0
    %v3617 = vsel %vm3459, %v3384, 0
    %v3620 = vsel %vm3459, %v3385, 0
    %v3623 = vsel %vm3459, %v3386, 0
    %v3626 = vsel %vm3459, %v3387, 0
    %v3629 = vsel %vm3459, %v3388, 0
    %v3632 = vsel %vm3459, %v3389, 0
    %v3635 = vsel %vm3459, %v3390, 0
    %v3638 = vsel %vm3459, %v3391, 0
    %v3641 = vsel %vm3459, %v3392, 0
    %v3644 = vsel %vm3459, %v3393, 0
    %v3647 = vsel %vm3459, %v3394, 0
    %v3650 = vsel %vm3459, %v3395, 0
    %v3653 = vsel %vm3459, %v3396, 0
    %v3656 = vsel %vm3459, %v3397, 0
    %v3659 = vsel %vm3459, %v3398, 0
    %v3662 = vsel %vm3459, %v3399, 0
    %v3665 = vsel %vm3459, %v3400, 0
    %v3668 = vsel %vm3459, %v3401, 0
    %v3671 = vsel %vm3459, %v3402, 0
    %v3674 = vsel %vm3459, %v3403, 0
    %v3677 = vsel %vm3459, %v3404, 0
    %v3680 = vsel %vm3459, %v3405, 0
    %v3683 = vsel %vm3459, %v3406, 0
    %v3686 = vsel %vm3459, %v3407, 0
    %v3689 = vsel %vm3459, %v3408, 0
    %v3692 = vsel %vm3459, %v3409, 0
    %v3695 = vsel %vm3459, %v3410, 0
    %v3698 = vsel %vm3459, %v3411, 0
    %v3701 = vsel %vm3459, %v3412, 0
    %v3704 = vsel %vm3459, %v3413, 0
    %v3707 = vsel %vm3459, %v3414, 0
    %v3710 = vsel %vm3459, %v3415, 0
    %v3713 = vsel %vm3459, %v3416, 0
    %v3716 = vsel %vm3459, %v3417, 0
    %v3719 = vsel %vm3459, %v3418, 0
    %v3722 = vsel %vm3459, %v3419, 0
    %v3725 = vsel %vm3459, %v3420, 0
    %v3728 = vsel %vm3459, %v3421, 0
    %v3731 = vsel %vm3459, %v3422, 0
    %v3734 = vsel %vm3459, %v3423, 0
    %v3737 = vsel %vm3459, %v3424, 0
    %v3740 = vsel %vm3459, %v3425, 0
    %v3743 = vsel %vm3459, %v3426, 0
    %v3746 = vsel %vm3459, %v3427, 0
    %v3749 = vsel %vm3459, %v3428, 0
    %v3752 = vsel %vm3459, %v3429, 0
    %v3755 = vsel %vm3459, %v3430, 0
    %v3758 = vsel %vm3459, %v3431, 0
    %v3761 = vsel %vm3459, %v3432, 0
    %v3764 = vsel %vm3459, %v3433, 0
    %v3767 = vsel %vm3459, %v3434, 0
    %v3770 = vsel %vm3459, %v3435, 0
    %v3773 = vsel %vm3459, %v3436, 0
    %v3776 = vsel %vm3459, %v3437, 0
    %v3779 = vsel %vm3459, %v3438, 0
    %v3782 = vsel %vm3459, %v3439, 0
    %v3785 = vsel %vm3459, %v3440, 0
    %v3788 = vsel %vm3459, %v3441, 0
    %v3791 = vsel %vm3459, %v3442, 0
    %v3794 = vsel %vm3459, %v3443, 0
    %v3797 = vsel %vm3459, %v3444, 0
    %v3800 = vsel %vm3459, %v3445, 0
    %v3803 = vsel %vm3459, %v3446, 0
    %v3806 = vsel %vm3459, %v3447, 0
    %v3809 = vsel %vm3459, %v3448, 0
    %v3812 = vsel %vm1342, %v2863, 0
    %3814 = vmatprep.subr.mxu0 0.0
    %3815 = vmatpush1.msra.mxu0 %v2851
    %3816 = vmatprep.subr.mxu0 0.0
    %3817 = vmatpush1.msra.mxu0 %v2852
    %3818 = vmatprep.subr.mxu0 0.0
    %3819 = vmatpush1.msra.mxu0 %v2853
    %3820 = vmatprep.subr.mxu0 0.0
    %3821 = vmatpush1.msra.mxu0 %v2854
    %3822 = vmatprep.subr.mxu0 0.0
    %3823 = vmatpush1.msra.mxu0 %v2855
    %3824 = vmatprep.subr.mxu0 0.0
    %3825 = vmatpush1.msra.mxu0 %v2856
    %3826 = vmatprep.subr.mxu0 0.0
    %3827 = vmatpush1.msra.mxu0 %v2857
    %3828 = vmatprep.subr.mxu0 0.0
    %3829 = vmatpush1.msra.mxu0 %v2858
    %3830 = vmatprep.subr.mxu0 0.0
    %3831 = vmatpush1.msra.mxu0 %v2859
    %3832 = vmatprep.subr.mxu0 0.0
    %3833 = vmatpush1.msra.mxu0 %v2860
    %3834 = vmatprep.subr.mxu0 0.0
    %3835 = vmatpush1.msra.mxu0 %v2861
    %3836 = vmatprep.subr.mxu0 0.0
    %3837 = vmatpush1.msra.mxu0 %v2862
    %3838 = vmatprep.subr.mxu0 0.0
    %3839 = vmatpush1.msra.mxu0 %v3812
    %3840 = vmatprep.subr.mxu0 0.0
    %3841 = vmatpush1.msra.mxu0 0.0
    %3842 = vmatprep.subr.mxu0 0.0
    %3843 = vmatpush1.msra.mxu0 0.0
    %3844 = vmatprep.subr.mxu0 0.0
    %3845 = vmatpush1.msra.mxu0 0.0
    %3846 = vmatprep.subr.mxu0 0.0
    %3847 = vmatpush1.msra.mxu0 0.0
    %3848 = vmatprep.subr.mxu0 0.0
    %3849 = vmatpush1.msra.mxu0 0.0
    %3850 = vmatprep.subr.mxu0 0.0
    %3851 = vmatpush1.msra.mxu0 0.0
    %3852 = vmatprep.subr.mxu0 0.0
    %3853 = vmatpush1.msra.mxu0 0.0
    %3854 = vmatprep.subr.mxu0 0.0
    %3855 = vmatpush1.msra.mxu0 0.0
    %3856 = vmatprep.subr.mxu0 0.0
    %3857 = vmatpush1.msra.mxu0 0.0
    %3858 = vmatprep.subr.mxu0 0.0
    %3859 = vmatpush1.msra.mxu0 0.0
    %3860 = vmatprep.subr.mxu0 0.0
    %3861 = vmatpush1.msra.mxu0 0.0
    %3862 = vmatprep.subr.mxu0 0.0
    %3863 = vmatpush1.msra.mxu0 0.0
    %3864 = vmatprep.subr.mxu0 0.0
    %3865 = vmatpush1.msra.mxu0 0.0
    %3866 = vmatprep.subr.mxu0 0.0
    %3867 = vmatpush1.msra.mxu0 0.0
    %3868 = vmatprep.subr.mxu0 0.0
    %3869 = vmatpush1.msra.mxu0 0.0
    %3870 = vmatprep.subr.mxu0 0.0
    %3871 = vmatpush1.msra.mxu0 0.0
    %3872 = vmatprep.subr.mxu0 0.0
    %3873 = vmatpush1.msra.mxu0 0.0
    %3874 = vmatprep.subr.mxu0 0.0
    %3875 = vmatpush1.msra.mxu0 0.0
    %3876 = vmatprep.subr.mxu0 0.0
    %3877 = vmatpush1.msra.mxu0 0.0
    %3878 = vmatprep.mubr.f32.mxu0 0.0
    %3879 = vmatmul.mubr.f32.gmra.mrb[0].mxu0 %v3461
    %v3880 = vpop.f32.mrb[0].mxu0
    %v3881 = vadd.f32 0.0, %v3880
    %v3882 = vpop.f32.mrb[0].mxu0
    %3883 = vmatprep.mubr.f32.mxu0 0.0
    %3884 = vmatmul.mubr.f32.gmra.mrb[0].mxu0 %v3464
    %v3885 = vpop.f32.mrb[0].mxu0
    %v3886 = vadd.f32 0.0, %v3885
    %v3887 = vpop.f32.mrb[0].mxu0
    %3888 = vmatprep.mubr.f32.mxu0 0.0
    %3889 = vmatmul.mubr.f32.gmra.mrb[0].mxu0 %v3467
    %v3890 = vpop.f32.mrb[0].mxu0
    %v3891 = vadd.f32 0.0, %v3890
    %v3892 = vpop.f32.mrb[0].mxu0
    %3893 = vmatprep.mubr.f32.mxu0 0.0
    %3894 = vmatmul.mubr.f32.gmra.mrb[0].mxu0 %v3470
    %v3895 = vpop.f32.mrb[0].mxu0
    %v3896 = vadd.f32 0.0, %v3895
    %v3897 = vpop.f32.mrb[0].mxu0
    %3898 = vmatprep.mubr.f32.mxu0 0.0
    %3899 = vmatmul.mubr.f32.gmra.mrb[0].mxu0 %v3473
    %v3900 = vpop.f32.mrb[0].mxu0
    %v3901 = vadd.f32 0.0, %v3900
    %v3902 = vpop.f32.mrb[0].mxu0
    %3903 = vmatprep.mubr.f32.mxu0 0.0
    %3904 = vmatmul.mubr.f32.gmra.mrb[0].mxu0 %v3476
    %v3905 = vpop.f32.mrb[0].mxu0
    %v3906 = vadd.f32 0.0, %v3905
    %v3907 = vpop.f32.mrb[0].mxu0
    %3908 = vmatprep.mubr.f32.mxu0 0.0
    %3909 = vmatmul.mubr.f32.gmra.mrb[0].mxu0 %v3479
    %v3910 = vpop.f32.mrb[0].mxu0
    %v3911 = vadd.f32 0.0, %v3910
    %v3912 = vpop.f32.mrb[0].mxu0
    %3913 = vmatprep.mubr.f32.mxu0 0.0
    %3914 = vmatmul.mubr.f32.gmra.mrb[0].mxu0 %v3482
    %v3915 = vpop.f32.mrb[0].mxu0
    %v3916 = vadd.f32 0.0, %v3915
    %v3917 = vpop.f32.mrb[0].mxu0
    %3918 = vmatprep.mubr.f32.mxu0 0.0
    %3919 = vmatmul.mubr.f32.gmra.mrb[0].mxu0 %v3485
    %v3920 = vpop.f32.mrb[0].mxu0
    %v3921 = vadd.f32 0.0, %v3920
    %v3922 = vpop.f32.mrb[0].mxu0
    %3923 = vmatprep.mubr.f32.mxu0 0.0
    %3924 = vmatmul.mubr.f32.gmra.mrb[0].mxu0 %v3488
    %v3925 = vpop.f32.mrb[0].mxu0
    %v3926 = vadd.f32 0.0, %v3925
    %v3927 = vpop.f32.mrb[0].mxu0
    %3928 = vmatprep.mubr.f32.mxu0 0.0
    %3929 = vmatmul.mubr.f32.gmra.mrb[0].mxu0 %v3491
    %v3930 = vpop.f32.mrb[0].mxu0
    %v3931 = vadd.f32 0.0, %v3930
    %v3932 = vpop.f32.mrb[0].mxu0
    %3933 = vmatprep.mubr.f32.mxu0 0.0
    %3934 = vmatmul.mubr.f32.gmra.mrb[0].mxu0 %v3494
    %v3935 = vpop.f32.mrb[0].mxu0
    %v3936 = vadd.f32 0.0, %v3935
    %v3937 = vpop.f32.mrb[0].mxu0
    %3938 = vmatprep.mubr.f32.mxu0 0.0
    %3939 = vmatmul.mubr.f32.gmra.mrb[0].mxu0 %v3497
    %v3940 = vpop.f32.mrb[0].mxu0
    %v3941 = vadd.f32 0.0, %v3940
    %v3942 = vpop.f32.mrb[0].mxu0
    %3943 = vmatprep.mubr.f32.mxu0 0.0
    %3944 = vmatmul.mubr.f32.gmra.mrb[0].mxu0 %v3500
    %v3945 = vpop.f32.mrb[0].mxu0
    %v3946 = vadd.f32 0.0, %v3945
    %v3947 = vpop.f32.mrb[0].mxu0
    %3948 = vmatprep.mubr.f32.mxu0 0.0
    %3949 = vmatmul.mubr.f32.gmra.mrb[0].mxu0 %v3503
    %v3950 = vpop.f32.mrb[0].mxu0
    %v3951 = vadd.f32 0.0, %v3950
    %v3952 = vpop.f32.mrb[0].mxu0
    %3953 = vmatprep.mubr.f32.mxu0 0.0
    %3954 = vmatmul.mubr.f32.gmra.mrb[0].mxu0 %v3506
    %v3955 = vpop.f32.mrb[0].mxu0
    %v3956 = vadd.f32 0.0, %v3955
    %v3957 = vpop.f32.mrb[0].mxu0
    %3958 = vmatprep.mubr.f32.mxu0 0.0
    %3959 = vmatmul.mubr.f32.gmra.mrb[0].mxu0 %v3509
    %v3960 = vpop.f32.mrb[0].mxu0
    %v3961 = vadd.f32 0.0, %v3960
    %v3962 = vpop.f32.mrb[0].mxu0
    %3963 = vmatprep.mubr.f32.mxu0 0.0
    %3964 = vmatmul.mubr.f32.gmra.mrb[0].mxu0 %v3512
    %v3965 = vpop.f32.mrb[0].mxu0
    %v3966 = vadd.f32 0.0, %v3965
    %v3967 = vpop.f32.mrb[0].mxu0
    %3968 = vmatprep.mubr.f32.mxu0 0.0
    %3969 = vmatmul.mubr.f32.gmra.mrb[0].mxu0 %v3515
    %v3970 = vpop.f32.mrb[0].mxu0
    %v3971 = vadd.f32 0.0, %v3970
    %v3972 = vpop.f32.mrb[0].mxu0
    %3973 = vmatprep.mubr.f32.mxu0 0.0
    %3974 = vmatmul.mubr.f32.gmra.mrb[0].mxu0 %v3518
    %v3975 = vpop.f32.mrb[0].mxu0
    %v3976 = vadd.f32 0.0, %v3975
    %v3977 = vpop.f32.mrb[0].mxu0
    %3978 = vmatprep.mubr.f32.mxu0 0.0
    %3979 = vmatmul.mubr.f32.gmra.mrb[0].mxu0 %v3521
    %v3980 = vpop.f32.mrb[0].mxu0
    %v3981 = vadd.f32 0.0, %v3980
    %v3982 = vpop.f32.mrb[0].mxu0
    %3983 = vmatprep.mubr.f32.mxu0 0.0
    %3984 = vmatmul.mubr.f32.gmra.mrb[0].mxu0 %v3524
    %v3985 = vpop.f32.mrb[0].mxu0
    %v3986 = vadd.f32 0.0, %v3985
    %v3987 = vpop.f32.mrb[0].mxu0
    %3988 = vmatprep.mubr.f32.mxu0 0.0
    %3989 = vmatmul.mubr.f32.gmra.mrb[0].mxu0 %v3527
    %v3990 = vpop.f32.mrb[0].mxu0
    %v3991 = vadd.f32 0.0, %v3990
    %v3992 = vpop.f32.mrb[0].mxu0
    %3993 = vmatprep.mubr.f32.mxu0 0.0
    %3994 = vmatmul.mubr.f32.gmra.mrb[0].mxu0 %v3530
    %v3995 = vpop.f32.mrb[0].mxu0
    %v3996 = vadd.f32 0.0, %v3995
    %v3997 = vpop.f32.mrb[0].mxu0
    %3998 = vmatprep.mubr.f32.mxu0 0.0
    %3999 = vmatmul.mubr.f32.gmra.mrb[0].mxu0 %v3533
    %v4000 = vpop.f32.mrb[0].mxu0
    %v4001 = vadd.f32 0.0, %v4000
    %v4002 = vpop.f32.mrb[0].mxu0
    %4003 = vmatprep.mubr.f32.mxu0 0.0
    %4004 = vmatmul.mubr.f32.gmra.mrb[0].mxu0 %v3536
    %v4005 = vpop.f32.mrb[0].mxu0
    %v4006 = vadd.f32 0.0, %v4005
    %v4007 = vpop.f32.mrb[0].mxu0
    %4008 = vmatprep.mubr.f32.mxu0 0.0
    %4009 = vmatmul.mubr.f32.gmra.mrb[0].mxu0 %v3539
    %v4010 = vpop.f32.mrb[0].mxu0
    %v4011 = vadd.f32 0.0, %v4010
    %v4012 = vpop.f32.mrb[0].mxu0
    %4013 = vmatprep.mubr.f32.mxu0 0.0
    %4014 = vmatmul.mubr.f32.gmra.mrb[0].mxu0 %v3542
    %v4015 = vpop.f32.mrb[0].mxu0
    %v4016 = vadd.f32 0.0, %v4015
    %v4017 = vpop.f32.mrb[0].mxu0
    %4018 = vmatprep.mubr.f32.mxu0 0.0
    %4019 = vmatmul.mubr.f32.gmra.mrb[0].mxu0 %v3545
    %v4020 = vpop.f32.mrb[0].mxu0
    %v4021 = vadd.f32 0.0, %v4020
    %v4022 = vpop.f32.mrb[0].mxu0
    %4023 = vmatprep.mubr.f32.mxu0 0.0
    %4024 = vmatmul.mubr.f32.gmra.mrb[0].mxu0 %v3548
    %v4025 = vpop.f32.mrb[0].mxu0
    %v4026 = vadd.f32 0.0, %v4025
    %v4027 = vpop.f32.mrb[0].mxu0
    %4028 = vmatprep.mubr.f32.mxu0 0.0
    %4029 = vmatmul.mubr.f32.gmra.mrb[0].mxu0 %v3551
    %v4030 = vpop.f32.mrb[0].mxu0
    %v4031 = vadd.f32 0.0, %v4030
    %v4032 = vpop.f32.mrb[0].mxu0
    %4033 = vmatprep.mubr.f32.mxu0 0.0
    %4034 = vmatmul.mubr.f32.gmra.mrb[0].mxu0 %v3554
    %v4035 = vpop.f32.mrb[0].mxu0
    %v4036 = vadd.f32 0.0, %v4035
    %v4037 = vpop.f32.mrb[0].mxu0
    %4038 = vmatprep.mubr.f32.mxu0 0.0
    %4039 = vmatmul.mubr.f32.gmra.mrb[0].mxu0 %v3557
    %v4040 = vpop.f32.mrb[0].mxu0
    %v4041 = vadd.f32 0.0, %v4040
    %v4042 = vpop.f32.mrb[0].mxu0
    %4043 = vmatprep.mubr.f32.mxu0 0.0
    %4044 = vmatmul.mubr.f32.gmra.mrb[0].mxu0 %v3560
    %v4045 = vpop.f32.mrb[0].mxu0
    %v4046 = vadd.f32 0.0, %v4045
    %v4047 = vpop.f32.mrb[0].mxu0
    %4048 = vmatprep.mubr.f32.mxu0 0.0
    %4049 = vmatmul.mubr.f32.gmra.mrb[0].mxu0 %v3563
    %v4050 = vpop.f32.mrb[0].mxu0
    %v4051 = vadd.f32 0.0, %v4050
    %v4052 = vpop.f32.mrb[0].mxu0
    %4053 = vmatprep.mubr.f32.mxu0 0.0
    %4054 = vmatmul.mubr.f32.gmra.mrb[0].mxu0 %v3566
    %v4055 = vpop.f32.mrb[0].mxu0
    %v4056 = vadd.f32 0.0, %v4055
    %v4057 = vpop.f32.mrb[0].mxu0
    %4058 = vmatprep.mubr.f32.mxu0 0.0
    %4059 = vmatmul.mubr.f32.gmra.mrb[0].mxu0 %v3569
    %v4060 = vpop.f32.mrb[0].mxu0
    %v4061 = vadd.f32 0.0, %v4060
    %v4062 = vpop.f32.mrb[0].mxu0
    %4063 = vmatprep.mubr.f32.mxu0 0.0
    %4064 = vmatmul.mubr.f32.gmra.mrb[0].mxu0 %v3572
    %v4065 = vpop.f32.mrb[0].mxu0
    %v4066 = vadd.f32 0.0, %v4065
    %v4067 = vpop.f32.mrb[0].mxu0
    %4068 = vmatprep.mubr.f32.mxu0 0.0
    %4069 = vmatmul.mubr.f32.gmra.mrb[0].mxu0 %v3575
    %v4070 = vpop.f32.mrb[0].mxu0
    %v4071 = vadd.f32 0.0, %v4070
    %v4072 = vpop.f32.mrb[0].mxu0
    %4073 = vmatprep.mubr.f32.mxu0 0.0
    %4074 = vmatmul.mubr.f32.gmra.mrb[0].mxu0 %v3578
    %v4075 = vpop.f32.mrb[0].mxu0
    %v4076 = vadd.f32 0.0, %v4075
    %v4077 = vpop.f32.mrb[0].mxu0
    %4078 = vmatprep.mubr.f32.mxu0 0.0
    %4079 = vmatmul.mubr.f32.gmra.mrb[0].mxu0 %v3581
    %v4080 = vpop.f32.mrb[0].mxu0
    %v4081 = vadd.f32 0.0, %v4080
    %v4082 = vpop.f32.mrb[0].mxu0
    %4083 = vmatprep.mubr.f32.mxu0 0.0
    %4084 = vmatmul.mubr.f32.gmra.mrb[0].mxu0 %v3584
    %v4085 = vpop.f32.mrb[0].mxu0
    %v4086 = vadd.f32 0.0, %v4085
    %v4087 = vpop.f32.mrb[0].mxu0
    %4088 = vmatprep.mubr.f32.mxu0 0.0
    %4089 = vmatmul.mubr.f32.gmra.mrb[0].mxu0 %v3587
    %v4090 = vpop.f32.mrb[0].mxu0
    %v4091 = vadd.f32 0.0, %v4090
    %v4092 = vpop.f32.mrb[0].mxu0
    %4093 = vmatprep.mubr.f32.mxu0 0.0
    %4094 = vmatmul.mubr.f32.gmra.mrb[0].mxu0 %v3590
    %v4095 = vpop.f32.mrb[0].mxu0
    %v4096 = vadd.f32 0.0, %v4095
    %v4097 = vpop.f32.mrb[0].mxu0
    %4098 = vmatprep.mubr.f32.mxu0 0.0
    %4099 = vmatmul.mubr.f32.gmra.mrb[0].mxu0 %v3593
    %v4100 = vpop.f32.mrb[0].mxu0
    %v4101 = vadd.f32 0.0, %v4100
    %v4102 = vpop.f32.mrb[0].mxu0
    %4103 = vmatprep.mubr.f32.mxu0 0.0
    %4104 = vmatmul.mubr.f32.gmra.mrb[0].mxu0 %v3596
    %v4105 = vpop.f32.mrb[0].mxu0
    %v4106 = vadd.f32 0.0, %v4105
    %v4107 = vpop.f32.mrb[0].mxu0
    %4108 = vmatprep.mubr.f32.mxu0 0.0
    %4109 = vmatmul.mubr.f32.gmra.mrb[0].mxu0 %v3599
    %v4110 = vpop.f32.mrb[0].mxu0
    %v4111 = vadd.f32 0.0, %v4110
    %v4112 = vpop.f32.mrb[0].mxu0
    %4113 = vmatprep.mubr.f32.mxu0 0.0
    %4114 = vmatmul.mubr.f32.gmra.mrb[0].mxu0 %v3602
    %v4115 = vpop.f32.mrb[0].mxu0
    %v4116 = vadd.f32 0.0, %v4115
    %v4117 = vpop.f32.mrb[0].mxu0
    %4118 = vmatprep.mubr.f32.mxu0 0.0
    %4119 = vmatmul.mubr.f32.gmra.mrb[0].mxu0 %v3605
    %v4120 = vpop.f32.mrb[0].mxu0
    %v4121 = vadd.f32 0.0, %v4120
    %v4122 = vpop.f32.mrb[0].mxu0
    %4123 = vmatprep.mubr.f32.mxu0 0.0
    %4124 = vmatmul.mubr.f32.gmra.mrb[0].mxu0 %v3608
    %v4125 = vpop.f32.mrb[0].mxu0
    %v4126 = vadd.f32 0.0, %v4125
    %v4127 = vpop.f32.mrb[0].mxu0
    %4128 = vmatprep.mubr.f32.mxu0 0.0
    %4129 = vmatmul.mubr.f32.gmra.mrb[0].mxu0 %v3611
    %v4130 = vpop.f32.mrb[0].mxu0
    %v4131 = vadd.f32 0.0, %v4130
    %v4132 = vpop.f32.mrb[0].mxu0
    %4133 = vmatprep.mubr.f32.mxu0 0.0
    %4134 = vmatmul.mubr.f32.gmra.mrb[0].mxu0 %v3614
    %v4135 = vpop.f32.mrb[0].mxu0
    %v4136 = vadd.f32 0.0, %v4135
    %v4137 = vpop.f32.mrb[0].mxu0
    %4138 = vmatprep.mubr.f32.mxu0 0.0
    %4139 = vmatmul.mubr.f32.gmra.mrb[0].mxu0 %v3617
    %v4140 = vpop.f32.mrb[0].mxu0
    %v4141 = vadd.f32 0.0, %v4140
    %v4142 = vpop.f32.mrb[0].mxu0
    %4143 = vmatprep.mubr.f32.mxu0 0.0
    %4144 = vmatmul.mubr.f32.gmra.mrb[0].mxu0 %v3620
    %v4145 = vpop.f32.mrb[0].mxu0
    %v4146 = vadd.f32 0.0, %v4145
    %v4147 = vpop.f32.mrb[0].mxu0
    %4148 = vmatprep.mubr.f32.mxu0 0.0
    %4149 = vmatmul.mubr.f32.gmra.mrb[0].mxu0 %v3623
    %v4150 = vpop.f32.mrb[0].mxu0
    %v4151 = vadd.f32 0.0, %v4150
    %v4152 = vpop.f32.mrb[0].mxu0
    %4153 = vmatprep.mubr.f32.mxu0 0.0
    %4154 = vmatmul.mubr.f32.gmra.mrb[0].mxu0 %v3626
    %v4155 = vpop.f32.mrb[0].mxu0
    %v4156 = vadd.f32 0.0, %v4155
    %v4157 = vpop.f32.mrb[0].mxu0
    %4158 = vmatprep.mubr.f32.mxu0 0.0
    %4159 = vmatmul.mubr.f32.gmra.mrb[0].mxu0 %v3629
    %v4160 = vpop.f32.mrb[0].mxu0
    %v4161 = vadd.f32 0.0, %v4160
    %v4162 = vpop.f32.mrb[0].mxu0
    %4163 = vmatprep.mubr.f32.mxu0 0.0
    %4164 = vmatmul.mubr.f32.gmra.mrb[0].mxu0 %v3632
    %v4165 = vpop.f32.mrb[0].mxu0
    %v4166 = vadd.f32 0.0, %v4165
    %v4167 = vpop.f32.mrb[0].mxu0
    %4168 = vmatprep.mubr.f32.mxu0 0.0
    %4169 = vmatmul.mubr.f32.gmra.mrb[0].mxu0 %v3635
    %v4170 = vpop.f32.mrb[0].mxu0
    %v4171 = vadd.f32 0.0, %v4170
    %v4172 = vpop.f32.mrb[0].mxu0
    %4173 = vmatprep.mubr.f32.mxu0 0.0
    %4174 = vmatmul.mubr.f32.gmra.mrb[0].mxu0 %v3638
    %v4175 = vpop.f32.mrb[0].mxu0
    %v4176 = vadd.f32 0.0, %v4175
    %v4177 = vpop.f32.mrb[0].mxu0
    %4178 = vmatprep.mubr.f32.mxu0 0.0
    %4179 = vmatmul.mubr.f32.gmra.mrb[0].mxu0 %v3641
    %v4180 = vpop.f32.mrb[0].mxu0
    %v4181 = vadd.f32 0.0, %v4180
    %v4182 = vpop.f32.mrb[0].mxu0
    %4183 = vmatprep.mubr.f32.mxu0 0.0
    %4184 = vmatmul.mubr.f32.gmra.mrb[0].mxu0 %v3644
    %v4185 = vpop.f32.mrb[0].mxu0
    %v4186 = vadd.f32 0.0, %v4185
    %v4187 = vpop.f32.mrb[0].mxu0
    %4188 = vmatprep.mubr.f32.mxu0 0.0
    %4189 = vmatmul.mubr.f32.gmra.mrb[0].mxu0 %v3647
    %v4190 = vpop.f32.mrb[0].mxu0
    %v4191 = vadd.f32 0.0, %v4190
    %v4192 = vpop.f32.mrb[0].mxu0
    %4193 = vmatprep.mubr.f32.mxu0 0.0
    %4194 = vmatmul.mubr.f32.gmra.mrb[0].mxu0 %v3650
    %v4195 = vpop.f32.mrb[0].mxu0
    %v4196 = vadd.f32 0.0, %v4195
    %v4197 = vpop.f32.mrb[0].mxu0
    %4198 = vmatprep.mubr.f32.mxu0 0.0
    %4199 = vmatmul.mubr.f32.gmra.mrb[0].mxu0 %v3653
    %v4200 = vpop.f32.mrb[0].mxu0
    %v4201 = vadd.f32 0.0, %v4200
    %v4202 = vpop.f32.mrb[0].mxu0
    %4203 = vmatprep.mubr.f32.mxu0 0.0
    %4204 = vmatmul.mubr.f32.gmra.mrb[0].mxu0 %v3656
    %v4205 = vpop.f32.mrb[0].mxu0
    %v4206 = vadd.f32 0.0, %v4205
    %v4207 = vpop.f32.mrb[0].mxu0
    %4208 = vmatprep.mubr.f32.mxu0 0.0
    %4209 = vmatmul.mubr.f32.gmra.mrb[0].mxu0 %v3659
    %v4210 = vpop.f32.mrb[0].mxu0
    %v4211 = vadd.f32 0.0, %v4210
    %v4212 = vpop.f32.mrb[0].mxu0
    %4213 = vmatprep.mubr.f32.mxu0 0.0
    %4214 = vmatmul.mubr.f32.gmra.mrb[0].mxu0 %v3662
    %v4215 = vpop.f32.mrb[0].mxu0
    %v4216 = vadd.f32 0.0, %v4215
    %v4217 = vpop.f32.mrb[0].mxu0
    %4218 = vmatprep.mubr.f32.mxu0 0.0
    %4219 = vmatmul.mubr.f32.gmra.mrb[0].mxu0 %v3665
    %v4220 = vpop.f32.mrb[0].mxu0
    %v4221 = vadd.f32 0.0, %v4220
    %v4222 = vpop.f32.mrb[0].mxu0
    %4223 = vmatprep.mubr.f32.mxu0 0.0
    %4224 = vmatmul.mubr.f32.gmra.mrb[0].mxu0 %v3668
    %v4225 = vpop.f32.mrb[0].mxu0
    %v4226 = vadd.f32 0.0, %v4225
    %v4227 = vpop.f32.mrb[0].mxu0
    %4228 = vmatprep.mubr.f32.mxu0 0.0
    %4229 = vmatmul.mubr.f32.gmra.mrb[0].mxu0 %v3671
    %v4230 = vpop.f32.mrb[0].mxu0
    %v4231 = vadd.f32 0.0, %v4230
    %v4232 = vpop.f32.mrb[0].mxu0
    %4233 = vmatprep.mubr.f32.mxu0 0.0
    %4234 = vmatmul.mubr.f32.gmra.mrb[0].mxu0 %v3674
    %v4235 = vpop.f32.mrb[0].mxu0
    %v4236 = vadd.f32 0.0, %v4235
    %v4237 = vpop.f32.mrb[0].mxu0
    %4238 = vmatprep.mubr.f32.mxu0 0.0
    %4239 = vmatmul.mubr.f32.gmra.mrb[0].mxu0 %v3677
    %v4240 = vpop.f32.mrb[0].mxu0
    %v4241 = vadd.f32 0.0, %v4240
    %v4242 = vpop.f32.mrb[0].mxu0
    %4243 = vmatprep.mubr.f32.mxu0 0.0
    %4244 = vmatmul.mubr.f32.gmra.mrb[0].mxu0 %v3680
    %v4245 = vpop.f32.mrb[0].mxu0
    %v4246 = vadd.f32 0.0, %v4245
    %v4247 = vpop.f32.mrb[0].mxu0
    %4248 = vmatprep.mubr.f32.mxu0 0.0
    %4249 = vmatmul.mubr.f32.gmra.mrb[0].mxu0 %v3683
    %v4250 = vpop.f32.mrb[0].mxu0
    %v4251 = vadd.f32 0.0, %v4250
    %v4252 = vpop.f32.mrb[0].mxu0
    %4253 = vmatprep.mubr.f32.mxu0 0.0
    %4254 = vmatmul.mubr.f32.gmra.mrb[0].mxu0 %v3686
    %v4255 = vpop.f32.mrb[0].mxu0
    %v4256 = vadd.f32 0.0, %v4255
    %v4257 = vpop.f32.mrb[0].mxu0
    %4258 = vmatprep.mubr.f32.mxu0 0.0
    %4259 = vmatmul.mubr.f32.gmra.mrb[0].mxu0 %v3689
    %v4260 = vpop.f32.mrb[0].mxu0
    %v4261 = vadd.f32 0.0, %v4260
    %v4262 = vpop.f32.mrb[0].mxu0
    %4263 = vmatprep.mubr.f32.mxu0 0.0
    %4264 = vmatmul.mubr.f32.gmra.mrb[0].mxu0 %v3692
    %v4265 = vpop.f32.mrb[0].mxu0
    %v4266 = vadd.f32 0.0, %v4265
    %v4267 = vpop.f32.mrb[0].mxu0
    %4268 = vmatprep.mubr.f32.mxu0 0.0
    %4269 = vmatmul.mubr.f32.gmra.mrb[0].mxu0 %v3695
    %v4270 = vpop.f32.mrb[0].mxu0
    %v4271 = vadd.f32 0.0, %v4270
    %v4272 = vpop.f32.mrb[0].mxu0
    %4273 = vmatprep.mubr.f32.mxu0 0.0
    %4274 = vmatmul.mubr.f32.gmra.mrb[0].mxu0 %v3698
    %v4275 = vpop.f32.mrb[0].mxu0
    %v4276 = vadd.f32 0.0, %v4275
    %v4277 = vpop.f32.mrb[0].mxu0
    %4278 = vmatprep.mubr.f32.mxu0 0.0
    %4279 = vmatmul.mubr.f32.gmra.mrb[0].mxu0 %v3701
    %v4280 = vpop.f32.mrb[0].mxu0
    %v4281 = vadd.f32 0.0, %v4280
    %v4282 = vpop.f32.mrb[0].mxu0
    %4283 = vmatprep.mubr.f32.mxu0 0.0
    %4284 = vmatmul.mubr.f32.gmra.mrb[0].mxu0 %v3704
    %v4285 = vpop.f32.mrb[0].mxu0
    %v4286 = vadd.f32 0.0, %v4285
    %v4287 = vpop.f32.mrb[0].mxu0
    %4288 = vmatprep.mubr.f32.mxu0 0.0
    %4289 = vmatmul.mubr.f32.gmra.mrb[0].mxu0 %v3707
    %v4290 = vpop.f32.mrb[0].mxu0
    %v4291 = vadd.f32 0.0, %v4290
    %v4292 = vpop.f32.mrb[0].mxu0
    %4293 = vmatprep.mubr.f32.mxu0 0.0
    %4294 = vmatmul.mubr.f32.gmra.mrb[0].mxu0 %v3710
    %v4295 = vpop.f32.mrb[0].mxu0
    %v4296 = vadd.f32 0.0, %v4295
    %v4297 = vpop.f32.mrb[0].mxu0
    %4298 = vmatprep.mubr.f32.mxu0 0.0
    %4299 = vmatmul.mubr.f32.gmra.mrb[0].mxu0 %v3713
    %v4300 = vpop.f32.mrb[0].mxu0
    %v4301 = vadd.f32 0.0, %v4300
    %v4302 = vpop.f32.mrb[0].mxu0
    %4303 = vmatprep.mubr.f32.mxu0 0.0
    %4304 = vmatmul.mubr.f32.gmra.mrb[0].mxu0 %v3716
    %v4305 = vpop.f32.mrb[0].mxu0
    %v4306 = vadd.f32 0.0, %v4305
    %v4307 = vpop.f32.mrb[0].mxu0
    %4308 = vmatprep.mubr.f32.mxu0 0.0
    %4309 = vmatmul.mubr.f32.gmra.mrb[0].mxu0 %v3719
    %v4310 = vpop.f32.mrb[0].mxu0
    %v4311 = vadd.f32 0.0, %v4310
    %v4312 = vpop.f32.mrb[0].mxu0
    %4313 = vmatprep.mubr.f32.mxu0 0.0
    %4314 = vmatmul.mubr.f32.gmra.mrb[0].mxu0 %v3722
    %v4315 = vpop.f32.mrb[0].mxu0
    %v4316 = vadd.f32 0.0, %v4315
    %v4317 = vpop.f32.mrb[0].mxu0
    %4318 = vmatprep.mubr.f32.mxu0 0.0
    %4319 = vmatmul.mubr.f32.gmra.mrb[0].mxu0 %v3725
    %v4320 = vpop.f32.mrb[0].mxu0
    %v4321 = vadd.f32 0.0, %v4320
    %v4322 = vpop.f32.mrb[0].mxu0
    %4323 = vmatprep.mubr.f32.mxu0 0.0
    %4324 = vmatmul.mubr.f32.gmra.mrb[0].mxu0 %v3728
    %v4325 = vpop.f32.mrb[0].mxu0
    %v4326 = vadd.f32 0.0, %v4325
    %v4327 = vpop.f32.mrb[0].mxu0
    %4328 = vmatprep.mubr.f32.mxu0 0.0
    %4329 = vmatmul.mubr.f32.gmra.mrb[0].mxu0 %v3731
    %v4330 = vpop.f32.mrb[0].mxu0
    %v4331 = vadd.f32 0.0, %v4330
    %v4332 = vpop.f32.mrb[0].mxu0
    %4333 = vmatprep.mubr.f32.mxu0 0.0
    %4334 = vmatmul.mubr.f32.gmra.mrb[0].mxu0 %v3734
    %v4335 = vpop.f32.mrb[0].mxu0
    %v4336 = vadd.f32 0.0, %v4335
    %v4337 = vpop.f32.mrb[0].mxu0
    %4338 = vmatprep.mubr.f32.mxu0 0.0
    %4339 = vmatmul.mubr.f32.gmra.mrb[0].mxu0 %v3737
    %v4340 = vpop.f32.mrb[0].mxu0
    %v4341 = vadd.f32 0.0, %v4340
    %v4342 = vpop.f32.mrb[0].mxu0
    %4343 = vmatprep.mubr.f32.mxu0 0.0
    %4344 = vmatmul.mubr.f32.gmra.mrb[0].mxu0 %v3740
    %v4345 = vpop.f32.mrb[0].mxu0
    %v4346 = vadd.f32 0.0, %v4345
    %v4347 = vpop.f32.mrb[0].mxu0
    %4348 = vmatprep.mubr.f32.mxu0 0.0
    %4349 = vmatmul.mubr.f32.gmra.mrb[0].mxu0 %v3743
    %v4350 = vpop.f32.mrb[0].mxu0
    %v4351 = vadd.f32 0.0, %v4350
    %v4352 = vpop.f32.mrb[0].mxu0
    %4353 = vmatprep.mubr.f32.mxu0 0.0
    %4354 = vmatmul.mubr.f32.gmra.mrb[0].mxu0 %v3746
    %v4355 = vpop.f32.mrb[0].mxu0
    %v4356 = vadd.f32 0.0, %v4355
    %v4357 = vpop.f32.mrb[0].mxu0
    %4358 = vmatprep.mubr.f32.mxu0 0.0
    %4359 = vmatmul.mubr.f32.gmra.mrb[0].mxu0 %v3749
    %v4360 = vpop.f32.mrb[0].mxu0
    %v4361 = vadd.f32 0.0, %v4360
    %v4362 = vpop.f32.mrb[0].mxu0
    %4363 = vmatprep.mubr.f32.mxu0 0.0
    %4364 = vmatmul.mubr.f32.gmra.mrb[0].mxu0 %v3752
    %v4365 = vpop.f32.mrb[0].mxu0
    %v4366 = vadd.f32 0.0, %v4365
    %v4367 = vpop.f32.mrb[0].mxu0
    %4368 = vmatprep.mubr.f32.mxu0 0.0
    %4369 = vmatmul.mubr.f32.gmra.mrb[0].mxu0 %v3755
    %v4370 = vpop.f32.mrb[0].mxu0
    %v4371 = vadd.f32 0.0, %v4370
    %v4372 = vpop.f32.mrb[0].mxu0
    %4373 = vmatprep.mubr.f32.mxu0 0.0
    %4374 = vmatmul.mubr.f32.gmra.mrb[0].mxu0 %v3758
    %v4375 = vpop.f32.mrb[0].mxu0
    %v4376 = vadd.f32 0.0, %v4375
    %v4377 = vpop.f32.mrb[0].mxu0
    %4378 = vmatprep.mubr.f32.mxu0 0.0
    %4379 = vmatmul.mubr.f32.gmra.mrb[0].mxu0 %v3761
    %v4380 = vpop.f32.mrb[0].mxu0
    %v4381 = vadd.f32 0.0, %v4380
    %v4382 = vpop.f32.mrb[0].mxu0
    %4383 = vmatprep.mubr.f32.mxu0 0.0
    %4384 = vmatmul.mubr.f32.gmra.mrb[0].mxu0 %v3764
    %v4385 = vpop.f32.mrb[0].mxu0
    %v4386 = vadd.f32 0.0, %v4385
    %v4387 = vpop.f32.mrb[0].mxu0
    %4388 = vmatprep.mubr.f32.mxu0 0.0
    %4389 = vmatmul.mubr.f32.gmra.mrb[0].mxu0 %v3767
    %v4390 = vpop.f32.mrb[0].mxu0
    %v4391 = vadd.f32 0.0, %v4390
    %v4392 = vpop.f32.mrb[0].mxu0
    %4393 = vmatprep.mubr.f32.mxu0 0.0
    %4394 = vmatmul.mubr.f32.gmra.mrb[0].mxu0 %v3770
    %v4395 = vpop.f32.mrb[0].mxu0
    %v4396 = vadd.f32 0.0, %v4395
    %v4397 = vpop.f32.mrb[0].mxu0
    %4398 = vmatprep.mubr.f32.mxu0 0.0
    %4399 = vmatmul.mubr.f32.gmra.mrb[0].mxu0 %v3773
    %v4400 = vpop.f32.mrb[0].mxu0
    %v4401 = vadd.f32 0.0, %v4400
    %v4402 = vpop.f32.mrb[0].mxu0
    %4403 = vmatprep.mubr.f32.mxu0 0.0
    %4404 = vmatmul.mubr.f32.gmra.mrb[0].mxu0 %v3776
    %v4405 = vpop.f32.mrb[0].mxu0
    %v4406 = vadd.f32 0.0, %v4405
    %v4407 = vpop.f32.mrb[0].mxu0
    %4408 = vmatprep.mubr.f32.mxu0 0.0
    %4409 = vmatmul.mubr.f32.gmra.mrb[0].mxu0 %v3779
    %v4410 = vpop.f32.mrb[0].mxu0
    %v4411 = vadd.f32 0.0, %v4410
    %v4412 = vpop.f32.mrb[0].mxu0
    %4413 = vmatprep.mubr.f32.mxu0 0.0
    %4414 = vmatmul.mubr.f32.gmra.mrb[0].mxu0 %v3782
    %v4415 = vpop.f32.mrb[0].mxu0
    %v4416 = vadd.f32 0.0, %v4415
    %v4417 = vpop.f32.mrb[0].mxu0
    %4418 = vmatprep.mubr.f32.mxu0 0.0
    %4419 = vmatmul.mubr.f32.gmra.mrb[0].mxu0 %v3785
    %v4420 = vpop.f32.mrb[0].mxu0
    %v4421 = vadd.f32 0.0, %v4420
    %v4422 = vpop.f32.mrb[0].mxu0
    %4423 = vmatprep.mubr.f32.mxu0 0.0
    %4424 = vmatmul.mubr.f32.gmra.mrb[0].mxu0 %v3788
    %v4425 = vpop.f32.mrb[0].mxu0
    %v4426 = vadd.f32 0.0, %v4425
    %v4427 = vpop.f32.mrb[0].mxu0
    %4428 = vmatprep.mubr.f32.mxu0 0.0
    %4429 = vmatmul.mubr.f32.gmra.mrb[0].mxu0 %v3791
    %v4430 = vpop.f32.mrb[0].mxu0
    %v4431 = vadd.f32 0.0, %v4430
    %v4432 = vpop.f32.mrb[0].mxu0
    %4433 = vmatprep.mubr.f32.mxu0 0.0
    %4434 = vmatmul.mubr.f32.gmra.mrb[0].mxu0 %v3794
    %v4435 = vpop.f32.mrb[0].mxu0
    %v4436 = vadd.f32 0.0, %v4435
    %v4437 = vpop.f32.mrb[0].mxu0
    %4438 = vmatprep.mubr.f32.mxu0 0.0
    %4439 = vmatmul.mubr.f32.gmra.mrb[0].mxu0 %v3797
    %v4440 = vpop.f32.mrb[0].mxu0
    %v4441 = vadd.f32 0.0, %v4440
    %v4442 = vpop.f32.mrb[0].mxu0
    %4443 = vmatprep.mubr.f32.mxu0 0.0
    %4444 = vmatmul.mubr.f32.gmra.mrb[0].mxu0 %v3800
    %v4445 = vpop.f32.mrb[0].mxu0
    %v4446 = vadd.f32 0.0, %v4445
    %v4447 = vpop.f32.mrb[0].mxu0
    %4448 = vmatprep.mubr.f32.mxu0 0.0
    %4449 = vmatmul.mubr.f32.gmra.mrb[0].mxu0 %v3803
    %v4450 = vpop.f32.mrb[0].mxu0
    %v4451 = vadd.f32 0.0, %v4450
    %v4452 = vpop.f32.mrb[0].mxu0
    %4453 = vmatprep.mubr.f32.mxu0 0.0
    %4454 = vmatmul.mubr.f32.gmra.mrb[0].mxu0 %v3806
    %v4455 = vpop.f32.mrb[0].mxu0
    %v4456 = vadd.f32 0.0, %v4455
    %v4457 = vpop.f32.mrb[0].mxu0
    %4458 = vmatprep.mubr.f32.mxu0 0.0
    %4459 = vmatmul.mubr.f32.gmra.mrb[0].mxu0 %v3809
    %v4460 = vpop.f32.mrb[0].mxu0
    %v4461 = vadd.f32 0.0, %v4460
    %v4462 = vpop.f32.mrb[0].mxu0
    %4463 = vdwg.mxu0
    %4477 = vrot.lane.b32.xlu0 %v3946, 8
    %v4478 = vpop.permute.xlu0 %4477
    %4479 = vrot.lane.b32.xlu0 %v3951, 8
    %v4480 = vpop.permute.xlu0 %4479
    %4481 = vrot.lane.b32.xlu0 %v3956, 8
    %v4482 = vpop.permute.xlu0 %4481
    %4483 = vrot.lane.b32.xlu0 %v3961, 8
    %v4484 = vpop.permute.xlu0 %4483
    %4485 = vrot.lane.b32.xlu0 %v3966, 8
    %v4486 = vpop.permute.xlu0 %4485
    %4487 = vrot.lane.b32.xlu0 %v3971, 8
    %v4488 = vpop.permute.xlu0 %4487
    %4489 = vrot.lane.b32.xlu0 %v3976, 8
    %v4490 = vpop.permute.xlu0 %4489
    %4491 = vrot.lane.b32.xlu0 %v3981, 8
    %v4492 = vpop.permute.xlu0 %4491
    %4493 = vrot.lane.b32.xlu0 %v3986, 8
    %v4494 = vpop.permute.xlu0 %4493
    %4495 = vrot.lane.b32.xlu0 %v3991, 8
    %v4496 = vpop.permute.xlu0 %4495
    %4497 = vrot.lane.b32.xlu0 %v3996, 8
    %v4498 = vpop.permute.xlu0 %4497
    %4499 = vrot.lane.b32.xlu0 %v4001, 8
    %v4500 = vpop.permute.xlu0 %4499
    %4501 = vrot.lane.b32.xlu0 %v4006, 8
    %v4502 = vpop.permute.xlu0 %4501
    %4529 = vrot.lane.b32.xlu0 %v4011, 16
    %v4530 = vpop.permute.xlu0 %4529
    %4531 = vrot.lane.b32.xlu0 %v4016, 16
    %v4532 = vpop.permute.xlu0 %4531
    %4533 = vrot.lane.b32.xlu0 %v4021, 16
    %v4534 = vpop.permute.xlu0 %4533
    %4535 = vrot.lane.b32.xlu0 %v4026, 16
    %v4536 = vpop.permute.xlu0 %4535
    %4537 = vrot.lane.b32.xlu0 %v4031, 16
    %v4538 = vpop.permute.xlu0 %4537
    %4539 = vrot.lane.b32.xlu0 %v4036, 16
    %v4540 = vpop.permute.xlu0 %4539
    %4541 = vrot.lane.b32.xlu0 %v4041, 16
    %v4542 = vpop.permute.xlu0 %4541
    %4543 = vrot.lane.b32.xlu0 %v4046, 16
    %v4544 = vpop.permute.xlu0 %4543
    %4545 = vrot.lane.b32.xlu0 %v4051, 16
    %v4546 = vpop.permute.xlu0 %4545
    %4547 = vrot.lane.b32.xlu0 %v4056, 16
    %v4548 = vpop.permute.xlu0 %4547
    %4549 = vrot.lane.b32.xlu0 %v4061, 16
    %v4550 = vpop.permute.xlu0 %4549
    %4551 = vrot.lane.b32.xlu0 %v4066, 16
    %v4552 = vpop.permute.xlu0 %4551
    %4553 = vrot.lane.b32.xlu0 %v4071, 16
    %v4554 = vpop.permute.xlu0 %4553
    %4581 = vrot.lane.b32.xlu0 %v4076, 24
    %v4582 = vpop.permute.xlu0 %4581
    %4583 = vrot.lane.b32.xlu0 %v4081, 24
    %v4584 = vpop.permute.xlu0 %4583
    %4585 = vrot.lane.b32.xlu0 %v4086, 24
    %v4586 = vpop.permute.xlu0 %4585
    %4587 = vrot.lane.b32.xlu0 %v4091, 24
    %v4588 = vpop.permute.xlu0 %4587
    %4589 = vrot.lane.b32.xlu0 %v4096, 24
    %v4590 = vpop.permute.xlu0 %4589
    %4591 = vrot.lane.b32.xlu0 %v4101, 24
    %v4592 = vpop.permute.xlu0 %4591
    %4593 = vrot.lane.b32.xlu0 %v4106, 24
    %v4594 = vpop.permute.xlu0 %4593
    %4595 = vrot.lane.b32.xlu0 %v4111, 24
    %v4596 = vpop.permute.xlu0 %4595
    %4597 = vrot.lane.b32.xlu0 %v4116, 24
    %v4598 = vpop.permute.xlu0 %4597
    %4599 = vrot.lane.b32.xlu0 %v4121, 24
    %v4600 = vpop.permute.xlu0 %4599
    %4601 = vrot.lane.b32.xlu0 %v4126, 24
    %v4602 = vpop.permute.xlu0 %4601
    %4603 = vrot.lane.b32.xlu0 %v4131, 24
    %v4604 = vpop.permute.xlu0 %4603
    %4605 = vrot.lane.b32.xlu0 %v4136, 24
    %v4606 = vpop.permute.xlu0 %4605
    %4633 = vrot.lane.b32.xlu0 %v4141, 32
    %v4634 = vpop.permute.xlu0 %4633
    %4635 = vrot.lane.b32.xlu0 %v4146, 32
    %v4636 = vpop.permute.xlu0 %4635
    %4637 = vrot.lane.b32.xlu0 %v4151, 32
    %v4638 = vpop.permute.xlu0 %4637
    %4639 = vrot.lane.b32.xlu0 %v4156, 32
    %v4640 = vpop.permute.xlu0 %4639
    %4641 = vrot.lane.b32.xlu0 %v4161, 32
    %v4642 = vpop.permute.xlu0 %4641
    %4643 = vrot.lane.b32.xlu0 %v4166, 32
    %v4644 = vpop.permute.xlu0 %4643
    %4645 = vrot.lane.b32.xlu0 %v4171, 32
    %v4646 = vpop.permute.xlu0 %4645
    %4647 = vrot.lane.b32.xlu0 %v4176, 32
    %v4648 = vpop.permute.xlu0 %4647
    %4649 = vrot.lane.b32.xlu0 %v4181, 32
    %v4650 = vpop.permute.xlu0 %4649
    %4651 = vrot.lane.b32.xlu0 %v4186, 32
    %v4652 = vpop.permute.xlu0 %4651
    %4653 = vrot.lane.b32.xlu0 %v4191, 32
    %v4654 = vpop.permute.xlu0 %4653
    %4655 = vrot.lane.b32.xlu0 %v4196, 32
    %v4656 = vpop.permute.xlu0 %4655
    %4657 = vrot.lane.b32.xlu0 %v4201, 32
    %v4658 = vpop.permute.xlu0 %4657
    %4685 = vrot.lane.b32.xlu0 %v4206, 40
    %v4686 = vpop.permute.xlu0 %4685
    %4687 = vrot.lane.b32.xlu0 %v4211, 40
    %v4688 = vpop.permute.xlu0 %4687
    %4689 = vrot.lane.b32.xlu0 %v4216, 40
    %v4690 = vpop.permute.xlu0 %4689
    %4691 = vrot.lane.b32.xlu0 %v4221, 40
    %v4692 = vpop.permute.xlu0 %4691
    %4693 = vrot.lane.b32.xlu0 %v4226, 40
    %v4694 = vpop.permute.xlu0 %4693
    %4695 = vrot.lane.b32.xlu0 %v4231, 40
    %v4696 = vpop.permute.xlu0 %4695
    %4697 = vrot.lane.b32.xlu0 %v4236, 40
    %v4698 = vpop.permute.xlu0 %4697
    %4699 = vrot.lane.b32.xlu0 %v4241, 40
    %v4700 = vpop.permute.xlu0 %4699
    %4701 = vrot.lane.b32.xlu0 %v4246, 40
    %v4702 = vpop.permute.xlu0 %4701
    %4703 = vrot.lane.b32.xlu0 %v4251, 40
    %v4704 = vpop.permute.xlu0 %4703
    %4705 = vrot.lane.b32.xlu0 %v4256, 40
    %v4706 = vpop.permute.xlu0 %4705
    %4707 = vrot.lane.b32.xlu0 %v4261, 40
    %v4708 = vpop.permute.xlu0 %4707
    %4709 = vrot.lane.b32.xlu0 %v4266, 40
    %v4710 = vpop.permute.xlu0 %4709
    %4737 = vrot.lane.b32.xlu0 %v4271, 48
    %v4738 = vpop.permute.xlu0 %4737
    %4739 = vrot.lane.b32.xlu0 %v4276, 48
    %v4740 = vpop.permute.xlu0 %4739
    %4741 = vrot.lane.b32.xlu0 %v4281, 48
    %v4742 = vpop.permute.xlu0 %4741
    %4743 = vrot.lane.b32.xlu0 %v4286, 48
    %v4744 = vpop.permute.xlu0 %4743
    %4745 = vrot.lane.b32.xlu0 %v4291, 48
    %v4746 = vpop.permute.xlu0 %4745
    %4747 = vrot.lane.b32.xlu0 %v4296, 48
    %v4748 = vpop.permute.xlu0 %4747
    %4749 = vrot.lane.b32.xlu0 %v4301, 48
    %v4750 = vpop.permute.xlu0 %4749
    %4751 = vrot.lane.b32.xlu0 %v4306, 48
    %v4752 = vpop.permute.xlu0 %4751
    %4753 = vrot.lane.b32.xlu0 %v4311, 48
    %v4754 = vpop.permute.xlu0 %4753
    %4755 = vrot.lane.b32.xlu0 %v4316, 48
    %v4756 = vpop.permute.xlu0 %4755
    %4757 = vrot.lane.b32.xlu0 %v4321, 48
    %v4758 = vpop.permute.xlu0 %4757
    %4759 = vrot.lane.b32.xlu0 %v4326, 48
    %v4760 = vpop.permute.xlu0 %4759
    %4761 = vrot.lane.b32.xlu0 %v4331, 48
    %v4762 = vpop.permute.xlu0 %4761
    %4789 = vrot.lane.b32.xlu0 %v4336, 56
    %v4790 = vpop.permute.xlu0 %4789
    %4791 = vrot.lane.b32.xlu0 %v4341, 56
    %v4792 = vpop.permute.xlu0 %4791
    %4793 = vrot.lane.b32.xlu0 %v4346, 56
    %v4794 = vpop.permute.xlu0 %4793
    %4795 = vrot.lane.b32.xlu0 %v4351, 56
    %v4796 = vpop.permute.xlu0 %4795
    %4797 = vrot.lane.b32.xlu0 %v4356, 56
    %v4798 = vpop.permute.xlu0 %4797
    %4799 = vrot.lane.b32.xlu0 %v4361, 56
    %v4800 = vpop.permute.xlu0 %4799
    %4801 = vrot.lane.b32.xlu0 %v4366, 56
    %v4802 = vpop.permute.xlu0 %4801
    %4803 = vrot.lane.b32.xlu0 %v4371, 56
    %v4804 = vpop.permute.xlu0 %4803
    %4805 = vrot.lane.b32.xlu0 %v4376, 56
    %v4806 = vpop.permute.xlu0 %4805
    %4807 = vrot.lane.b32.xlu0 %v4381, 56
    %v4808 = vpop.permute.xlu0 %4807
    %4809 = vrot.lane.b32.xlu0 %v4386, 56
    %v4810 = vpop.permute.xlu0 %4809
    %4811 = vrot.lane.b32.xlu0 %v4391, 56
    %v4812 = vpop.permute.xlu0 %4811
    %4813 = vrot.lane.b32.xlu0 %v4396, 56
    %v4814 = vpop.permute.xlu0 %4813
    %4841 = vrot.lane.b32.xlu0 %v4401, 64
    %v4842 = vpop.permute.xlu0 %4841
    %4843 = vrot.lane.b32.xlu0 %v4406, 64
    %v4844 = vpop.permute.xlu0 %4843
    %4845 = vrot.lane.b32.xlu0 %v4411, 64
    %v4846 = vpop.permute.xlu0 %4845
    %4847 = vrot.lane.b32.xlu0 %v4416, 64
    %v4848 = vpop.permute.xlu0 %4847
    %4849 = vrot.lane.b32.xlu0 %v4421, 64
    %v4850 = vpop.permute.xlu0 %4849
    %4851 = vrot.lane.b32.xlu0 %v4426, 64
    %v4852 = vpop.permute.xlu0 %4851
    %4853 = vrot.lane.b32.xlu0 %v4431, 64
    %v4854 = vpop.permute.xlu0 %4853
    %4855 = vrot.lane.b32.xlu0 %v4436, 64
    %v4856 = vpop.permute.xlu0 %4855
    %4857 = vrot.lane.b32.xlu0 %v4441, 64
    %v4858 = vpop.permute.xlu0 %4857
    %4859 = vrot.lane.b32.xlu0 %v4446, 64
    %v4860 = vpop.permute.xlu0 %4859
    %4861 = vrot.lane.b32.xlu0 %v4451, 64
    %v4862 = vpop.permute.xlu0 %4861
    %4863 = vrot.lane.b32.xlu0 %v4456, 64
    %v4864 = vpop.permute.xlu0 %4863
    %4865 = vrot.lane.b32.xlu0 %v4461, 64
    %v4866 = vpop.permute.xlu0 %4865
    %v4880 = vsel %vm2741, %v3881, %v4478
    %v4881 = vsel %vm2741, %v3886, %v4480
    %v4882 = vsel %vm2741, %v3891, %v4482
    %v4883 = vsel %vm2741, %v3896, %v4484
    %v4884 = vsel %vm2741, %v3901, %v4486
    %v4885 = vsel %vm2741, %v3906, %v4488
    %v4886 = vsel %vm2741, %v3911, %v4490
    %v4887 = vsel %vm2741, %v3916, %v4492
    %v4888 = vsel %vm2741, %v3921, %v4494
    %v4889 = vsel %vm2741, %v3926, %v4496
    %v4890 = vsel %vm2741, %v3931, %v4498
    %v4891 = vsel %vm2741, %v3936, %v4500
    %v4892 = vsel %vm2741, %v3941, %v4502
    %vm4893 = vcmask 130048
    %v4894 = vsel %vm4893, %v4880, %v4530
    %v4895 = vsel %vm4893, %v4881, %v4532
    %v4896 = vsel %vm4893, %v4882, %v4534
    %v4897 = vsel %vm4893, %v4883, %v4536
    %v4898 = vsel %vm4893, %v4884, %v4538
    %v4899 = vsel %vm4893, %v4885, %v4540
    %v4900 = vsel %vm4893, %v4886, %v4542
    %v4901 = vsel %vm4893, %v4887, %v4544
    %v4902 = vsel %vm4893, %v4888, %v4546
    %v4903 = vsel %vm4893, %v4889, %v4548
    %v4904 = vsel %vm4893, %v4890, %v4550
    %v4905 = vsel %vm4893, %v4891, %v4552
    %v4906 = vsel %vm4893, %v4892, %v4554
    %v4907 = vsel %vm2426, %v4894, %v4582
    %v4908 = vsel %vm2426, %v4895, %v4584
    %v4909 = vsel %vm2426, %v4896, %v4586
    %v4910 = vsel %vm2426, %v4897, %v4588
    %v4911 = vsel %vm2426, %v4898, %v4590
    %v4912 = vsel %vm2426, %v4899, %v4592
    %v4913 = vsel %vm2426, %v4900, %v4594
    %v4914 = vsel %vm2426, %v4901, %v4596
    %v4915 = vsel %vm2426, %v4902, %v4598
    %v4916 = vsel %vm2426, %v4903, %v4600
    %v4917 = vsel %vm2426, %v4904, %v4602
    %v4918 = vsel %vm2426, %v4905, %v4604
    %v4919 = vsel %vm2426, %v4906, %v4606
    %vm4920 = vcmask 261120
    %v4921 = vsel %vm4920, %v4907, %v4634
    %v4922 = vsel %vm4920, %v4908, %v4636
    %v4923 = vsel %vm4920, %v4909, %v4638
    %v4924 = vsel %vm4920, %v4910, %v4640
    %v4925 = vsel %vm4920, %v4911, %v4642
    %v4926 = vsel %vm4920, %v4912, %v4644
    %v4927 = vsel %vm4920, %v4913, %v4646
    %v4928 = vsel %vm4920, %v4914, %v4648
    %v4929 = vsel %vm4920, %v4915, %v4650
    %v4930 = vsel %vm4920, %v4916, %v4652
    %v4931 = vsel %vm4920, %v4917, %v4654
    %v4932 = vsel %vm4920, %v4918, %v4656
    %v4933 = vsel %vm4920, %v4919, %v4658
    %vm4934 = vcmask 326656
    %v4935 = vsel %vm4934, %v4921, %v4686
    %v4936 = vsel %vm4934, %v4922, %v4688
    %v4937 = vsel %vm4934, %v4923, %v4690
    %v4938 = vsel %vm4934, %v4924, %v4692
    %v4939 = vsel %vm4934, %v4925, %v4694
    %v4940 = vsel %vm4934, %v4926, %v4696
    %v4941 = vsel %vm4934, %v4927, %v4698
    %v4942 = vsel %vm4934, %v4928, %v4700
    %v4943 = vsel %vm4934, %v4929, %v4702
    %v4944 = vsel %vm4934, %v4930, %v4704
    %v4945 = vsel %vm4934, %v4931, %v4706
    %v4946 = vsel %vm4934, %v4932, %v4708
    %v4947 = vsel %vm4934, %v4933, %v4710
    %v4948 = vsel %vm2454, %v4935, %v4738
    %v4949 = vsel %vm2454, %v4936, %v4740
    %v4950 = vsel %vm2454, %v4937, %v4742
    %v4951 = vsel %vm2454, %v4938, %v4744
    %v4952 = vsel %vm2454, %v4939, %v4746
    %v4953 = vsel %vm2454, %v4940, %v4748
    %v4954 = vsel %vm2454, %v4941, %v4750
    %v4955 = vsel %vm2454, %v4942, %v4752
    %v4956 = vsel %vm2454, %v4943, %v4754
    %v4957 = vsel %vm2454, %v4944, %v4756
    %v4958 = vsel %vm2454, %v4945, %v4758
    %v4959 = vsel %vm2454, %v4946, %v4760
    %v4960 = vsel %vm2454, %v4947, %v4762
    %vm4961 = vcmask 457728
    %v4962 = vsel %vm4961, %v4948, %v4790
    %v4963 = vsel %vm4961, %v4949, %v4792
    %v4964 = vsel %vm4961, %v4950, %v4794
    %v4965 = vsel %vm4961, %v4951, %v4796
    %v4966 = vsel %vm4961, %v4952, %v4798
    %v4967 = vsel %vm4961, %v4953, %v4800
    %v4968 = vsel %vm4961, %v4954, %v4802
    %v4969 = vsel %vm4961, %v4955, %v4804
    %v4970 = vsel %vm4961, %v4956, %v4806
    %v4971 = vsel %vm4961, %v4957, %v4808
    %v4972 = vsel %vm4961, %v4958, %v4810
    %v4973 = vsel %vm4961, %v4959, %v4812
    %v4974 = vsel %vm4961, %v4960, %v4814
    %vm4975 = vcmask 523264
    %v4976 = vsel %vm4975, %v4962, %v4842
    %v4977 = vsel %vm4975, %v4963, %v4844
    %v4978 = vsel %vm4975, %v4964, %v4846
    %v4979 = vsel %vm4975, %v4965, %v4848
    %v4980 = vsel %vm4975, %v4966, %v4850
    %v4981 = vsel %vm4975, %v4967, %v4852
    %v4982 = vsel %vm4975, %v4968, %v4854
    %v4983 = vsel %vm4975, %v4969, %v4856
    %v4984 = vsel %vm4975, %v4970, %v4858
    %v4985 = vsel %vm4975, %v4971, %v4860
    %v4986 = vsel %vm4975, %v4972, %v4862
    %v4987 = vsel %vm4975, %v4973, %v4864
    %v4988 = vsel %vm4975, %v4974, %v4866
    %v4989 = vlaneseq
    %v4990 = vshrl.u32 %v4989, 7
    %v4991 = vsub.s32 0, %v4990
    %v4992 = vrot.slane %v3449, %v4991
    %v4994 = vsel %vm2482, %v4976, 0
    %v4997 = vsel %vm2482, %v4977, 0
    %v5000 = vsel %vm2482, %v4978, 0
    %v5003 = vsel %vm2482, %v4979, 0
    %v5006 = vsel %vm2482, %v4980, 0
    %v5009 = vsel %vm2482, %v4981, 0
    %v5012 = vsel %vm2482, %v4982, 0
    %v5015 = vsel %vm2482, %v4983, 0
    %v5018 = vsel %vm2482, %v4984, 0
    %v5021 = vsel %vm2482, %v4985, 0
    %v5024 = vsel %vm2482, %v4986, 0
    %v5027 = vsel %vm2482, %v4987, 0
    %v5030 = vsel %vm2482, %v4988, 0
    %5032 = vmatprep.subr.mxu0 0.0
    %5033 = vmatpush1.msra.mxu0 %v3450
    %5034 = vmatprep.subr.mxu0 0.0
    %5035 = vmatpush1.msra.mxu0 %v3451
    %5036 = vmatprep.subr.mxu0 0.0
    %5037 = vmatpush1.msra.mxu0 %v3452
    %5038 = vmatprep.subr.mxu0 0.0
    %5039 = vmatpush1.msra.mxu0 %v3453
    %5040 = vmatprep.subr.mxu0 0.0
    %5041 = vmatpush1.msra.mxu0 %v3454
    %5042 = vmatprep.subr.mxu0 0.0
    %5043 = vmatpush1.msra.mxu0 %v3455
    %5044 = vmatprep.subr.mxu0 0.0
    %5045 = vmatpush1.msra.mxu0 %v3456
    %5046 = vmatprep.subr.mxu0 0.0
    %5047 = vmatpush1.msra.mxu0 %v3457
    %5048 = vmatprep.subr.mxu0 0.0
    %5049 = vmatpush1.msra.mxu0 %v3458
    %5050 = vmatprep.subr.mxu0 0.0
    %5051 = vmatpush1.msra.mxu0 0.0
    %5052 = vmatprep.subr.mxu0 0.0
    %5053 = vmatpush1.msra.mxu0 0.0
    %5054 = vmatprep.subr.mxu0 0.0
    %5055 = vmatpush1.msra.mxu0 0.0
    %5056 = vmatprep.subr.mxu0 0.0
    %5057 = vmatpush1.msra.mxu0 0.0
    %5058 = vmatprep.subr.mxu0 0.0
    %5059 = vmatpush1.msra.mxu0 0.0
    %5060 = vmatprep.subr.mxu0 0.0
    %5061 = vmatpush1.msra.mxu0 0.0
    %5062 = vmatprep.subr.mxu0 0.0
    %5063 = vmatpush1.msra.mxu0 0.0
    %5064 = vmatprep.subr.mxu0 0.0
    %5065 = vmatpush1.msra.mxu0 0.0
    %5066 = vmatprep.subr.mxu0 0.0
    %5067 = vmatpush1.msra.mxu0 0.0
    %5068 = vmatprep.subr.mxu0 0.0
    %5069 = vmatpush1.msra.mxu0 0.0
    %5070 = vmatprep.subr.mxu0 0.0
    %5071 = vmatpush1.msra.mxu0 0.0
    %5072 = vmatprep.subr.mxu0 0.0
    %5073 = vmatpush1.msra.mxu0 0.0
    %5074 = vmatprep.subr.mxu0 0.0
    %5075 = vmatpush1.msra.mxu0 0.0
    %5076 = vmatprep.subr.mxu0 0.0
    %5077 = vmatpush1.msra.mxu0 0.0
    %5078 = vmatprep.subr.mxu0 0.0
    %5079 = vmatpush1.msra.mxu0 0.0
    %5080 = vmatprep.subr.mxu0 0.0
    %5081 = vmatpush1.msra.mxu0 0.0
    %5082 = vmatprep.subr.mxu0 0.0
    %5083 = vmatpush1.msra.mxu0 0.0
    %5084 = vmatprep.subr.mxu0 0.0
    %5085 = vmatpush1.msra.mxu0 0.0
    %5086 = vmatprep.subr.mxu0 0.0
    %5087 = vmatpush1.msra.mxu0 0.0
    %5088 = vmatprep.subr.mxu0 0.0
    %5089 = vmatpush1.msra.mxu0 0.0
    %5090 = vmatprep.subr.mxu0 0.0
    %5091 = vmatpush1.msra.mxu0 0.0
    %5092 = vmatprep.subr.mxu0 0.0
    %5093 = vmatpush1.msra.mxu0 0.0
    %5094 = vmatprep.subr.mxu0 0.0
    %5095 = vmatpush1.msra.mxu0 0.0
    %5096 = vmatprep.mubr.f32.mxu0 0.0
    %5097 = vmatmul.mubr.f32.gmra.mrb[0].mxu0 %v4994
    %v5098 = vpop.f32.mrb[0].mxu0
    %v5099 = vadd.f32 %v4992, %v5098
    %v5100 = vpop.f32.mrb[0].mxu0
    %5101 = vmatprep.mubr.f32.mxu0 0.0
    %5102 = vmatmul.mubr.f32.gmra.mrb[0].mxu0 %v4997
    %v5103 = vpop.f32.mrb[0].mxu0
    %v5104 = vadd.f32 %v4992, %v5103
    %v5105 = vpop.f32.mrb[0].mxu0
    %5106 = vmatprep.mubr.f32.mxu0 0.0
    %5107 = vmatmul.mubr.f32.gmra.mrb[0].mxu0 %v5000
    %v5108 = vpop.f32.mrb[0].mxu0
    %v5109 = vadd.f32 %v4992, %v5108
    %v5110 = vpop.f32.mrb[0].mxu0
    %5111 = vmatprep.mubr.f32.mxu0 0.0
    %5112 = vmatmul.mubr.f32.gmra.mrb[0].mxu0 %v5003
    %v5113 = vpop.f32.mrb[0].mxu0
    %v5114 = vadd.f32 %v4992, %v5113
    %v5115 = vpop.f32.mrb[0].mxu0
    %5116 = vmatprep.mubr.f32.mxu0 0.0
    %5117 = vmatmul.mubr.f32.gmra.mrb[0].mxu0 %v5006
    %v5118 = vpop.f32.mrb[0].mxu0
    %v5119 = vadd.f32 %v4992, %v5118
    %v5120 = vpop.f32.mrb[0].mxu0
    %5121 = vmatprep.mubr.f32.mxu0 0.0
    %5122 = vmatmul.mubr.f32.gmra.mrb[0].mxu0 %v5009
    %v5123 = vpop.f32.mrb[0].mxu0
    %v5124 = vadd.f32 %v4992, %v5123
    %v5125 = vpop.f32.mrb[0].mxu0
    %5126 = vmatprep.mubr.f32.mxu0 0.0
    %5127 = vmatmul.mubr.f32.gmra.mrb[0].mxu0 %v5012
    %v5128 = vpop.f32.mrb[0].mxu0
    %v5129 = vadd.f32 %v4992, %v5128
    %v5130 = vpop.f32.mrb[0].mxu0
    %5131 = vmatprep.mubr.f32.mxu0 0.0
    %5132 = vmatmul.mubr.f32.gmra.mrb[0].mxu0 %v5015
    %v5133 = vpop.f32.mrb[0].mxu0
    %v5134 = vadd.f32 %v4992, %v5133
    %v5135 = vpop.f32.mrb[0].mxu0
    %5136 = vmatprep.mubr.f32.mxu0 0.0
    %5137 = vmatmul.mubr.f32.gmra.mrb[0].mxu0 %v5018
    %v5138 = vpop.f32.mrb[0].mxu0
    %v5139 = vadd.f32 %v4992, %v5138
    %v5140 = vpop.f32.mrb[0].mxu0
    %5141 = vmatprep.mubr.f32.mxu0 0.0
    %5142 = vmatmul.mubr.f32.gmra.mrb[0].mxu0 %v5021
    %v5143 = vpop.f32.mrb[0].mxu0
    %v5144 = vadd.f32 %v4992, %v5143
    %v5145 = vpop.f32.mrb[0].mxu0
    %5146 = vmatprep.mubr.f32.mxu0 0.0
    %5147 = vmatmul.mubr.f32.gmra.mrb[0].mxu0 %v5024
    %v5148 = vpop.f32.mrb[0].mxu0
    %v5149 = vadd.f32 %v4992, %v5148
    %v5150 = vpop.f32.mrb[0].mxu0
    %5151 = vmatprep.mubr.f32.mxu0 0.0
    %5152 = vmatmul.mubr.f32.gmra.mrb[0].mxu0 %v5027
    %v5153 = vpop.f32.mrb[0].mxu0
    %v5154 = vadd.f32 %v4992, %v5153
    %v5155 = vpop.f32.mrb[0].mxu0
    %5156 = vmatprep.mubr.f32.mxu0 0.0
    %5157 = vmatmul.mubr.f32.gmra.mrb[0].mxu0 %v5030
    %v5158 = vpop.f32.mrb[0].mxu0
    %v5159 = vadd.f32 %v4992, %v5158
    %v5160 = vpop.f32.mrb[0].mxu0
    %5161 = vdwg.mxu0
    %v5162 = vmax.f32 %v5099, 0.0
    %v5163 = vmax.f32 %v5104, 0.0
    %v5164 = vmax.f32 %v5109, 0.0
    %v5165 = vmax.f32 %v5114, 0.0
    %v5166 = vmax.f32 %v5119, 0.0
    %v5167 = vmax.f32 %v5124, 0.0
    %v5168 = vmax.f32 %v5129, 0.0
    %v5169 = vmax.f32 %v5134, 0.0
    %v5170 = vmax.f32 %v5139, 0.0
    %v5171 = vmax.f32 %v5144, 0.0
    %v5172 = vmax.f32 %v5149, 0.0
    %v5173 = vmax.f32 %v5154, 0.0
    %v5174 = vmax.f32 %v5159, 0.0
    %v5175 = vsel %vm4893, %v5162, 0.0
    %v5176 = vsel %vm4893, %v5163, 0.0
    %v5177 = vadd.f32 %v5175, %v5176
    %v5178 = vsel %vm4893, %v5164, 0.0
    %v5179 = vadd.f32 %v5177, %v5178
    %v5180 = vsel %vm4893, %v5165, 0.0
    %v5181 = vadd.f32 %v5179, %v5180
    %v5182 = vsel %vm4893, %v5166, 0.0
    %v5183 = vadd.f32 %v5181, %v5182
    %v5184 = vsel %vm4893, %v5167, 0.0
    %v5185 = vadd.f32 %v5183, %v5184
    %v5186 = vsel %vm4893, %v5168, 0.0
    %v5187 = vadd.f32 %v5185, %v5186
    %v5188 = vsel %vm4893, %v5169, 0.0
    %v5189 = vadd.f32 %v5187, %v5188
    %v5190 = vsel %vm4893, %v5170, 0.0
    %v5191 = vadd.f32 %v5189, %v5190
    %v5192 = vsel %vm4893, %v5171, 0.0
    %v5193 = vadd.f32 %v5191, %v5192
    %v5194 = vsel %vm4893, %v5172, 0.0
    %v5195 = vadd.f32 %v5193, %v5194
    %v5196 = vsel %vm4893, %v5173, 0.0
    %v5197 = vadd.f32 %v5195, %v5196
    %vm5198 = vcmask 123904
    %v5199 = vsel %vm5198, %v5174, 0.0
    %v5200 = vadd.f32 %v5197, %v5199
    %v5201 = vrot.slane %v5200, 4
    %v5202 = vadd.f32 %v5200, %v5201
    %v5203 = vrot.slane %v5202, 2
    %v5204 = vadd.f32 %v5202, %v5203
    %v5205 = vrot.slane %v5204, 1
    %v5206 = vadd.f32 %v5204, %v5205
    %v5207 = vmul.f32 %v5162, %v5162
    %v5208 = vmul.f32 %v5163, %v5163
    %v5209 = vmul.f32 %v5164, %v5164
    %v5210 = vmul.f32 %v5165, %v5165
    %v5211 = vmul.f32 %v5166, %v5166
    %v5212 = vmul.f32 %v5167, %v5167
    %v5213 = vmul.f32 %v5168, %v5168
    %v5214 = vmul.f32 %v5169, %v5169
    %v5215 = vmul.f32 %v5170, %v5170
    %v5216 = vmul.f32 %v5171, %v5171
    %v5217 = vmul.f32 %v5172, %v5172
    %v5218 = vmul.f32 %v5173, %v5173
    %v5219 = vmul.f32 %v5174, %v5174
    %v5220 = vsel %vm4893, %v5207, 0.0
    %v5221 = vsel %vm4893, %v5208, 0.0
    %v5222 = vadd.f32 %v5220, %v5221
    %v5223 = vsel %vm4893, %v5209, 0.0
    %v5224 = vadd.f32 %v5222, %v5223
    %v5225 = vsel %vm4893, %v5210, 0.0
    %v5226 = vadd.f32 %v5224, %v5225
    %v5227 = vsel %vm4893, %v5211, 0.0
    %v5228 = vadd.f32 %v5226, %v5227
    %v5229 = vsel %vm4893, %v5212, 0.0
    %v5230 = vadd.f32 %v5228, %v5229
    %v5231 = vsel %vm4893, %v5213, 0.0
    %v5232 = vadd.f32 %v5230, %v5231
    %v5233 = vsel %vm4893, %v5214, 0.0
    %v5234 = vadd.f32 %v5232, %v5233
    %v5235 = vsel %vm4893, %v5215, 0.0
    %v5236 = vadd.f32 %v5234, %v5235
    %v5237 = vsel %vm4893, %v5216, 0.0
    %v5238 = vadd.f32 %v5236, %v5237
    %v5239 = vsel %vm4893, %v5217, 0.0
    %v5240 = vadd.f32 %v5238, %v5239
    %v5241 = vsel %vm4893, %v5218, 0.0
    %v5242 = vadd.f32 %v5240, %v5241
    %v5243 = vsel %vm5198, %v5219, 0.0
    %v5244 = vadd.f32 %v5242, %v5243
    %v5245 = vrot.slane %v5244, 4
    %v5246 = vadd.f32 %v5244, %v5245
    %v5247 = vrot.slane %v5246, 2
    %v5248 = vadd.f32 %v5246, %v5247
    %v5249 = vrot.slane %v5248, 1
    %v5250 = vadd.f32 %v5248, %v5249
    %v5251 = vmul.f32 %v5206, 0.010204081
    %v5252 = vmul.f32 %v5250, 0.010204081
    %v5253 = vmul.f32 %v5251, %v5251
    %v5254 = vsub.f32 %v5252, %v5253
    %v5255 = vadd.f32 %v5254, 1e-05
    %v5256 = vrsqrt.pop %v5255
    %v5257 = vmul.f32 %v3449, %v5256
    %v5258 = vlaneseq
    %v5259 = vshrl.u32 %v5258, 7
    %v5260 = vsub.s32 1, %v5259
    %v5261 = vrot.slane %v5257, %v5260
    %v5262 = vmul.f32 %v5162, %v5261
    %v5263 = vmul.f32 %v5163, %v5261
    %v5264 = vmul.f32 %v5164, %v5261
    %v5265 = vmul.f32 %v5165, %v5261
    %v5266 = vmul.f32 %v5166, %v5261
    %v5267 = vmul.f32 %v5167, %v5261
    %v5268 = vmul.f32 %v5168, %v5261
    %v5269 = vmul.f32 %v5169, %v5261
    %v5270 = vmul.f32 %v5170, %v5261
    %v5271 = vmul.f32 %v5171, %v5261
    %v5272 = vmul.f32 %v5172, %v5261
    %v5273 = vmul.f32 %v5173, %v5261
    %v5274 = vmul.f32 %v5174, %v5261
    %v5275 = vmul.f32 %v5251, %v5257
    %v5277 = vrot.slane %v5275, 7
    %v5279 = vsub.f32 %v3449, %v5277
    %v5280 = vlaneseq
    %v5281 = vshrl.u32 %v5280, 7
    %v5282 = vsub.s32 2, %v5281
    %v5283 = vrot.slane %v5279, %v5282
    %v5284 = vadd.f32 %v5262, %v5283
    %v5285 = vadd.f32 %v5263, %v5283
    %v5286 = vadd.f32 %v5264, %v5283
    %v5287 = vadd.f32 %v5265, %v5283
    %v5288 = vadd.f32 %v5266, %v5283
    %v5289 = vadd.f32 %v5267, %v5283
    %v5290 = vadd.f32 %v5268, %v5283
    %v5291 = vadd.f32 %v5269, %v5283
    %v5292 = vadd.f32 %v5270, %v5283
    %v5293 = vadd.f32 %v5271, %v5283
    %v5294 = vadd.f32 %v5272, %v5283
    %v5295 = vadd.f32 %v5273, %v5283
    %v5296 = vadd.f32 %v5274, %v5283
    %v5297 = vld [vmem:[%s1 + $0x158] sm:$0x7]
    %v5298 = vld [vmem:[%s1 + $0xb8] sm:$0xff]
    %v5299 = vld [vmem:[%s1 + $0xc0] sm:$0xff]
    %v5300 = vld [vmem:[%s1 + $0xc8] sm:$0xff]
    %v5301 = vld [vmem:[%s1 + $0xd0] sm:$0xff]
    %v5302 = vld [vmem:[%s1 + $0xd8] sm:$0xff]
    %v5303 = vld [vmem:[%s1 + $0xe0] sm:$0xff]
    %v5304 = vld [vmem:[%s1 + $0xe8] sm:$0xff]
    %v5305 = vld [vmem:[%s1 + $0xf0] sm:$0xff]
    %v5306 = vld [vmem:[%s1 + $0xf8] sm:$0xff]
    %v5307 = vld [vmem:[%s1 + $0x100] sm:$0xff]
    %v5308 = vld [vmem:[%s1 + $0x108] sm:$0xff]
    %v5309 = vld [vmem:[%s1 + $0x110] sm:$0xff]
    %v5310 = vld [vmem:[%s1 + $0x118] sm:$0xff]
    %v5311 = vld [vmem:[%s1 + $0x120] sm:$0xff]
    %v5312 = vld [vmem:[%s1 + $0x128] sm:$0xff]
    %v5313 = vld [vmem:[%s1 + $0x130] sm:$0xff]
    %v5314 = vld [vmem:[%s1 + $0x138] sm:$0xff]
    %v5315 = vld [vmem:[%s1 + $0x140] sm:$0xff]
    %v5317 = vsel %vm1342, %v5296, 0
    %5319 = vmatprep.subr.mxu0 0.0
    %5320 = vmatpush1.msra.mxu0 %v5284
    %5321 = vmatprep.subr.mxu0 0.0
    %5322 = vmatpush1.msra.mxu0 %v5285
    %5323 = vmatprep.subr.mxu0 0.0
    %5324 = vmatpush1.msra.mxu0 %v5286
    %5325 = vmatprep.subr.mxu0 0.0
    %5326 = vmatpush1.msra.mxu0 %v5287
    %5327 = vmatprep.subr.mxu0 0.0
    %5328 = vmatpush1.msra.mxu0 %v5288
    %5329 = vmatprep.subr.mxu0 0.0
    %5330 = vmatpush1.msra.mxu0 %v5289
    %5331 = vmatprep.subr.mxu0 0.0
    %5332 = vmatpush1.msra.mxu0 %v5290
    %5333 = vmatprep.subr.mxu0 0.0
    %5334 = vmatpush1.msra.mxu0 %v5291
    %5335 = vmatprep.subr.mxu0 0.0
    %5336 = vmatpush1.msra.mxu0 %v5292
    %5337 = vmatprep.subr.mxu0 0.0
    %5338 = vmatpush1.msra.mxu0 %v5293
    %5339 = vmatprep.subr.mxu0 0.0
    %5340 = vmatpush1.msra.mxu0 %v5294
    %5341 = vmatprep.subr.mxu0 0.0
    %5342 = vmatpush1.msra.mxu0 %v5295
    %5343 = vmatprep.subr.mxu0 0.0
    %5344 = vmatpush1.msra.mxu0 %v5317
    %5345 = vmatprep.subr.mxu0 0.0
    %5346 = vmatpush1.msra.mxu0 0.0
    %5347 = vmatprep.subr.mxu0 0.0
    %5348 = vmatpush1.msra.mxu0 0.0
    %5349 = vmatprep.subr.mxu0 0.0
    %5350 = vmatpush1.msra.mxu0 0.0
    %5351 = vmatprep.subr.mxu0 0.0
    %5352 = vmatpush1.msra.mxu0 0.0
    %5353 = vmatprep.subr.mxu0 0.0
    %5354 = vmatpush1.msra.mxu0 0.0
    %5355 = vmatprep.subr.mxu0 0.0
    %5356 = vmatpush1.msra.mxu0 0.0
    %5357 = vmatprep.subr.mxu0 0.0
    %5358 = vmatpush1.msra.mxu0 0.0
    %5359 = vmatprep.subr.mxu0 0.0
    %5360 = vmatpush1.msra.mxu0 0.0
    %5361 = vmatprep.subr.mxu0 0.0
    %5362 = vmatpush1.msra.mxu0 0.0
    %5363 = vmatprep.subr.mxu0 0.0
    %5364 = vmatpush1.msra.mxu0 0.0
    %5365 = vmatprep.subr.mxu0 0.0
    %5366 = vmatpush1.msra.mxu0 0.0
    %5367 = vmatprep.subr.mxu0 0.0
    %5368 = vmatpush1.msra.mxu0 0.0
    %5369 = vmatprep.subr.mxu0 0.0
    %5370 = vmatpush1.msra.mxu0 0.0
    %5371 = vmatprep.subr.mxu0 0.0
    %5372 = vmatpush1.msra.mxu0 0.0
    %5373 = vmatprep.subr.mxu0 0.0
    %5374 = vmatpush1.msra.mxu0 0.0
    %5375 = vmatprep.subr.mxu0 0.0
    %5376 = vmatpush1.msra.mxu0 0.0
    %5377 = vmatprep.subr.mxu0 0.0
    %5378 = vmatpush1.msra.mxu0 0.0
    %5379 = vmatprep.subr.mxu0 0.0
    %5380 = vmatpush1.msra.mxu0 0.0
    %5381 = vmatprep.subr.mxu0 0.0
    %5382 = vmatpush1.msra.mxu0 0.0
    %5383 = vmatprep.mubr.f32.mxu0 0.0
    %5384 = vmatmul.mubr.f32.gmra.mrb[0].mxu0 %v3461
    %v5385 = vpop.f32.mrb[0].mxu0
    %v5386 = vadd.f32 0.0, %v5385
    %v5387 = vpop.f32.mrb[0].mxu0
    %5388 = vmatprep.mubr.f32.mxu0 0.0
    %5389 = vmatmul.mubr.f32.gmra.mrb[0].mxu0 %v3464
    %v5390 = vpop.f32.mrb[0].mxu0
    %v5391 = vadd.f32 0.0, %v5390
    %v5392 = vpop.f32.mrb[0].mxu0
    %5393 = vmatprep.mubr.f32.mxu0 0.0
    %5394 = vmatmul.mubr.f32.gmra.mrb[0].mxu0 %v3467
    %v5395 = vpop.f32.mrb[0].mxu0
    %v5396 = vadd.f32 0.0, %v5395
    %v5397 = vpop.f32.mrb[0].mxu0
    %5398 = vmatprep.mubr.f32.mxu0 0.0
    %5399 = vmatmul.mubr.f32.gmra.mrb[0].mxu0 %v3470
    %v5400 = vpop.f32.mrb[0].mxu0
    %v5401 = vadd.f32 0.0, %v5400
    %v5402 = vpop.f32.mrb[0].mxu0
    %5403 = vmatprep.mubr.f32.mxu0 0.0
    %5404 = vmatmul.mubr.f32.gmra.mrb[0].mxu0 %v3473
    %v5405 = vpop.f32.mrb[0].mxu0
    %v5406 = vadd.f32 0.0, %v5405
    %v5407 = vpop.f32.mrb[0].mxu0
    %5408 = vmatprep.mubr.f32.mxu0 0.0
    %5409 = vmatmul.mubr.f32.gmra.mrb[0].mxu0 %v3476
    %v5410 = vpop.f32.mrb[0].mxu0
    %v5411 = vadd.f32 0.0, %v5410
    %v5412 = vpop.f32.mrb[0].mxu0
    %5413 = vmatprep.mubr.f32.mxu0 0.0
    %5414 = vmatmul.mubr.f32.gmra.mrb[0].mxu0 %v3479
    %v5415 = vpop.f32.mrb[0].mxu0
    %v5416 = vadd.f32 0.0, %v5415
    %v5417 = vpop.f32.mrb[0].mxu0
    %5418 = vmatprep.mubr.f32.mxu0 0.0
    %5419 = vmatmul.mubr.f32.gmra.mrb[0].mxu0 %v3482
    %v5420 = vpop.f32.mrb[0].mxu0
    %v5421 = vadd.f32 0.0, %v5420
    %v5422 = vpop.f32.mrb[0].mxu0
    %5423 = vmatprep.mubr.f32.mxu0 0.0
    %5424 = vmatmul.mubr.f32.gmra.mrb[0].mxu0 %v3485
    %v5425 = vpop.f32.mrb[0].mxu0
    %v5426 = vadd.f32 0.0, %v5425
    %v5427 = vpop.f32.mrb[0].mxu0
    %5428 = vmatprep.mubr.f32.mxu0 0.0
    %5429 = vmatmul.mubr.f32.gmra.mrb[0].mxu0 %v3488
    %v5430 = vpop.f32.mrb[0].mxu0
    %v5431 = vadd.f32 0.0, %v5430
    %v5432 = vpop.f32.mrb[0].mxu0
    %5433 = vmatprep.mubr.f32.mxu0 0.0
    %5434 = vmatmul.mubr.f32.gmra.mrb[0].mxu0 %v3491
    %v5435 = vpop.f32.mrb[0].mxu0
    %v5436 = vadd.f32 0.0, %v5435
    %v5437 = vpop.f32.mrb[0].mxu0
    %5438 = vmatprep.mubr.f32.mxu0 0.0
    %5439 = vmatmul.mubr.f32.gmra.mrb[0].mxu0 %v3494
    %v5440 = vpop.f32.mrb[0].mxu0
    %v5441 = vadd.f32 0.0, %v5440
    %v5442 = vpop.f32.mrb[0].mxu0
    %5443 = vmatprep.mubr.f32.mxu0 0.0
    %5444 = vmatmul.mubr.f32.gmra.mrb[0].mxu0 %v3497
    %v5445 = vpop.f32.mrb[0].mxu0
    %v5446 = vadd.f32 0.0, %v5445
    %v5447 = vpop.f32.mrb[0].mxu0
    %5448 = vmatprep.mubr.f32.mxu0 0.0
    %5449 = vmatmul.mubr.f32.gmra.mrb[0].mxu0 %v3500
    %v5450 = vpop.f32.mrb[0].mxu0
    %v5451 = vadd.f32 0.0, %v5450
    %v5452 = vpop.f32.mrb[0].mxu0
    %5453 = vmatprep.mubr.f32.mxu0 0.0
    %5454 = vmatmul.mubr.f32.gmra.mrb[0].mxu0 %v3503
    %v5455 = vpop.f32.mrb[0].mxu0
    %v5456 = vadd.f32 0.0, %v5455
    %v5457 = vpop.f32.mrb[0].mxu0
    %5458 = vmatprep.mubr.f32.mxu0 0.0
    %5459 = vmatmul.mubr.f32.gmra.mrb[0].mxu0 %v3506
    %v5460 = vpop.f32.mrb[0].mxu0
    %v5461 = vadd.f32 0.0, %v5460
    %v5462 = vpop.f32.mrb[0].mxu0
    %5463 = vmatprep.mubr.f32.mxu0 0.0
    %5464 = vmatmul.mubr.f32.gmra.mrb[0].mxu0 %v3509
    %v5465 = vpop.f32.mrb[0].mxu0
    %v5466 = vadd.f32 0.0, %v5465
    %v5467 = vpop.f32.mrb[0].mxu0
    %5468 = vmatprep.mubr.f32.mxu0 0.0
    %5469 = vmatmul.mubr.f32.gmra.mrb[0].mxu0 %v3512
    %v5470 = vpop.f32.mrb[0].mxu0
    %v5471 = vadd.f32 0.0, %v5470
    %v5472 = vpop.f32.mrb[0].mxu0
    %5473 = vmatprep.mubr.f32.mxu0 0.0
    %5474 = vmatmul.mubr.f32.gmra.mrb[0].mxu0 %v3515
    %v5475 = vpop.f32.mrb[0].mxu0
    %v5476 = vadd.f32 0.0, %v5475
    %v5477 = vpop.f32.mrb[0].mxu0
    %5478 = vmatprep.mubr.f32.mxu0 0.0
    %5479 = vmatmul.mubr.f32.gmra.mrb[0].mxu0 %v3518
    %v5480 = vpop.f32.mrb[0].mxu0
    %v5481 = vadd.f32 0.0, %v5480
    %v5482 = vpop.f32.mrb[0].mxu0
    %5483 = vmatprep.mubr.f32.mxu0 0.0
    %5484 = vmatmul.mubr.f32.gmra.mrb[0].mxu0 %v3521
    %v5485 = vpop.f32.mrb[0].mxu0
    %v5486 = vadd.f32 0.0, %v5485
    %v5487 = vpop.f32.mrb[0].mxu0
    %5488 = vmatprep.mubr.f32.mxu0 0.0
    %5489 = vmatmul.mubr.f32.gmra.mrb[0].mxu0 %v3524
    %v5490 = vpop.f32.mrb[0].mxu0
    %v5491 = vadd.f32 0.0, %v5490
    %v5492 = vpop.f32.mrb[0].mxu0
    %5493 = vmatprep.mubr.f32.mxu0 0.0
    %5494 = vmatmul.mubr.f32.gmra.mrb[0].mxu0 %v3527
    %v5495 = vpop.f32.mrb[0].mxu0
    %v5496 = vadd.f32 0.0, %v5495
    %v5497 = vpop.f32.mrb[0].mxu0
    %5498 = vmatprep.mubr.f32.mxu0 0.0
    %5499 = vmatmul.mubr.f32.gmra.mrb[0].mxu0 %v3530
    %v5500 = vpop.f32.mrb[0].mxu0
    %v5501 = vadd.f32 0.0, %v5500
    %v5502 = vpop.f32.mrb[0].mxu0
    %5503 = vmatprep.mubr.f32.mxu0 0.0
    %5504 = vmatmul.mubr.f32.gmra.mrb[0].mxu0 %v3533
    %v5505 = vpop.f32.mrb[0].mxu0
    %v5506 = vadd.f32 0.0, %v5505
    %v5507 = vpop.f32.mrb[0].mxu0
    %5508 = vmatprep.mubr.f32.mxu0 0.0
    %5509 = vmatmul.mubr.f32.gmra.mrb[0].mxu0 %v3536
    %v5510 = vpop.f32.mrb[0].mxu0
    %v5511 = vadd.f32 0.0, %v5510
    %v5512 = vpop.f32.mrb[0].mxu0
    %5513 = vmatprep.mubr.f32.mxu0 0.0
    %5514 = vmatmul.mubr.f32.gmra.mrb[0].mxu0 %v3539
    %v5515 = vpop.f32.mrb[0].mxu0
    %v5516 = vadd.f32 0.0, %v5515
    %v5517 = vpop.f32.mrb[0].mxu0
    %5518 = vmatprep.mubr.f32.mxu0 0.0
    %5519 = vmatmul.mubr.f32.gmra.mrb[0].mxu0 %v3542
    %v5520 = vpop.f32.mrb[0].mxu0
    %v5521 = vadd.f32 0.0, %v5520
    %v5522 = vpop.f32.mrb[0].mxu0
    %5523 = vmatprep.mubr.f32.mxu0 0.0
    %5524 = vmatmul.mubr.f32.gmra.mrb[0].mxu0 %v3545
    %v5525 = vpop.f32.mrb[0].mxu0
    %v5526 = vadd.f32 0.0, %v5525
    %v5527 = vpop.f32.mrb[0].mxu0
    %5528 = vmatprep.mubr.f32.mxu0 0.0
    %5529 = vmatmul.mubr.f32.gmra.mrb[0].mxu0 %v3548
    %v5530 = vpop.f32.mrb[0].mxu0
    %v5531 = vadd.f32 0.0, %v5530
    %v5532 = vpop.f32.mrb[0].mxu0
    %5533 = vmatprep.mubr.f32.mxu0 0.0
    %5534 = vmatmul.mubr.f32.gmra.mrb[0].mxu0 %v3551
    %v5535 = vpop.f32.mrb[0].mxu0
    %v5536 = vadd.f32 0.0, %v5535
    %v5537 = vpop.f32.mrb[0].mxu0
    %5538 = vmatprep.mubr.f32.mxu0 0.0
    %5539 = vmatmul.mubr.f32.gmra.mrb[0].mxu0 %v3554
    %v5540 = vpop.f32.mrb[0].mxu0
    %v5541 = vadd.f32 0.0, %v5540
    %v5542 = vpop.f32.mrb[0].mxu0
    %5543 = vmatprep.mubr.f32.mxu0 0.0
    %5544 = vmatmul.mubr.f32.gmra.mrb[0].mxu0 %v3557
    %v5545 = vpop.f32.mrb[0].mxu0
    %v5546 = vadd.f32 0.0, %v5545
    %v5547 = vpop.f32.mrb[0].mxu0
    %5548 = vmatprep.mubr.f32.mxu0 0.0
    %5549 = vmatmul.mubr.f32.gmra.mrb[0].mxu0 %v3560
    %v5550 = vpop.f32.mrb[0].mxu0
    %v5551 = vadd.f32 0.0, %v5550
    %v5552 = vpop.f32.mrb[0].mxu0
    %5553 = vmatprep.mubr.f32.mxu0 0.0
    %5554 = vmatmul.mubr.f32.gmra.mrb[0].mxu0 %v3563
    %v5555 = vpop.f32.mrb[0].mxu0
    %v5556 = vadd.f32 0.0, %v5555
    %v5557 = vpop.f32.mrb[0].mxu0
    %5558 = vmatprep.mubr.f32.mxu0 0.0
    %5559 = vmatmul.mubr.f32.gmra.mrb[0].mxu0 %v3566
    %v5560 = vpop.f32.mrb[0].mxu0
    %v5561 = vadd.f32 0.0, %v5560
    %v5562 = vpop.f32.mrb[0].mxu0
    %5563 = vmatprep.mubr.f32.mxu0 0.0
    %5564 = vmatmul.mubr.f32.gmra.mrb[0].mxu0 %v3569
    %v5565 = vpop.f32.mrb[0].mxu0
    %v5566 = vadd.f32 0.0, %v5565
    %v5567 = vpop.f32.mrb[0].mxu0
    %5568 = vmatprep.mubr.f32.mxu0 0.0
    %5569 = vmatmul.mubr.f32.gmra.mrb[0].mxu0 %v3572
    %v5570 = vpop.f32.mrb[0].mxu0
    %v5571 = vadd.f32 0.0, %v5570
    %v5572 = vpop.f32.mrb[0].mxu0
    %5573 = vmatprep.mubr.f32.mxu0 0.0
    %5574 = vmatmul.mubr.f32.gmra.mrb[0].mxu0 %v3575
    %v5575 = vpop.f32.mrb[0].mxu0
    %v5576 = vadd.f32 0.0, %v5575
    %v5577 = vpop.f32.mrb[0].mxu0
    %5578 = vmatprep.mubr.f32.mxu0 0.0
    %5579 = vmatmul.mubr.f32.gmra.mrb[0].mxu0 %v3578
    %v5580 = vpop.f32.mrb[0].mxu0
    %v5581 = vadd.f32 0.0, %v5580
    %v5582 = vpop.f32.mrb[0].mxu0
    %5583 = vmatprep.mubr.f32.mxu0 0.0
    %5584 = vmatmul.mubr.f32.gmra.mrb[0].mxu0 %v3581
    %v5585 = vpop.f32.mrb[0].mxu0
    %v5586 = vadd.f32 0.0, %v5585
    %v5587 = vpop.f32.mrb[0].mxu0
    %5588 = vmatprep.mubr.f32.mxu0 0.0
    %5589 = vmatmul.mubr.f32.gmra.mrb[0].mxu0 %v3584
    %v5590 = vpop.f32.mrb[0].mxu0
    %v5591 = vadd.f32 0.0, %v5590
    %v5592 = vpop.f32.mrb[0].mxu0
    %5593 = vmatprep.mubr.f32.mxu0 0.0
    %5594 = vmatmul.mubr.f32.gmra.mrb[0].mxu0 %v3587
    %v5595 = vpop.f32.mrb[0].mxu0
    %v5596 = vadd.f32 0.0, %v5595
    %v5597 = vpop.f32.mrb[0].mxu0
    %5598 = vmatprep.mubr.f32.mxu0 0.0
    %5599 = vmatmul.mubr.f32.gmra.mrb[0].mxu0 %v3590
    %v5600 = vpop.f32.mrb[0].mxu0
    %v5601 = vadd.f32 0.0, %v5600
    %v5602 = vpop.f32.mrb[0].mxu0
    %5603 = vmatprep.mubr.f32.mxu0 0.0
    %5604 = vmatmul.mubr.f32.gmra.mrb[0].mxu0 %v3593
    %v5605 = vpop.f32.mrb[0].mxu0
    %v5606 = vadd.f32 0.0, %v5605
    %v5607 = vpop.f32.mrb[0].mxu0
    %5608 = vmatprep.mubr.f32.mxu0 0.0
    %5609 = vmatmul.mubr.f32.gmra.mrb[0].mxu0 %v3596
    %v5610 = vpop.f32.mrb[0].mxu0
    %v5611 = vadd.f32 0.0, %v5610
    %v5612 = vpop.f32.mrb[0].mxu0
    %5613 = vmatprep.mubr.f32.mxu0 0.0
    %5614 = vmatmul.mubr.f32.gmra.mrb[0].mxu0 %v3599
    %v5615 = vpop.f32.mrb[0].mxu0
    %v5616 = vadd.f32 0.0, %v5615
    %v5617 = vpop.f32.mrb[0].mxu0
    %5618 = vmatprep.mubr.f32.mxu0 0.0
    %5619 = vmatmul.mubr.f32.gmra.mrb[0].mxu0 %v3602
    %v5620 = vpop.f32.mrb[0].mxu0
    %v5621 = vadd.f32 0.0, %v5620
    %v5622 = vpop.f32.mrb[0].mxu0
    %5623 = vmatprep.mubr.f32.mxu0 0.0
    %5624 = vmatmul.mubr.f32.gmra.mrb[0].mxu0 %v3605
    %v5625 = vpop.f32.mrb[0].mxu0
    %v5626 = vadd.f32 0.0, %v5625
    %v5627 = vpop.f32.mrb[0].mxu0
    %5628 = vmatprep.mubr.f32.mxu0 0.0
    %5629 = vmatmul.mubr.f32.gmra.mrb[0].mxu0 %v3608
    %v5630 = vpop.f32.mrb[0].mxu0
    %v5631 = vadd.f32 0.0, %v5630
    %v5632 = vpop.f32.mrb[0].mxu0
    %5633 = vmatprep.mubr.f32.mxu0 0.0
    %5634 = vmatmul.mubr.f32.gmra.mrb[0].mxu0 %v3611
    %v5635 = vpop.f32.mrb[0].mxu0
    %v5636 = vadd.f32 0.0, %v5635
    %v5637 = vpop.f32.mrb[0].mxu0
    %5638 = vmatprep.mubr.f32.mxu0 0.0
    %5639 = vmatmul.mubr.f32.gmra.mrb[0].mxu0 %v3614
    %v5640 = vpop.f32.mrb[0].mxu0
    %v5641 = vadd.f32 0.0, %v5640
    %v5642 = vpop.f32.mrb[0].mxu0
    %5643 = vmatprep.mubr.f32.mxu0 0.0
    %5644 = vmatmul.mubr.f32.gmra.mrb[0].mxu0 %v3617
    %v5645 = vpop.f32.mrb[0].mxu0
    %v5646 = vadd.f32 0.0, %v5645
    %v5647 = vpop.f32.mrb[0].mxu0
    %5648 = vmatprep.mubr.f32.mxu0 0.0
    %5649 = vmatmul.mubr.f32.gmra.mrb[0].mxu0 %v3620
    %v5650 = vpop.f32.mrb[0].mxu0
    %v5651 = vadd.f32 0.0, %v5650
    %v5652 = vpop.f32.mrb[0].mxu0
    %5653 = vmatprep.mubr.f32.mxu0 0.0
    %5654 = vmatmul.mubr.f32.gmra.mrb[0].mxu0 %v3623
    %v5655 = vpop.f32.mrb[0].mxu0
    %v5656 = vadd.f32 0.0, %v5655
    %v5657 = vpop.f32.mrb[0].mxu0
    %5658 = vmatprep.mubr.f32.mxu0 0.0
    %5659 = vmatmul.mubr.f32.gmra.mrb[0].mxu0 %v3626
    %v5660 = vpop.f32.mrb[0].mxu0
    %v5661 = vadd.f32 0.0, %v5660
    %v5662 = vpop.f32.mrb[0].mxu0
    %5663 = vmatprep.mubr.f32.mxu0 0.0
    %5664 = vmatmul.mubr.f32.gmra.mrb[0].mxu0 %v3629
    %v5665 = vpop.f32.mrb[0].mxu0
    %v5666 = vadd.f32 0.0, %v5665
    %v5667 = vpop.f32.mrb[0].mxu0
    %5668 = vmatprep.mubr.f32.mxu0 0.0
    %5669 = vmatmul.mubr.f32.gmra.mrb[0].mxu0 %v3632
    %v5670 = vpop.f32.mrb[0].mxu0
    %v5671 = vadd.f32 0.0, %v5670
    %v5672 = vpop.f32.mrb[0].mxu0
    %5673 = vmatprep.mubr.f32.mxu0 0.0
    %5674 = vmatmul.mubr.f32.gmra.mrb[0].mxu0 %v3635
    %v5675 = vpop.f32.mrb[0].mxu0
    %v5676 = vadd.f32 0.0, %v5675
    %v5677 = vpop.f32.mrb[0].mxu0
    %5678 = vmatprep.mubr.f32.mxu0 0.0
    %5679 = vmatmul.mubr.f32.gmra.mrb[0].mxu0 %v3638
    %v5680 = vpop.f32.mrb[0].mxu0
    %v5681 = vadd.f32 0.0, %v5680
    %v5682 = vpop.f32.mrb[0].mxu0
    %5683 = vmatprep.mubr.f32.mxu0 0.0
    %5684 = vmatmul.mubr.f32.gmra.mrb[0].mxu0 %v3641
    %v5685 = vpop.f32.mrb[0].mxu0
    %v5686 = vadd.f32 0.0, %v5685
    %v5687 = vpop.f32.mrb[0].mxu0
    %5688 = vmatprep.mubr.f32.mxu0 0.0
    %5689 = vmatmul.mubr.f32.gmra.mrb[0].mxu0 %v3644
    %v5690 = vpop.f32.mrb[0].mxu0
    %v5691 = vadd.f32 0.0, %v5690
    %v5692 = vpop.f32.mrb[0].mxu0
    %5693 = vmatprep.mubr.f32.mxu0 0.0
    %5694 = vmatmul.mubr.f32.gmra.mrb[0].mxu0 %v3647
    %v5695 = vpop.f32.mrb[0].mxu0
    %v5696 = vadd.f32 0.0, %v5695
    %v5697 = vpop.f32.mrb[0].mxu0
    %5698 = vmatprep.mubr.f32.mxu0 0.0
    %5699 = vmatmul.mubr.f32.gmra.mrb[0].mxu0 %v3650
    %v5700 = vpop.f32.mrb[0].mxu0
    %v5701 = vadd.f32 0.0, %v5700
    %v5702 = vpop.f32.mrb[0].mxu0
    %5703 = vmatprep.mubr.f32.mxu0 0.0
    %5704 = vmatmul.mubr.f32.gmra.mrb[0].mxu0 %v3653
    %v5705 = vpop.f32.mrb[0].mxu0
    %v5706 = vadd.f32 0.0, %v5705
    %v5707 = vpop.f32.mrb[0].mxu0
    %5708 = vmatprep.mubr.f32.mxu0 0.0
    %5709 = vmatmul.mubr.f32.gmra.mrb[0].mxu0 %v3656
    %v5710 = vpop.f32.mrb[0].mxu0
    %v5711 = vadd.f32 0.0, %v5710
    %v5712 = vpop.f32.mrb[0].mxu0
    %5713 = vmatprep.mubr.f32.mxu0 0.0
    %5714 = vmatmul.mubr.f32.gmra.mrb[0].mxu0 %v3659
    %v5715 = vpop.f32.mrb[0].mxu0
    %v5716 = vadd.f32 0.0, %v5715
    %v5717 = vpop.f32.mrb[0].mxu0
    %5718 = vmatprep.mubr.f32.mxu0 0.0
    %5719 = vmatmul.mubr.f32.gmra.mrb[0].mxu0 %v3662
    %v5720 = vpop.f32.mrb[0].mxu0
    %v5721 = vadd.f32 0.0, %v5720
    %v5722 = vpop.f32.mrb[0].mxu0
    %5723 = vmatprep.mubr.f32.mxu0 0.0
    %5724 = vmatmul.mubr.f32.gmra.mrb[0].mxu0 %v3665
    %v5725 = vpop.f32.mrb[0].mxu0
    %v5726 = vadd.f32 0.0, %v5725
    %v5727 = vpop.f32.mrb[0].mxu0
    %5728 = vmatprep.mubr.f32.mxu0 0.0
    %5729 = vmatmul.mubr.f32.gmra.mrb[0].mxu0 %v3668
    %v5730 = vpop.f32.mrb[0].mxu0
    %v5731 = vadd.f32 0.0, %v5730
    %v5732 = vpop.f32.mrb[0].mxu0
    %5733 = vmatprep.mubr.f32.mxu0 0.0
    %5734 = vmatmul.mubr.f32.gmra.mrb[0].mxu0 %v3671
    %v5735 = vpop.f32.mrb[0].mxu0
    %v5736 = vadd.f32 0.0, %v5735
    %v5737 = vpop.f32.mrb[0].mxu0
    %5738 = vmatprep.mubr.f32.mxu0 0.0
    %5739 = vmatmul.mubr.f32.gmra.mrb[0].mxu0 %v3674
    %v5740 = vpop.f32.mrb[0].mxu0
    %v5741 = vadd.f32 0.0, %v5740
    %v5742 = vpop.f32.mrb[0].mxu0
    %5743 = vmatprep.mubr.f32.mxu0 0.0
    %5744 = vmatmul.mubr.f32.gmra.mrb[0].mxu0 %v3677
    %v5745 = vpop.f32.mrb[0].mxu0
    %v5746 = vadd.f32 0.0, %v5745
    %v5747 = vpop.f32.mrb[0].mxu0
    %5748 = vmatprep.mubr.f32.mxu0 0.0
    %5749 = vmatmul.mubr.f32.gmra.mrb[0].mxu0 %v3680
    %v5750 = vpop.f32.mrb[0].mxu0
    %v5751 = vadd.f32 0.0, %v5750
    %v5752 = vpop.f32.mrb[0].mxu0
    %5753 = vmatprep.mubr.f32.mxu0 0.0
    %5754 = vmatmul.mubr.f32.gmra.mrb[0].mxu0 %v3683
    %v5755 = vpop.f32.mrb[0].mxu0
    %v5756 = vadd.f32 0.0, %v5755
    %v5757 = vpop.f32.mrb[0].mxu0
    %5758 = vmatprep.mubr.f32.mxu0 0.0
    %5759 = vmatmul.mubr.f32.gmra.mrb[0].mxu0 %v3686
    %v5760 = vpop.f32.mrb[0].mxu0
    %v5761 = vadd.f32 0.0, %v5760
    %v5762 = vpop.f32.mrb[0].mxu0
    %5763 = vmatprep.mubr.f32.mxu0 0.0
    %5764 = vmatmul.mubr.f32.gmra.mrb[0].mxu0 %v3689
    %v5765 = vpop.f32.mrb[0].mxu0
    %v5766 = vadd.f32 0.0, %v5765
    %v5767 = vpop.f32.mrb[0].mxu0
    %5768 = vmatprep.mubr.f32.mxu0 0.0
    %5769 = vmatmul.mubr.f32.gmra.mrb[0].mxu0 %v3692
    %v5770 = vpop.f32.mrb[0].mxu0
    %v5771 = vadd.f32 0.0, %v5770
    %v5772 = vpop.f32.mrb[0].mxu0
    %5773 = vmatprep.mubr.f32.mxu0 0.0
    %5774 = vmatmul.mubr.f32.gmra.mrb[0].mxu0 %v3695
    %v5775 = vpop.f32.mrb[0].mxu0
    %v5776 = vadd.f32 0.0, %v5775
    %v5777 = vpop.f32.mrb[0].mxu0
    %5778 = vmatprep.mubr.f32.mxu0 0.0
    %5779 = vmatmul.mubr.f32.gmra.mrb[0].mxu0 %v3698
    %v5780 = vpop.f32.mrb[0].mxu0
    %v5781 = vadd.f32 0.0, %v5780
    %v5782 = vpop.f32.mrb[0].mxu0
    %5783 = vmatprep.mubr.f32.mxu0 0.0
    %5784 = vmatmul.mubr.f32.gmra.mrb[0].mxu0 %v3701
    %v5785 = vpop.f32.mrb[0].mxu0
    %v5786 = vadd.f32 0.0, %v5785
    %v5787 = vpop.f32.mrb[0].mxu0
    %5788 = vmatprep.mubr.f32.mxu0 0.0
    %5789 = vmatmul.mubr.f32.gmra.mrb[0].mxu0 %v3704
    %v5790 = vpop.f32.mrb[0].mxu0
    %v5791 = vadd.f32 0.0, %v5790
    %v5792 = vpop.f32.mrb[0].mxu0
    %5793 = vmatprep.mubr.f32.mxu0 0.0
    %5794 = vmatmul.mubr.f32.gmra.mrb[0].mxu0 %v3707
    %v5795 = vpop.f32.mrb[0].mxu0
    %v5796 = vadd.f32 0.0, %v5795
    %v5797 = vpop.f32.mrb[0].mxu0
    %5798 = vmatprep.mubr.f32.mxu0 0.0
    %5799 = vmatmul.mubr.f32.gmra.mrb[0].mxu0 %v3710
    %v5800 = vpop.f32.mrb[0].mxu0
    %v5801 = vadd.f32 0.0, %v5800
    %v5802 = vpop.f32.mrb[0].mxu0
    %5803 = vmatprep.mubr.f32.mxu0 0.0
    %5804 = vmatmul.mubr.f32.gmra.mrb[0].mxu0 %v3713
    %v5805 = vpop.f32.mrb[0].mxu0
    %v5806 = vadd.f32 0.0, %v5805
    %v5807 = vpop.f32.mrb[0].mxu0
    %5808 = vmatprep.mubr.f32.mxu0 0.0
    %5809 = vmatmul.mubr.f32.gmra.mrb[0].mxu0 %v3716
    %v5810 = vpop.f32.mrb[0].mxu0
    %v5811 = vadd.f32 0.0, %v5810
    %v5812 = vpop.f32.mrb[0].mxu0
    %5813 = vmatprep.mubr.f32.mxu0 0.0
    %5814 = vmatmul.mubr.f32.gmra.mrb[0].mxu0 %v3719
    %v5815 = vpop.f32.mrb[0].mxu0
    %v5816 = vadd.f32 0.0, %v5815
    %v5817 = vpop.f32.mrb[0].mxu0
    %5818 = vmatprep.mubr.f32.mxu0 0.0
    %5819 = vmatmul.mubr.f32.gmra.mrb[0].mxu0 %v3722
    %v5820 = vpop.f32.mrb[0].mxu0
    %v5821 = vadd.f32 0.0, %v5820
    %v5822 = vpop.f32.mrb[0].mxu0
    %5823 = vmatprep.mubr.f32.mxu0 0.0
    %5824 = vmatmul.mubr.f32.gmra.mrb[0].mxu0 %v3725
    %v5825 = vpop.f32.mrb[0].mxu0
    %v5826 = vadd.f32 0.0, %v5825
    %v5827 = vpop.f32.mrb[0].mxu0
    %5828 = vmatprep.mubr.f32.mxu0 0.0
    %5829 = vmatmul.mubr.f32.gmra.mrb[0].mxu0 %v3728
    %v5830 = vpop.f32.mrb[0].mxu0
    %v5831 = vadd.f32 0.0, %v5830
    %v5832 = vpop.f32.mrb[0].mxu0
    %5833 = vmatprep.mubr.f32.mxu0 0.0
    %5834 = vmatmul.mubr.f32.gmra.mrb[0].mxu0 %v3731
    %v5835 = vpop.f32.mrb[0].mxu0
    %v5836 = vadd.f32 0.0, %v5835
    %v5837 = vpop.f32.mrb[0].mxu0
    %5838 = vmatprep.mubr.f32.mxu0 0.0
    %5839 = vmatmul.mubr.f32.gmra.mrb[0].mxu0 %v3734
    %v5840 = vpop.f32.mrb[0].mxu0
    %v5841 = vadd.f32 0.0, %v5840
    %v5842 = vpop.f32.mrb[0].mxu0
    %5843 = vmatprep.mubr.f32.mxu0 0.0
    %5844 = vmatmul.mubr.f32.gmra.mrb[0].mxu0 %v3737
    %v5845 = vpop.f32.mrb[0].mxu0
    %v5846 = vadd.f32 0.0, %v5845
    %v5847 = vpop.f32.mrb[0].mxu0
    %5848 = vmatprep.mubr.f32.mxu0 0.0
    %5849 = vmatmul.mubr.f32.gmra.mrb[0].mxu0 %v3740
    %v5850 = vpop.f32.mrb[0].mxu0
    %v5851 = vadd.f32 0.0, %v5850
    %v5852 = vpop.f32.mrb[0].mxu0
    %5853 = vmatprep.mubr.f32.mxu0 0.0
    %5854 = vmatmul.mubr.f32.gmra.mrb[0].mxu0 %v3743
    %v5855 = vpop.f32.mrb[0].mxu0
    %v5856 = vadd.f32 0.0, %v5855
    %v5857 = vpop.f32.mrb[0].mxu0
    %5858 = vmatprep.mubr.f32.mxu0 0.0
    %5859 = vmatmul.mubr.f32.gmra.mrb[0].mxu0 %v3746
    %v5860 = vpop.f32.mrb[0].mxu0
    %v5861 = vadd.f32 0.0, %v5860
    %v5862 = vpop.f32.mrb[0].mxu0
    %5863 = vmatprep.mubr.f32.mxu0 0.0
    %5864 = vmatmul.mubr.f32.gmra.mrb[0].mxu0 %v3749
    %v5865 = vpop.f32.mrb[0].mxu0
    %v5866 = vadd.f32 0.0, %v5865
    %v5867 = vpop.f32.mrb[0].mxu0
    %5868 = vmatprep.mubr.f32.mxu0 0.0
    %5869 = vmatmul.mubr.f32.gmra.mrb[0].mxu0 %v3752
    %v5870 = vpop.f32.mrb[0].mxu0
    %v5871 = vadd.f32 0.0, %v5870
    %v5872 = vpop.f32.mrb[0].mxu0
    %5873 = vmatprep.mubr.f32.mxu0 0.0
    %5874 = vmatmul.mubr.f32.gmra.mrb[0].mxu0 %v3755
    %v5875 = vpop.f32.mrb[0].mxu0
    %v5876 = vadd.f32 0.0, %v5875
    %v5877 = vpop.f32.mrb[0].mxu0
    %5878 = vmatprep.mubr.f32.mxu0 0.0
    %5879 = vmatmul.mubr.f32.gmra.mrb[0].mxu0 %v3758
    %v5880 = vpop.f32.mrb[0].mxu0
    %v5881 = vadd.f32 0.0, %v5880
    %v5882 = vpop.f32.mrb[0].mxu0
    %5883 = vmatprep.mubr.f32.mxu0 0.0
    %5884 = vmatmul.mubr.f32.gmra.mrb[0].mxu0 %v3761
    %v5885 = vpop.f32.mrb[0].mxu0
    %v5886 = vadd.f32 0.0, %v5885
    %v5887 = vpop.f32.mrb[0].mxu0
    %5888 = vmatprep.mubr.f32.mxu0 0.0
    %5889 = vmatmul.mubr.f32.gmra.mrb[0].mxu0 %v3764
    %v5890 = vpop.f32.mrb[0].mxu0
    %v5891 = vadd.f32 0.0, %v5890
    %v5892 = vpop.f32.mrb[0].mxu0
    %5893 = vmatprep.mubr.f32.mxu0 0.0
    %5894 = vmatmul.mubr.f32.gmra.mrb[0].mxu0 %v3767
    %v5895 = vpop.f32.mrb[0].mxu0
    %v5896 = vadd.f32 0.0, %v5895
    %v5897 = vpop.f32.mrb[0].mxu0
    %5898 = vmatprep.mubr.f32.mxu0 0.0
    %5899 = vmatmul.mubr.f32.gmra.mrb[0].mxu0 %v3770
    %v5900 = vpop.f32.mrb[0].mxu0
    %v5901 = vadd.f32 0.0, %v5900
    %v5902 = vpop.f32.mrb[0].mxu0
    %5903 = vmatprep.mubr.f32.mxu0 0.0
    %5904 = vmatmul.mubr.f32.gmra.mrb[0].mxu0 %v3773
    %v5905 = vpop.f32.mrb[0].mxu0
    %v5906 = vadd.f32 0.0, %v5905
    %v5907 = vpop.f32.mrb[0].mxu0
    %5908 = vmatprep.mubr.f32.mxu0 0.0
    %5909 = vmatmul.mubr.f32.gmra.mrb[0].mxu0 %v3776
    %v5910 = vpop.f32.mrb[0].mxu0
    %v5911 = vadd.f32 0.0, %v5910
    %v5912 = vpop.f32.mrb[0].mxu0
    %5913 = vmatprep.mubr.f32.mxu0 0.0
    %5914 = vmatmul.mubr.f32.gmra.mrb[0].mxu0 %v3779
    %v5915 = vpop.f32.mrb[0].mxu0
    %v5916 = vadd.f32 0.0, %v5915
    %v5917 = vpop.f32.mrb[0].mxu0
    %5918 = vmatprep.mubr.f32.mxu0 0.0
    %5919 = vmatmul.mubr.f32.gmra.mrb[0].mxu0 %v3782
    %v5920 = vpop.f32.mrb[0].mxu0
    %v5921 = vadd.f32 0.0, %v5920
    %v5922 = vpop.f32.mrb[0].mxu0
    %5923 = vmatprep.mubr.f32.mxu0 0.0
    %5924 = vmatmul.mubr.f32.gmra.mrb[0].mxu0 %v3785
    %v5925 = vpop.f32.mrb[0].mxu0
    %v5926 = vadd.f32 0.0, %v5925
    %v5927 = vpop.f32.mrb[0].mxu0
    %5928 = vmatprep.mubr.f32.mxu0 0.0
    %5929 = vmatmul.mubr.f32.gmra.mrb[0].mxu0 %v3788
    %v5930 = vpop.f32.mrb[0].mxu0
    %v5931 = vadd.f32 0.0, %v5930
    %v5932 = vpop.f32.mrb[0].mxu0
    %5933 = vmatprep.mubr.f32.mxu0 0.0
    %5934 = vmatmul.mubr.f32.gmra.mrb[0].mxu0 %v3791
    %v5935 = vpop.f32.mrb[0].mxu0
    %v5936 = vadd.f32 0.0, %v5935
    %v5937 = vpop.f32.mrb[0].mxu0
    %5938 = vmatprep.mubr.f32.mxu0 0.0
    %5939 = vmatmul.mubr.f32.gmra.mrb[0].mxu0 %v3794
    %v5940 = vpop.f32.mrb[0].mxu0
    %v5941 = vadd.f32 0.0, %v5940
    %v5942 = vpop.f32.mrb[0].mxu0
    %5943 = vmatprep.mubr.f32.mxu0 0.0
    %5944 = vmatmul.mubr.f32.gmra.mrb[0].mxu0 %v3797
    %v5945 = vpop.f32.mrb[0].mxu0
    %v5946 = vadd.f32 0.0, %v5945
    %v5947 = vpop.f32.mrb[0].mxu0
    %5948 = vmatprep.mubr.f32.mxu0 0.0
    %5949 = vmatmul.mubr.f32.gmra.mrb[0].mxu0 %v3800
    %v5950 = vpop.f32.mrb[0].mxu0
    %v5951 = vadd.f32 0.0, %v5950
    %v5952 = vpop.f32.mrb[0].mxu0
    %5953 = vmatprep.mubr.f32.mxu0 0.0
    %5954 = vmatmul.mubr.f32.gmra.mrb[0].mxu0 %v3803
    %v5955 = vpop.f32.mrb[0].mxu0
    %v5956 = vadd.f32 0.0, %v5955
    %v5957 = vpop.f32.mrb[0].mxu0
    %5958 = vmatprep.mubr.f32.mxu0 0.0
    %5959 = vmatmul.mubr.f32.gmra.mrb[0].mxu0 %v3806
    %v5960 = vpop.f32.mrb[0].mxu0
    %v5961 = vadd.f32 0.0, %v5960
    %v5962 = vpop.f32.mrb[0].mxu0
    %5963 = vmatprep.mubr.f32.mxu0 0.0
    %5964 = vmatmul.mubr.f32.gmra.mrb[0].mxu0 %v3809
    %v5965 = vpop.f32.mrb[0].mxu0
    %v5966 = vadd.f32 0.0, %v5965
    %v5967 = vpop.f32.mrb[0].mxu0
    %5968 = vdwg.mxu0
    %5982 = vrot.lane.b32.xlu0 %v5451, 16
    %v5983 = vpop.permute.xlu0 %5982
    %5984 = vrot.lane.b32.xlu0 %v5456, 16
    %v5985 = vpop.permute.xlu0 %5984
    %5986 = vrot.lane.b32.xlu0 %v5461, 16
    %v5987 = vpop.permute.xlu0 %5986
    %5988 = vrot.lane.b32.xlu0 %v5466, 16
    %v5989 = vpop.permute.xlu0 %5988
    %5990 = vrot.lane.b32.xlu0 %v5471, 16
    %v5991 = vpop.permute.xlu0 %5990
    %5992 = vrot.lane.b32.xlu0 %v5476, 16
    %v5993 = vpop.permute.xlu0 %5992
    %5994 = vrot.lane.b32.xlu0 %v5481, 16
    %v5995 = vpop.permute.xlu0 %5994
    %5996 = vrot.lane.b32.xlu0 %v5486, 16
    %v5997 = vpop.permute.xlu0 %5996
    %5998 = vrot.lane.b32.xlu0 %v5491, 16
    %v5999 = vpop.permute.xlu0 %5998
    %6000 = vrot.lane.b32.xlu0 %v5496, 16
    %v6001 = vpop.permute.xlu0 %6000
    %6002 = vrot.lane.b32.xlu0 %v5501, 16
    %v6003 = vpop.permute.xlu0 %6002
    %6004 = vrot.lane.b32.xlu0 %v5506, 16
    %v6005 = vpop.permute.xlu0 %6004
    %6006 = vrot.lane.b32.xlu0 %v5511, 16
    %v6007 = vpop.permute.xlu0 %6006
    %6034 = vrot.lane.b32.xlu0 %v5516, 32
    %v6035 = vpop.permute.xlu0 %6034
    %6036 = vrot.lane.b32.xlu0 %v5521, 32
    %v6037 = vpop.permute.xlu0 %6036
    %6038 = vrot.lane.b32.xlu0 %v5526, 32
    %v6039 = vpop.permute.xlu0 %6038
    %6040 = vrot.lane.b32.xlu0 %v5531, 32
    %v6041 = vpop.permute.xlu0 %6040
    %6042 = vrot.lane.b32.xlu0 %v5536, 32
    %v6043 = vpop.permute.xlu0 %6042
    %6044 = vrot.lane.b32.xlu0 %v5541, 32
    %v6045 = vpop.permute.xlu0 %6044
    %6046 = vrot.lane.b32.xlu0 %v5546, 32
    %v6047 = vpop.permute.xlu0 %6046
    %6048 = vrot.lane.b32.xlu0 %v5551, 32
    %v6049 = vpop.permute.xlu0 %6048
    %6050 = vrot.lane.b32.xlu0 %v5556, 32
    %v6051 = vpop.permute.xlu0 %6050
    %6052 = vrot.lane.b32.xlu0 %v5561, 32
    %v6053 = vpop.permute.xlu0 %6052
    %6054 = vrot.lane.b32.xlu0 %v5566, 32
    %v6055 = vpop.permute.xlu0 %6054
    %6056 = vrot.lane.b32.xlu0 %v5571, 32
    %v6057 = vpop.permute.xlu0 %6056
    %6058 = vrot.lane.b32.xlu0 %v5576, 32
    %v6059 = vpop.permute.xlu0 %6058
    %6086 = vrot.lane.b32.xlu0 %v5581, 48
    %v6087 = vpop.permute.xlu0 %6086
    %6088 = vrot.lane.b32.xlu0 %v5586, 48
    %v6089 = vpop.permute.xlu0 %6088
    %6090 = vrot.lane.b32.xlu0 %v5591, 48
    %v6091 = vpop.permute.xlu0 %6090
    %6092 = vrot.lane.b32.xlu0 %v5596, 48
    %v6093 = vpop.permute.xlu0 %6092
    %6094 = vrot.lane.b32.xlu0 %v5601, 48
    %v6095 = vpop.permute.xlu0 %6094
    %6096 = vrot.lane.b32.xlu0 %v5606, 48
    %v6097 = vpop.permute.xlu0 %6096
    %6098 = vrot.lane.b32.xlu0 %v5611, 48
    %v6099 = vpop.permute.xlu0 %6098
    %6100 = vrot.lane.b32.xlu0 %v5616, 48
    %v6101 = vpop.permute.xlu0 %6100
    %6102 = vrot.lane.b32.xlu0 %v5621, 48
    %v6103 = vpop.permute.xlu0 %6102
    %6104 = vrot.lane.b32.xlu0 %v5626, 48
    %v6105 = vpop.permute.xlu0 %6104
    %6106 = vrot.lane.b32.xlu0 %v5631, 48
    %v6107 = vpop.permute.xlu0 %6106
    %6108 = vrot.lane.b32.xlu0 %v5636, 48
    %v6109 = vpop.permute.xlu0 %6108
    %6110 = vrot.lane.b32.xlu0 %v5641, 48
    %v6111 = vpop.permute.xlu0 %6110
    %6138 = vrot.lane.b32.xlu0 %v5646, 64
    %v6139 = vpop.permute.xlu0 %6138
    %6140 = vrot.lane.b32.xlu0 %v5651, 64
    %v6141 = vpop.permute.xlu0 %6140
    %6142 = vrot.lane.b32.xlu0 %v5656, 64
    %v6143 = vpop.permute.xlu0 %6142
    %6144 = vrot.lane.b32.xlu0 %v5661, 64
    %v6145 = vpop.permute.xlu0 %6144
    %6146 = vrot.lane.b32.xlu0 %v5666, 64
    %v6147 = vpop.permute.xlu0 %6146
    %6148 = vrot.lane.b32.xlu0 %v5671, 64
    %v6149 = vpop.permute.xlu0 %6148
    %6150 = vrot.lane.b32.xlu0 %v5676, 64
    %v6151 = vpop.permute.xlu0 %6150
    %6152 = vrot.lane.b32.xlu0 %v5681, 64
    %v6153 = vpop.permute.xlu0 %6152
    %6154 = vrot.lane.b32.xlu0 %v5686, 64
    %v6155 = vpop.permute.xlu0 %6154
    %6156 = vrot.lane.b32.xlu0 %v5691, 64
    %v6157 = vpop.permute.xlu0 %6156
    %6158 = vrot.lane.b32.xlu0 %v5696, 64
    %v6159 = vpop.permute.xlu0 %6158
    %6160 = vrot.lane.b32.xlu0 %v5701, 64
    %v6161 = vpop.permute.xlu0 %6160
    %6162 = vrot.lane.b32.xlu0 %v5706, 64
    %v6163 = vpop.permute.xlu0 %6162
    %6190 = vrot.lane.b32.xlu0 %v5711, 80
    %v6191 = vpop.permute.xlu0 %6190
    %6192 = vrot.lane.b32.xlu0 %v5716, 80
    %v6193 = vpop.permute.xlu0 %6192
    %6194 = vrot.lane.b32.xlu0 %v5721, 80
    %v6195 = vpop.permute.xlu0 %6194
    %6196 = vrot.lane.b32.xlu0 %v5726, 80
    %v6197 = vpop.permute.xlu0 %6196
    %6198 = vrot.lane.b32.xlu0 %v5731, 80
    %v6199 = vpop.permute.xlu0 %6198
    %6200 = vrot.lane.b32.xlu0 %v5736, 80
    %v6201 = vpop.permute.xlu0 %6200
    %6202 = vrot.lane.b32.xlu0 %v5741, 80
    %v6203 = vpop.permute.xlu0 %6202
    %6204 = vrot.lane.b32.xlu0 %v5746, 80
    %v6205 = vpop.permute.xlu0 %6204
    %6206 = vrot.lane.b32.xlu0 %v5751, 80
    %v6207 = vpop.permute.xlu0 %6206
    %6208 = vrot.lane.b32.xlu0 %v5756, 80
    %v6209 = vpop.permute.xlu0 %6208
    %6210 = vrot.lane.b32.xlu0 %v5761, 80
    %v6211 = vpop.permute.xlu0 %6210
    %6212 = vrot.lane.b32.xlu0 %v5766, 80
    %v6213 = vpop.permute.xlu0 %6212
    %6214 = vrot.lane.b32.xlu0 %v5771, 80
    %v6215 = vpop.permute.xlu0 %6214
    %6242 = vrot.lane.b32.xlu0 %v5776, 96
    %v6243 = vpop.permute.xlu0 %6242
    %6244 = vrot.lane.b32.xlu0 %v5781, 96
    %v6245 = vpop.permute.xlu0 %6244
    %6246 = vrot.lane.b32.xlu0 %v5786, 96
    %v6247 = vpop.permute.xlu0 %6246
    %6248 = vrot.lane.b32.xlu0 %v5791, 96
    %v6249 = vpop.permute.xlu0 %6248
    %6250 = vrot.lane.b32.xlu0 %v5796, 96
    %v6251 = vpop.permute.xlu0 %6250
    %6252 = vrot.lane.b32.xlu0 %v5801, 96
    %v6253 = vpop.permute.xlu0 %6252
    %6254 = vrot.lane.b32.xlu0 %v5806, 96
    %v6255 = vpop.permute.xlu0 %6254
    %6256 = vrot.lane.b32.xlu0 %v5811, 96
    %v6257 = vpop.permute.xlu0 %6256
    %6258 = vrot.lane.b32.xlu0 %v5816, 96
    %v6259 = vpop.permute.xlu0 %6258
    %6260 = vrot.lane.b32.xlu0 %v5821, 96
    %v6261 = vpop.permute.xlu0 %6260
    %6262 = vrot.lane.b32.xlu0 %v5826, 96
    %v6263 = vpop.permute.xlu0 %6262
    %6264 = vrot.lane.b32.xlu0 %v5831, 96
    %v6265 = vpop.permute.xlu0 %6264
    %6266 = vrot.lane.b32.xlu0 %v5836, 96
    %v6267 = vpop.permute.xlu0 %6266
    %6294 = vrot.lane.b32.xlu0 %v5841, 112
    %v6295 = vpop.permute.xlu0 %6294
    %6296 = vrot.lane.b32.xlu0 %v5846, 112
    %v6297 = vpop.permute.xlu0 %6296
    %6298 = vrot.lane.b32.xlu0 %v5851, 112
    %v6299 = vpop.permute.xlu0 %6298
    %6300 = vrot.lane.b32.xlu0 %v5856, 112
    %v6301 = vpop.permute.xlu0 %6300
    %6302 = vrot.lane.b32.xlu0 %v5861, 112
    %v6303 = vpop.permute.xlu0 %6302
    %6304 = vrot.lane.b32.xlu0 %v5866, 112
    %v6305 = vpop.permute.xlu0 %6304
    %6306 = vrot.lane.b32.xlu0 %v5871, 112
    %v6307 = vpop.permute.xlu0 %6306
    %6308 = vrot.lane.b32.xlu0 %v5876, 112
    %v6309 = vpop.permute.xlu0 %6308
    %6310 = vrot.lane.b32.xlu0 %v5881, 112
    %v6311 = vpop.permute.xlu0 %6310
    %6312 = vrot.lane.b32.xlu0 %v5886, 112
    %v6313 = vpop.permute.xlu0 %6312
    %6314 = vrot.lane.b32.xlu0 %v5891, 112
    %v6315 = vpop.permute.xlu0 %6314
    %6316 = vrot.lane.b32.xlu0 %v5896, 112
    %v6317 = vpop.permute.xlu0 %6316
    %6318 = vrot.lane.b32.xlu0 %v5901, 112
    %v6319 = vpop.permute.xlu0 %6318
    %v6333 = vsel %vm4893, %v5386, %v5983
    %v6334 = vsel %vm4893, %v5391, %v5985
    %v6335 = vsel %vm4893, %v5396, %v5987
    %v6336 = vsel %vm4893, %v5401, %v5989
    %v6337 = vsel %vm4893, %v5406, %v5991
    %v6338 = vsel %vm4893, %v5411, %v5993
    %v6339 = vsel %vm4893, %v5416, %v5995
    %v6340 = vsel %vm4893, %v5421, %v5997
    %v6341 = vsel %vm4893, %v5426, %v5999
    %v6342 = vsel %vm4893, %v5431, %v6001
    %v6343 = vsel %vm4893, %v5436, %v6003
    %v6344 = vsel %vm4893, %v5441, %v6005
    %v6345 = vsel %vm4893, %v5446, %v6007
    %v6346 = vsel %vm4920, %v6333, %v6035
    %v6347 = vsel %vm4920, %v6334, %v6037
    %v6348 = vsel %vm4920, %v6335, %v6039
    %v6349 = vsel %vm4920, %v6336, %v6041
    %v6350 = vsel %vm4920, %v6337, %v6043
    %v6351 = vsel %vm4920, %v6338, %v6045
    %v6352 = vsel %vm4920, %v6339, %v6047
    %v6353 = vsel %vm4920, %v6340, %v6049
    %v6354 = vsel %vm4920, %v6341, %v6051
    %v6355 = vsel %vm4920, %v6342, %v6053
    %v6356 = vsel %vm4920, %v6343, %v6055
    %v6357 = vsel %vm4920, %v6344, %v6057
    %v6358 = vsel %vm4920, %v6345, %v6059
    %v6359 = vsel %vm2454, %v6346, %v6087
    %v6360 = vsel %vm2454, %v6347, %v6089
    %v6361 = vsel %vm2454, %v6348, %v6091
    %v6362 = vsel %vm2454, %v6349, %v6093
    %v6363 = vsel %vm2454, %v6350, %v6095
    %v6364 = vsel %vm2454, %v6351, %v6097
    %v6365 = vsel %vm2454, %v6352, %v6099
    %v6366 = vsel %vm2454, %v6353, %v6101
    %v6367 = vsel %vm2454, %v6354, %v6103
    %v6368 = vsel %vm2454, %v6355, %v6105
    %v6369 = vsel %vm2454, %v6356, %v6107
    %v6370 = vsel %vm2454, %v6357, %v6109
    %v6371 = vsel %vm2454, %v6358, %v6111
    %v6372 = vsel %vm4975, %v6359, %v6139
    %v6373 = vsel %vm4975, %v6360, %v6141
    %v6374 = vsel %vm4975, %v6361, %v6143
    %v6375 = vsel %vm4975, %v6362, %v6145
    %v6376 = vsel %vm4975, %v6363, %v6147
    %v6377 = vsel %vm4975, %v6364, %v6149
    %v6378 = vsel %vm4975, %v6365, %v6151
    %v6379 = vsel %vm4975, %v6366, %v6153
    %v6380 = vsel %vm4975, %v6367, %v6155
    %v6381 = vsel %vm4975, %v6368, %v6157
    %v6382 = vsel %vm4975, %v6369, %v6159
    %v6383 = vsel %vm4975, %v6370, %v6161
    %v6384 = vsel %vm4975, %v6371, %v6163
    %vm6385 = vcmask 654336
    %v6386 = vsel %vm6385, %v6372, %v6191
    %v6387 = vsel %vm6385, %v6373, %v6193
    %v6388 = vsel %vm6385, %v6374, %v6195
    %v6389 = vsel %vm6385, %v6375, %v6197
    %v6390 = vsel %vm6385, %v6376, %v6199
    %v6391 = vsel %vm6385, %v6377, %v6201
    %v6392 = vsel %vm6385, %v6378, %v6203
    %v6393 = vsel %vm6385, %v6379, %v6205
    %v6394 = vsel %vm6385, %v6380, %v6207
    %v6395 = vsel %vm6385, %v6381, %v6209
    %v6396 = vsel %vm6385, %v6382, %v6211
    %v6397 = vsel %vm6385, %v6383, %v6213
    %v6398 = vsel %vm6385, %v6384, %v6215
    %v6399 = vsel %vm2510, %v6386, %v6243
    %v6400 = vsel %vm2510, %v6387, %v6245
    %v6401 = vsel %vm2510, %v6388, %v6247
    %v6402 = vsel %vm2510, %v6389, %v6249
    %v6403 = vsel %vm2510, %v6390, %v6251
    %v6404 = vsel %vm2510, %v6391, %v6253
    %v6405 = vsel %vm2510, %v6392, %v6255
    %v6406 = vsel %vm2510, %v6393, %v6257
    %v6407 = vsel %vm2510, %v6394, %v6259
    %v6408 = vsel %vm2510, %v6395, %v6261
    %v6409 = vsel %vm2510, %v6396, %v6263
    %v6410 = vsel %vm2510, %v6397, %v6265
    %v6411 = vsel %vm2510, %v6398, %v6267
    %vm6412 = vcmask 916480
    %v6413 = vsel %vm6412, %v6399, %v6295
    %v6414 = vsel %vm6412, %v6400, %v6297
    %v6415 = vsel %vm6412, %v6401, %v6299
    %v6416 = vsel %vm6412, %v6402, %v6301
    %v6417 = vsel %vm6412, %v6403, %v6303
    %v6418 = vsel %vm6412, %v6404, %v6305
    %v6419 = vsel %vm6412, %v6405, %v6307
    %v6420 = vsel %vm6412, %v6406, %v6309
    %v6421 = vsel %vm6412, %v6407, %v6311
    %v6422 = vsel %vm6412, %v6408, %v6313
    %v6423 = vsel %vm6412, %v6409, %v6315
    %v6424 = vsel %vm6412, %v6410, %v6317
    %v6425 = vsel %vm6412, %v6411, %v6319
    %v6426 = vlaneseq
    %v6427 = vshrl.u32 %v6426, 7
    %v6428 = vsub.s32 0, %v6427
    %v6429 = vrot.slane %v5297, %v6428
    %v6431 = vsel %vm4893, %v5906, 0
    %v6434 = vsel %vm4893, %v5911, 0
    %v6437 = vsel %vm4893, %v5916, 0
    %v6440 = vsel %vm4893, %v5921, 0
    %v6443 = vsel %vm4893, %v5926, 0
    %v6446 = vsel %vm4893, %v5931, 0
    %v6449 = vsel %vm4893, %v5936, 0
    %v6452 = vsel %vm4893, %v5941, 0
    %v6455 = vsel %vm4893, %v5946, 0
    %v6458 = vsel %vm4893, %v5951, 0
    %v6461 = vsel %vm4893, %v5956, 0
    %v6464 = vsel %vm4893, %v5961, 0
    %v6467 = vsel %vm4893, %v5966, 0
    %6469 = vmatprep.subr.mxu0 0.0
    %6470 = vmatpush1.msra.mxu0 %v5298
    %6471 = vmatprep.subr.mxu0 0.0
    %6472 = vmatpush1.msra.mxu0 %v5299
    %6473 = vmatprep.subr.mxu0 0.0
    %6474 = vmatpush1.msra.mxu0 %v5300
    %6475 = vmatprep.subr.mxu0 0.0
    %6476 = vmatpush1.msra.mxu0 %v5301
    %6477 = vmatprep.subr.mxu0 0.0
    %6478 = vmatpush1.msra.mxu0 %v5302
    %6479 = vmatprep.subr.mxu0 0.0
    %6480 = vmatpush1.msra.mxu0 %v5303
    %6481 = vmatprep.subr.mxu0 0.0
    %6482 = vmatpush1.msra.mxu0 %v5304
    %6483 = vmatprep.subr.mxu0 0.0
    %6484 = vmatpush1.msra.mxu0 %v5305
    %6485 = vmatprep.subr.mxu0 0.0
    %6486 = vmatpush1.msra.mxu0 %v5306
    %6487 = vmatprep.subr.mxu0 0.0
    %6488 = vmatpush1.msra.mxu0 %v5307
    %6489 = vmatprep.subr.mxu0 0.0
    %6490 = vmatpush1.msra.mxu0 %v5308
    %6491 = vmatprep.subr.mxu0 0.0
    %6492 = vmatpush1.msra.mxu0 %v5309
    %6493 = vmatprep.subr.mxu0 0.0
    %6494 = vmatpush1.msra.mxu0 %v5310
    %6495 = vmatprep.subr.mxu0 0.0
    %6496 = vmatpush1.msra.mxu0 %v5311
    %6497 = vmatprep.subr.mxu0 0.0
    %6498 = vmatpush1.msra.mxu0 %v5312
    %6499 = vmatprep.subr.mxu0 0.0
    %6500 = vmatpush1.msra.mxu0 %v5313
    %6501 = vmatprep.subr.mxu0 0.0
    %6502 = vmatpush1.msra.mxu0 %v5314
    %6503 = vmatprep.subr.mxu0 0.0
    %6504 = vmatpush1.msra.mxu0 %v5315
    %6505 = vmatprep.subr.mxu0 0.0
    %6506 = vmatpush1.msra.mxu0 0.0
    %6507 = vmatprep.subr.mxu0 0.0
    %6508 = vmatpush1.msra.mxu0 0.0
    %6509 = vmatprep.subr.mxu0 0.0
    %6510 = vmatpush1.msra.mxu0 0.0
    %6511 = vmatprep.subr.mxu0 0.0
    %6512 = vmatpush1.msra.mxu0 0.0
    %6513 = vmatprep.subr.mxu0 0.0
    %6514 = vmatpush1.msra.mxu0 0.0
    %6515 = vmatprep.subr.mxu0 0.0
    %6516 = vmatpush1.msra.mxu0 0.0
    %6517 = vmatprep.subr.mxu0 0.0
    %6518 = vmatpush1.msra.mxu0 0.0
    %6519 = vmatprep.subr.mxu0 0.0
    %6520 = vmatpush1.msra.mxu0 0.0
    %6521 = vmatprep.subr.mxu0 0.0
    %6522 = vmatpush1.msra.mxu0 0.0
    %6523 = vmatprep.subr.mxu0 0.0
    %6524 = vmatpush1.msra.mxu0 0.0
    %6525 = vmatprep.subr.mxu0 0.0
    %6526 = vmatpush1.msra.mxu0 0.0
    %6527 = vmatprep.subr.mxu0 0.0
    %6528 = vmatpush1.msra.mxu0 0.0
    %6529 = vmatprep.subr.mxu0 0.0
    %6530 = vmatpush1.msra.mxu0 0.0
    %6531 = vmatprep.subr.mxu0 0.0
    %6532 = vmatpush1.msra.mxu0 0.0
    %6533 = vmatprep.mubr.f32.mxu0 %v6431
    %6534 = vmatmul.mubr.f32.gmra.mrb[0].mxu0 %v6413
    %v6535 = vpop.f32.mrb[0].mxu0
    %v6536 = vadd.f32 %v6429, %v6535
    %v6537 = vpop.f32.mrb[0].mxu0
    %6538 = vmatprep.mubr.f32.mxu0 %v6434
    %6539 = vmatmul.mubr.f32.gmra.mrb[0].mxu0 %v6414
    %v6540 = vpop.f32.mrb[0].mxu0
    %v6541 = vadd.f32 %v6429, %v6540
    %v6542 = vpop.f32.mrb[0].mxu0
    %6543 = vmatprep.mubr.f32.mxu0 %v6437
    %6544 = vmatmul.mubr.f32.gmra.mrb[0].mxu0 %v6415
    %v6545 = vpop.f32.mrb[0].mxu0
    %v6546 = vadd.f32 %v6429, %v6545
    %v6547 = vpop.f32.mrb[0].mxu0
    %6548 = vmatprep.mubr.f32.mxu0 %v6440
    %6549 = vmatmul.mubr.f32.gmra.mrb[0].mxu0 %v6416
    %v6550 = vpop.f32.mrb[0].mxu0
    %v6551 = vadd.f32 %v6429, %v6550
    %v6552 = vpop.f32.mrb[0].mxu0
    %6553 = vmatprep.mubr.f32.mxu0 %v6443
    %6554 = vmatmul.mubr.f32.gmra.mrb[0].mxu0 %v6417
    %v6555 = vpop.f32.mrb[0].mxu0
    %v6556 = vadd.f32 %v6429, %v6555
    %v6557 = vpop.f32.mrb[0].mxu0
    %6558 = vmatprep.mubr.f32.mxu0 %v6446
    %6559 = vmatmul.mubr.f32.gmra.mrb[0].mxu0 %v6418
    %v6560 = vpop.f32.mrb[0].mxu0
    %v6561 = vadd.f32 %v6429, %v6560
    %v6562 = vpop.f32.mrb[0].mxu0
    %6563 = vmatprep.mubr.f32.mxu0 %v6449
    %6564 = vmatmul.mubr.f32.gmra.mrb[0].mxu0 %v6419
    %v6565 = vpop.f32.mrb[0].mxu0
    %v6566 = vadd.f32 %v6429, %v6565
    %v6567 = vpop.f32.mrb[0].mxu0
    %6568 = vmatprep.mubr.f32.mxu0 %v6452
    %6569 = vmatmul.mubr.f32.gmra.mrb[0].mxu0 %v6420
    %v6570 = vpop.f32.mrb[0].mxu0
    %v6571 = vadd.f32 %v6429, %v6570
    %v6572 = vpop.f32.mrb[0].mxu0
    %6573 = vmatprep.mubr.f32.mxu0 %v6455
    %6574 = vmatmul.mubr.f32.gmra.mrb[0].mxu0 %v6421
    %v6575 = vpop.f32.mrb[0].mxu0
    %v6576 = vadd.f32 %v6429, %v6575
    %v6577 = vpop.f32.mrb[0].mxu0
    %6578 = vmatprep.mubr.f32.mxu0 %v6458
    %6579 = vmatmul.mubr.f32.gmra.mrb[0].mxu0 %v6422
    %v6580 = vpop.f32.mrb[0].mxu0
    %v6581 = vadd.f32 %v6429, %v6580
    %v6582 = vpop.f32.mrb[0].mxu0
    %6583 = vmatprep.mubr.f32.mxu0 %v6461
    %6584 = vmatmul.mubr.f32.gmra.mrb[0].mxu0 %v6423
    %v6585 = vpop.f32.mrb[0].mxu0
    %v6586 = vadd.f32 %v6429, %v6585
    %v6587 = vpop.f32.mrb[0].mxu0
    %6588 = vmatprep.mubr.f32.mxu0 %v6464
    %6589 = vmatmul.mubr.f32.gmra.mrb[0].mxu0 %v6424
    %v6590 = vpop.f32.mrb[0].mxu0
    %v6591 = vadd.f32 %v6429, %v6590
    %v6592 = vpop.f32.mrb[0].mxu0
    %6593 = vmatprep.mubr.f32.mxu0 %v6467
    %6594 = vmatmul.mubr.f32.gmra.mrb[0].mxu0 %v6425
    %v6595 = vpop.f32.mrb[0].mxu0
    %v6596 = vadd.f32 %v6429, %v6595
    %v6597 = vpop.f32.mrb[0].mxu0
    %6598 = vdwg.mxu0
    %v6599 = vmax.f32 %v6536, 0.0
    %v6600 = vmax.f32 %v6541, 0.0
    %v6601 = vmax.f32 %v6546, 0.0
    %v6602 = vmax.f32 %v6551, 0.0
    %v6603 = vmax.f32 %v6556, 0.0
    %v6604 = vmax.f32 %v6561, 0.0
    %v6605 = vmax.f32 %v6566, 0.0
    %v6606 = vmax.f32 %v6571, 0.0
    %v6607 = vmax.f32 %v6576, 0.0
    %v6608 = vmax.f32 %v6581, 0.0
    %v6609 = vmax.f32 %v6586, 0.0
    %v6610 = vmax.f32 %v6591, 0.0
    %v6611 = vmax.f32 %v6596, 0.0
    %vm6612 = vcmask 39936
    %v6613 = vsel %vm6612, %v6599, 0.0
    %v6614 = vsel %vm6612, %v6600, 0.0
    %v6615 = vadd.f32 %v6613, %v6614
    %v6616 = vsel %vm6612, %v6601, 0.0
    %v6617 = vadd.f32 %v6615, %v6616
    %v6618 = vsel %vm6612, %v6602, 0.0
    %v6619 = vadd.f32 %v6617, %v6618
    %v6620 = vsel %vm6612, %v6603, 0.0
    %v6621 = vadd.f32 %v6619, %v6620
    %v6622 = vsel %vm6612, %v6604, 0.0
    %v6623 = vadd.f32 %v6621, %v6622
    %v6624 = vsel %vm6612, %v6605, 0.0
    %v6625 = vadd.f32 %v6623, %v6624
    %v6626 = vsel %vm6612, %v6606, 0.0
    %v6627 = vadd.f32 %v6625, %v6626
    %v6628 = vsel %vm6612, %v6607, 0.0
    %v6629 = vadd.f32 %v6627, %v6628
    %v6630 = vsel %vm6612, %v6608, 0.0
    %v6631 = vadd.f32 %v6629, %v6630
    %v6632 = vsel %vm6612, %v6609, 0.0
    %v6633 = vadd.f32 %v6631, %v6632
    %v6634 = vsel %vm6612, %v6610, 0.0
    %v6635 = vadd.f32 %v6633, %v6634
    %vm6636 = vcmask 33792
    %v6637 = vsel %vm6636, %v6611, 0.0
    %v6638 = vadd.f32 %v6635, %v6637
    %v6639 = vrot.slane %v6638, 4
    %v6640 = vadd.f32 %v6638, %v6639
    %v6641 = vrot.slane %v6640, 2
    %v6642 = vadd.f32 %v6640, %v6641
    %v6643 = vrot.slane %v6642, 1
    %v6644 = vadd.f32 %v6642, %v6643
    %v6645 = vmul.f32 %v6599, %v6599
    %v6646 = vmul.f32 %v6600, %v6600
    %v6647 = vmul.f32 %v6601, %v6601
    %v6648 = vmul.f32 %v6602, %v6602
    %v6649 = vmul.f32 %v6603, %v6603
    %v6650 = vmul.f32 %v6604, %v6604
    %v6651 = vmul.f32 %v6605, %v6605
    %v6652 = vmul.f32 %v6606, %v6606
    %v6653 = vmul.f32 %v6607, %v6607
    %v6654 = vmul.f32 %v6608, %v6608
    %v6655 = vmul.f32 %v6609, %v6609
    %v6656 = vmul.f32 %v6610, %v6610
    %v6657 = vmul.f32 %v6611, %v6611
    %v6658 = vsel %vm6612, %v6645, 0.0
    %v6659 = vsel %vm6612, %v6646, 0.0
    %v6660 = vadd.f32 %v6658, %v6659
    %v6661 = vsel %vm6612, %v6647, 0.0
    %v6662 = vadd.f32 %v6660, %v6661
    %v6663 = vsel %vm6612, %v6648, 0.0
    %v6664 = vadd.f32 %v6662, %v6663
    %v6665 = vsel %vm6612, %v6649, 0.0
    %v6666 = vadd.f32 %v6664, %v6665
    %v6667 = vsel %vm6612, %v6650, 0.0
    %v6668 = vadd.f32 %v6666, %v6667
    %v6669 = vsel %vm6612, %v6651, 0.0
    %v6670 = vadd.f32 %v6668, %v6669
    %v6671 = vsel %vm6612, %v6652, 0.0
    %v6672 = vadd.f32 %v6670, %v6671
    %v6673 = vsel %vm6612, %v6653, 0.0
    %v6674 = vadd.f32 %v6672, %v6673
    %v6675 = vsel %vm6612, %v6654, 0.0
    %v6676 = vadd.f32 %v6674, %v6675
    %v6677 = vsel %vm6612, %v6655, 0.0
    %v6678 = vadd.f32 %v6676, %v6677
    %v6679 = vsel %vm6612, %v6656, 0.0
    %v6680 = vadd.f32 %v6678, %v6679
    %v6681 = vsel %vm6636, %v6657, 0.0
    %v6682 = vadd.f32 %v6680, %v6681
    %v6683 = vrot.slane %v6682, 4
    %v6684 = vadd.f32 %v6682, %v6683
    %v6685 = vrot.slane %v6684, 2
    %v6686 = vadd.f32 %v6684, %v6685
    %v6687 = vrot.slane %v6686, 1
    %v6688 = vadd.f32 %v6686, %v6687
    %v6689 = vmul.f32 %v6644, 0.010204081
    %v6690 = vmul.f32 %v6688, 0.010204081
    %v6691 = vmul.f32 %v6689, %v6689
    %v6692 = vsub.f32 %v6690, %v6691
    %v6693 = vadd.f32 %v6692, 1e-05
    %v6694 = vrsqrt.pop %v6693
    %v6695 = vmul.f32 %v5297, %v6694
    %v6696 = vlaneseq
    %v6697 = vshrl.u32 %v6696, 7
    %v6698 = vsub.s32 1, %v6697
    %v6699 = vrot.slane %v6695, %v6698
    %v6700 = vmul.f32 %v6599, %v6699
    %v6701 = vmul.f32 %v6600, %v6699
    %v6702 = vmul.f32 %v6601, %v6699
    %v6703 = vmul.f32 %v6602, %v6699
    %v6704 = vmul.f32 %v6603, %v6699
    %v6705 = vmul.f32 %v6604, %v6699
    %v6706 = vmul.f32 %v6605, %v6699
    %v6707 = vmul.f32 %v6606, %v6699
    %v6708 = vmul.f32 %v6607, %v6699
    %v6709 = vmul.f32 %v6608, %v6699
    %v6710 = vmul.f32 %v6609, %v6699
    %v6711 = vmul.f32 %v6610, %v6699
    %v6712 = vmul.f32 %v6611, %v6699
    %v6713 = vmul.f32 %v6689, %v6695
    %v6715 = vrot.slane %v6713, 7
    %v6717 = vsub.f32 %v5297, %v6715
    %v6718 = vlaneseq
    %v6719 = vshrl.u32 %v6718, 7
    %v6720 = vsub.s32 2, %v6719
    %v6721 = vrot.slane %v6717, %v6720
    %v6722 = vadd.f32 %v6700, %v6721
    %v6723 = vadd.f32 %v6701, %v6721
    %v6724 = vadd.f32 %v6702, %v6721
    %v6725 = vadd.f32 %v6703, %v6721
    %v6726 = vadd.f32 %v6704, %v6721
    %v6727 = vadd.f32 %v6705, %v6721
    %v6728 = vadd.f32 %v6706, %v6721
    %v6729 = vadd.f32 %v6707, %v6721
    %v6730 = vadd.f32 %v6708, %v6721
    %v6731 = vadd.f32 %v6709, %v6721
    %v6732 = vadd.f32 %v6710, %v6721
    %v6733 = vadd.f32 %v6711, %v6721
    %v6734 = vadd.f32 %v6712, %v6721
    %v6735 = vlaneseq
    %v6736 = vshrl.u32 %v6735, 7
    %v6737 = vmul.u32 %v6736, 49
    %vm6738 = vcmp.ge.s32.totalorder %v155, %v6737
    %v6739 = vadd.s32 %v6736, 1
    %v6740 = vmul.u32 %v6739, 49
    %vm6741 = vcmp.lt.s32.totalorder %v155, %v6740
    %vm6742 = vmand %vm6738, %vm6741
    %v6743 = vsel %vm6742, 0.020408163, 0.0
    %v6745 = vsel %vm3459, %v6743, 0
    %v6748 = vsel %vm1342, %v6734, 0
    %6750 = vmatprep.subr.mxu0 0.0
    %6751 = vmatpush1.msra.mxu0 %v6722
    %6752 = vmatprep.subr.mxu0 0.0
    %6753 = vmatpush1.msra.mxu0 %v6723
    %6754 = vmatprep.subr.mxu0 0.0
    %6755 = vmatpush1.msra.mxu0 %v6724
    %6756 = vmatprep.subr.mxu0 0.0
    %6757 = vmatpush1.msra.mxu0 %v6725
    %6758 = vmatprep.subr.mxu0 0.0
    %6759 = vmatpush1.msra.mxu0 %v6726
    %6760 = vmatprep.subr.mxu0 0.0
    %6761 = vmatpush1.msra.mxu0 %v6727
    %6762 = vmatprep.subr.mxu0 0.0
    %6763 = vmatpush1.msra.mxu0 %v6728
    %6764 = vmatprep.subr.mxu0 0.0
    %6765 = vmatpush1.msra.mxu0 %v6729
    %6766 = vmatprep.subr.mxu0 0.0
    %6767 = vmatpush1.msra.mxu0 %v6730
    %6768 = vmatprep.subr.mxu0 0.0
    %6769 = vmatpush1.msra.mxu0 %v6731
    %6770 = vmatprep.subr.mxu0 0.0
    %6771 = vmatpush1.msra.mxu0 %v6732
    %6772 = vmatprep.subr.mxu0 0.0
    %6773 = vmatpush1.msra.mxu0 %v6733
    %6774 = vmatprep.subr.mxu0 0.0
    %6775 = vmatpush1.msra.mxu0 %v6748
    %6776 = vmatprep.subr.mxu0 0.0
    %6777 = vmatpush1.msra.mxu0 0.0
    %6778 = vmatprep.subr.mxu0 0.0
    %6779 = vmatpush1.msra.mxu0 0.0
    %6780 = vmatprep.subr.mxu0 0.0
    %6781 = vmatpush1.msra.mxu0 0.0
    %6782 = vmatprep.subr.mxu0 0.0
    %6783 = vmatpush1.msra.mxu0 0.0
    %6784 = vmatprep.subr.mxu0 0.0
    %6785 = vmatpush1.msra.mxu0 0.0
    %6786 = vmatprep.subr.mxu0 0.0
    %6787 = vmatpush1.msra.mxu0 0.0
    %6788 = vmatprep.subr.mxu0 0.0
    %6789 = vmatpush1.msra.mxu0 0.0
    %6790 = vmatprep.subr.mxu0 0.0
    %6791 = vmatpush1.msra.mxu0 0.0
    %6792 = vmatprep.subr.mxu0 0.0
    %6793 = vmatpush1.msra.mxu0 0.0
    %6794 = vmatprep.subr.mxu0 0.0
    %6795 = vmatpush1.msra.mxu0 0.0
    %6796 = vmatprep.subr.mxu0 0.0
    %6797 = vmatpush1.msra.mxu0 0.0
    %6798 = vmatprep.subr.mxu0 0.0
    %6799 = vmatpush1.msra.mxu0 0.0
    %6800 = vmatprep.subr.mxu0 0.0
    %6801 = vmatpush1.msra.mxu0 0.0
    %6802 = vmatprep.subr.mxu0 0.0
    %6803 = vmatpush1.msra.mxu0 0.0
    %6804 = vmatprep.subr.mxu0 0.0
    %6805 = vmatpush1.msra.mxu0 0.0
    %6806 = vmatprep.subr.mxu0 0.0
    %6807 = vmatpush1.msra.mxu0 0.0
    %6808 = vmatprep.subr.mxu0 0.0
    %6809 = vmatpush1.msra.mxu0 0.0
    %6810 = vmatprep.subr.mxu0 0.0
    %6811 = vmatpush1.msra.mxu0 0.0
    %6812 = vmatprep.subr.mxu0 0.0
    %6813 = vmatpush1.msra.mxu0 0.0
    %6814 = vmatprep.mubr.f32.mxu0 0.0
    %6815 = vmatmul.mubr.f32.gmra.mrb[0].mxu0 %v6745
    %v6816 = vpop.f32.mrb[0].mxu0
    %v6817 = vadd.f32 0.0, %v6816
    %v6818 = vpop.f32.mrb[0].mxu0
    %6819 = vdwg.mxu0
    %v6820 = vsel %vm6636, %v6817, -inf
    %6821 = vmax.xlane.f32.xlu0 %v6820
    %v6822 = vpop.xlane.xlu0 %6821
    %v6823 = vsub.f32 %v6817, %v6822
    %v6824 = vmul.f32 %v6823, 1.442695
    %v6825 = vpow.pop %v6824
    %v6826 = vsel %vm6636, %v6825, 0.0
    %6827 = vadd.xlane.f32.xlu0 %v6826
    %v6828 = vpop.xlane.xlu0 %6827
    %v6829 = vrcp.pop %v6828
    %v6830 = vmul.f32 %v6825, %v6829
    %6831 = vst.msk [vmem:[#allocation2] sm:$0x3] %vm6636, %v6830
    // Predicated region
    $region14: #{model_forward.1} parent=1 // pred_check
      _
    $region15: #{model_forward.1} parent=1 // pred_check_branch
      %6833 = sbr.rel (0) target = $region17
    $region16: #{model_forward.1} parent=1 // pred_region
      %s6835 = ssub.s32 32, 32
      %6836 = vsyncadd [#allocation3], %s6835
      %s6838 = sshll.u32 [#allocation2], 4
      %s6839 = int_to_ptr.vmem [resolvable:$true] %s6838
      %6841 = dma.vmem_to_hbm [thread:$0]  %s6839, 32, %s3, [#allocation3]
    $region17: #{model_forward.1} parent=1 // pred_fallthru
      _
    // Predicated region
    $region18: #{model_forward.1} parent=1 // pred_check
      _
    $region19: #{model_forward.1} parent=1 // pred_check_branch
      %6843 = sbr.rel (0) target = $region21
    $region20: #{model_forward.1} parent=1 // pred_region
      %6844 = dma.done [#allocation3], 32
    $region21: #{model_forward.1} parent=1 // pred_fallthru
      _
    %6845 = vsyncpa [#allocation3], 1

</llo_original>
